<compile_context>
chip_gen: v6e
topology: v6e:2x2x1
jax: 0.10.0
libtpu: 0.0.40
codegen_flags: <defaults>
</compile_context>

<pallas_src>
import functools

import jax
import jax.numpy as jnp
from jax.experimental import pallas as pl
from jax.experimental.pallas import tpu as pltpu


_INV_SQRT2 = 0.7071067811865476  # 1/sqrt(2), precomputed reciprocal constant


def _round_up(a: int, b: int) -> int:
    return (a + b - 1) // b * b


def _ceil_div(a: int, b: int) -> int:
    return -(-a // b)


def _vmem_limit_bytes() -> int:
    """Generation-aware scoped-VMEM cap: ~100 MiB on 128 MiB parts (v5e/v6e),
    ~48 MiB on 64 MiB/TC parts (v7x). Conservative fallback if the query fails."""
    try:
        cap = pltpu.get_tpu_info().vmem_capacity_bytes
    except Exception:  # noqa: BLE001 - any failure -> conservative default
        cap = 64 * 1024 * 1024
    if cap >= 128 * 1024 * 1024:
        return 100 * 1024 * 1024
    return 48 * 1024 * 1024


def _make_graph_mlp_kernel(num_hidden_layers: int, approx_gelu: bool):
    """Kernel for a GraphMLP with `num_hidden_layers` = n_layers - 1
    intermediate (gelu -> layernorm -> fc) blocks. Processes one node tile.
    The LayerNorm affine is already folded into each following FC weight."""

    def kernel(*refs):
        # refs layout:
        #   x, w1, b1, [w_l, b_l] * num_hidden_layers, wc, bc, out
        x_ref, w1_ref, b1_ref = refs[0], refs[1], refs[2]
        idx = 3

        # fc1 — bf16 MXU inputs, f32 accumulation, bias added in f32.
        x_bf16 = x_ref[...].astype(jnp.bfloat16)
        h = (
            jnp.dot(x_bf16, w1_ref[...], preferred_element_type=jnp.float32)
            + b1_ref[...]
        )

        for _ in range(num_hidden_layers):
            w_ref, b_ref = refs[idx], refs[idx + 1]
            idx += 2

            # gelu (torch default is the exact erf form).
            if approx_gelu:
                h = jax.nn.gelu(h, approximate=True)  # tanh -> EUP slot
            else:
                h = 0.5 * h * (1.0 + jax.lax.erf(h * _INV_SQRT2))

            # LayerNorm (eps=1e-6), two-pass statistics in f32.  The affine
            # (gamma, beta) is folded into w_ref / b_ref by the wrapper.
            mu = jnp.mean(h, axis=-1, keepdims=True)
            c = h - mu
            var = jnp.mean(c * c, axis=-1, keepdims=True)
            h = c * jax.lax.rsqrt(var + 1e-6)

            # dropout: identity in eval mode

            # fc layer (LN-affine folded) — bf16 MXU inputs, f32 accumulation.
            h = (
                jnp.dot(
                    h.astype(jnp.bfloat16),
                    w_ref[...],
                    preferred_element_type=jnp.float32,
                )
                + b_ref[...]
            )

        wc_ref, bc_ref, out_ref = refs[idx], refs[idx + 1], refs[idx + 2]
        out_ref[...] = (
            jnp.dot(
                h.astype(jnp.bfloat16),
                wc_ref[...],
                preferred_element_type=jnp.float32,
            )
            + bc_ref[...]
        ).astype(out_ref.dtype)

    return kernel


def prepare_params(params, n_layers):
    """One-time parameter preparation (run outside the per-call jit):
      * fold LayerNorm gamma/beta into the following FC layer (in f32),
      * zero-pad w1 rows to a 128-lane multiple of in_feats,
      * pad the classifier to a lane-dense (>=128, multiple of 128) class dim,
      * cast all matmul weights to bf16 exactly once."""
    num_hidden = n_layers - 1
    in_feats, _ = params["w1"].shape
    n_classes = params["wc"].shape[1]
    bf16 = jnp.bfloat16

    # fc1: pad the K (feature) dim to a 128 multiple (zeros keep results exact).
    in_pad = _round_up(max(in_feats, 128), 128)
    w1 = params["w1"]
    if in_pad != in_feats:
        w1 = jnp.pad(w1, ((0, in_pad - in_feats), (0, 0)))

    # hidden layers: fold LN affine into the next FC layer (f32, pre-cast).
    ws, bs = [], []
    for l in range(num_hidden):
        gamma = params["ln_gamma"][l].reshape(-1, 1)  # (H, 1)
        beta = params["ln_beta"][l]                   # (1, H)
        w = params["w"][l]
        b = params["b"][l]
        w_folded = gamma * w                          # diag(gamma) @ W, f32
        b_folded = beta @ w + b                       # beta @ W + b,   f32
        ws.append(w_folded.astype(bf16))
        bs.append(b_folded)

    # classifier: lane-dense padded class dim.
    nc_pad = _round_up(max(n_classes, 128), 128)
    wc, bc = params["wc"], params["bc"]
    if nc_pad != n_classes:
        wc = jnp.pad(wc, ((0, 0), (0, nc_pad - n_classes)))
        bc = jnp.pad(bc, ((0, 0), (0, nc_pad - n_classes)))

    return {
        "w1": w1.astype(bf16),
        "b1": params["b1"],
        "w": ws,
        "b": bs,
        "wc": wc.astype(bf16),
        "bc": bc,
    }


@functools.partial(
    jax.jit, static_argnames=("n_classes", "tile_m_max", "approx_gelu")
)
def graph_mlp_forward(x, prep, *, n_classes, tile_m_max=512, approx_gelu=False):
    """x: (n_nodes, in_feats) f32.  prep: output of prepare_params()."""
    num_hidden = len(prep["w"])
    n_nodes, in_feats = x.shape
    in_pad = prep["w1"].shape[0]
    nc_pad = prep["wc"].shape[1]

    # Pad the feature dim to match the padded w1 (zeros contribute nothing).
    if in_pad != in_feats:
        x = jnp.pad(x, ((0, 0), (0, in_pad - in_feats)))

    # --- node-dimension tiling: split into ceil(N / tile_m_max) near-equal
    #     tiles, each a multiple of 8 sublanes, minimizing zero-padded rows ---
    n_rows = _round_up(n_nodes, 8)
    n_tiles = _ceil_div(n_rows, tile_m_max)
    tile_m = _round_up(_ceil_div(n_rows, n_tiles), 8)
    n_pad = tile_m * n_tiles
    if n_pad != n_nodes:
        x = jnp.pad(x, ((0, n_pad - n_nodes), (0, 0)))

    inputs = [x, prep["w1"], prep["b1"]]
    for l in range(num_hidden):
        inputs += [prep["w"][l], prep["b"][l]]
    inputs += [prep["wc"], prep["bc"]]

    kernel = _make_graph_mlp_kernel(num_hidden, approx_gelu)

    def _const_map(i):
        return (0, 0)

    in_specs = [pl.BlockSpec((tile_m, in_pad), lambda i: (i, 0))]
    # all parameters: full-array blocks, resident in VMEM across grid steps
    in_specs += [pl.BlockSpec(a.shape, _const_map) for a in inputs[1:]]
    out_specs = pl.BlockSpec((tile_m, nc_pad), lambda i: (i, 0))

    out = pl.pallas_call(
        kernel,
        out_shape=jax.ShapeDtypeStruct((n_pad, nc_pad), jnp.float32),
        grid=(n_tiles,),
        in_specs=in_specs,
        out_specs=out_specs,
        compiler_params=pltpu.CompilerParams(
            dimension_semantics=("parallel",),
            vmem_limit_bytes=_vmem_limit_bytes(),
        ),
    )(*inputs)

    return out[:n_nodes, :n_classes]


def init_params(key, in_feats, n_hidden, n_classes, n_layers):
    """Deterministic synthetic parameters (shapes match the PyTorch module).
    LN gamma/beta are given non-trivial values so the affine fold is exercised."""
    keys = jax.random.split(key, 4 * n_layers + 4)
    ki = iter(keys)

    def xavier(k, fan_in, fan_out):
        limit = jnp.sqrt(6.0 / (fan_in + fan_out))
        return jax.random.uniform(
            k, (fan_in, fan_out), jnp.float32, minval=-limit, maxval=limit
        )

    params = {
        "w1": xavier(next(ki), in_feats, n_hidden),
        "b1": jax.random.normal(next(ki), (1, n_hidden), jnp.float32) * 0.01,
        "ln_gamma": [],
        "ln_beta": [],
        "w": [],
        "b": [],
    }
    for _ in range(n_layers - 1):
        params["ln_gamma"].append(
            1.0 + 0.1 * jax.random.normal(next(ki), (1, n_hidden), jnp.float32)
        )
        params["ln_beta"].append(
            0.05 * jax.random.normal(next(ki), (1, n_hidden), jnp.float32)
        )
        params["w"].append(xavier(next(ki), n_hidden, n_hidden))
        params["b"].append(
            jax.random.normal(next(ki), (1, n_hidden), jnp.float32) * 1e-6
        )
    params["wc"] = xavier(next(ki), n_hidden, n_classes)
    params["bc"] = jax.random.normal(next(ki), (1, n_classes), jnp.float32) * 0.01
    return params


def reference_forward(x, params, n_layers):
    """Pure-JAX f32 reference mirroring the PyTorch eval forward (unfused)."""
    h = x @ params["w1"] + params["b1"]
    for l in range(n_layers - 1):
        h = jax.nn.gelu(h, approximate=False)
        mu = jnp.mean(h, axis=-1, keepdims=True)
        var = jnp.mean((h - mu) ** 2, axis=-1, keepdims=True)
        h = (h - mu) / jnp.sqrt(var + 1e-6)
        h = h * params["ln_gamma"][l] + params["ln_beta"][l]
        h = h @ params["w"][l] + params["b"][l]
    return h @ params["wc"] + params["bc"]


def reference_forward_prepared(x, prep):
    """Mirror of the kernel's exact computation order (folded LN affine,
    bf16 matmul inputs, f32 accumulation) for a tight numerical check."""

    def mm(a, w_bf16):
        return jnp.dot(
            a.astype(jnp.bfloat16), w_bf16, preferred_element_type=jnp.float32
        )

    in_pad = prep["w1"].shape[0]
    if x.shape[1] != in_pad:
        x = jnp.pad(x, ((0, 0), (0, in_pad - x.shape[1])))
    h = mm(x, prep["w1"]) + prep["b1"]
    for w, b in zip(prep["w"], prep["b"]):
        h = 0.5 * h * (1.0 + jax.lax.erf(h * _INV_SQRT2))
        mu = jnp.mean(h, axis=-1, keepdims=True)
        c = h - mu
        var = jnp.mean(c * c, axis=-1, keepdims=True)
        h = c * jax.lax.rsqrt(var + 1e-6)
        h = mm(h, w) + b
    return mm(h, prep["wc"]) + prep["bc"]


if __name__ == "__main__":
    # Small synthetic graph: 384 nodes (single 384-row tile -> zero padding
    # waste), 128 input feats, 128 hidden, 4 classes (padded to 128 lanes
    # inside the wrapper), 3 layers.
    n_nodes, in_feats, n_hidden, n_classes, n_layers = 384, 128, 128, 4, 3

    key = jax.random.PRNGKey(0)
    kx, kp = jax.random.split(key)
    x = jax.random.normal(kx, (n_nodes, in_feats), jnp.float32)
    params = init_params(kp, in_feats, n_hidden, n_classes, n_layers)

    # One-time parameter preparation (LN fold + padding + bf16 cast).
    prep = prepare_params(params, n_layers)

    out = graph_mlp_forward(x, prep, n_classes=n_classes)
    out = jax.block_until_ready(out)
    assert out.shape == (n_nodes, n_classes)

    # Tight check vs a reference mirroring the kernel's computation order.
    ref_mirror = reference_forward_prepared(x, prep)[:n_nodes, :n_classes]
    assert jnp.allclose(out, ref_mirror, atol=5e-3, rtol=5e-3), (
        f"bf16-mirror mismatch: max abs err {jnp.max(jnp.abs(out - ref_mirror))}"
    )

    # Looser sanity check vs the full-f32, unfused PyTorch-semantics reference
    # (bf16 MXU inputs shift results by ~1e-3 relative).
    ref_f32 = reference_forward(x, params, n_layers)
    assert jnp.allclose(out, ref_f32, atol=5e-2, rtol=5e-2), (
        f"f32 mismatch: max abs err {jnp.max(jnp.abs(out - ref_f32))}"
    )

    print("KERNEL_OK")
</pallas_src>

<mosaic_0001>
module attributes {stable_mosaic.version = 11 : i64} {
  func.func @kernel(%arg0: i32, %arg1: memref<384x128xf32, #tpu.memory_space<vmem>>, %arg2: memref<128x128xbf16, #tpu.memory_space<vmem>>, %arg3: memref<1x128xf32, #tpu.memory_space<vmem>>, %arg4: memref<128x128xbf16, #tpu.memory_space<vmem>>, %arg5: memref<1x128xf32, #tpu.memory_space<vmem>>, %arg6: memref<128x128xbf16, #tpu.memory_space<vmem>>, %arg7: memref<1x128xf32, #tpu.memory_space<vmem>>, %arg8: memref<128x128xbf16, #tpu.memory_space<vmem>>, %arg9: memref<1x128xf32, #tpu.memory_space<vmem>>, %arg10: memref<384x128xf32, #tpu.memory_space<vmem>>) attributes {dimension_semantics = [#tpu.dimension_semantics<parallel>], iteration_bounds = array<i64: 1>, scalar_prefetch = 0 : i64, scratch_operands = 0 : i64, tpu.core_type = #tpu.core_type<tc>, window_params = [{transform_indices = @transform_0, window_bounds = array<i64: 384, 128>}, {pipeline_mode = #tpu.pipeline_mode<synchronous>, transform_indices = @transform_1, window_bounds = array<i64: 128, 128>}, {pipeline_mode = #tpu.pipeline_mode<synchronous>, transform_indices = @transform_2, window_bounds = array<i64: 1, 128>}, {pipeline_mode = #tpu.pipeline_mode<synchronous>, transform_indices = @transform_3, window_bounds = array<i64: 128, 128>}, {pipeline_mode = #tpu.pipeline_mode<synchronous>, transform_indices = @transform_4, window_bounds = array<i64: 1, 128>}, {pipeline_mode = #tpu.pipeline_mode<synchronous>, transform_indices = @transform_5, window_bounds = array<i64: 128, 128>}, {pipeline_mode = #tpu.pipeline_mode<synchronous>, transform_indices = @transform_6, window_bounds = array<i64: 1, 128>}, {pipeline_mode = #tpu.pipeline_mode<synchronous>, transform_indices = @transform_7, window_bounds = array<i64: 128, 128>}, {pipeline_mode = #tpu.pipeline_mode<synchronous>, transform_indices = @transform_8, window_bounds = array<i64: 1, 128>}, {transform_indices = @transform_9, window_bounds = array<i64: 384, 128>}]} {
    %c0 = arith.constant 0 : index
    %c0_0 = arith.constant 0 : index
    %0 = vector.load %arg1[%c0, %c0_0] : memref<384x128xf32, #tpu.memory_space<vmem>>, vector<384x128xf32>
    %1 = arith.truncf %0 : vector<384x128xf32> to vector<384x128xbf16>
    %c0_1 = arith.constant 0 : index
    %c0_2 = arith.constant 0 : index
    %2 = vector.load %arg2[%c0_1, %c0_2] : memref<128x128xbf16, #tpu.memory_space<vmem>>, vector<128x128xbf16>
    %cst = arith.constant dense<0.000000e+00> : vector<384x128xf32>
    %3 = tpu.matmul %1, %2, %cst {dimension_numbers = #tpu.dot_dimension_numbers<[1], [0], [0], [1], [0, 0, 1, 1], [], []>} : vector<384x128xbf16>, vector<128x128xbf16>, vector<384x128xf32> -> vector<384x128xf32>
    %c0_3 = arith.constant 0 : index
    %c0_4 = arith.constant 0 : index
    %4 = vector.load %arg3[%c0_3, %c0_4] : memref<1x128xf32, #tpu.memory_space<vmem>>, vector<1x128xf32>
    %5 = vector.broadcast %4 : vector<1x128xf32> to vector<384x128xf32>
    %6 = arith.addf %3, %5 : vector<384x128xf32>
    %cst_5 = arith.constant 5.000000e-01 : f32
    %7 = vector.broadcast %cst_5 : f32 to vector<384x128xf32>
    %8 = arith.mulf %7, %6 : vector<384x128xf32>
    %cst_6 = arith.constant 0.707106769 : f32
    %9 = vector.broadcast %cst_6 : f32 to vector<384x128xf32>
    %10 = arith.mulf %6, %9 : vector<384x128xf32>
    %11 = math.erf %10 : vector<384x128xf32>
    %cst_7 = arith.constant 1.000000e+00 : f32
    %12 = vector.broadcast %cst_7 : f32 to vector<384x128xf32>
    %13 = arith.addf %12, %11 : vector<384x128xf32>
    %14 = arith.mulf %8, %13 : vector<384x128xf32>
    %cst_8 = arith.constant dense<0.000000e+00> : vector<384xf32>
    %15 = vector.multi_reduction <add>, %14, %cst_8 [1] : vector<384x128xf32> to vector<384xf32>
    %16 = vector.shape_cast %15 : vector<384xf32> to vector<384x1xf32>
    %cst_9 = arith.constant 1.280000e+02 : f32
    %17 = vector.broadcast %cst_9 : f32 to vector<384x1xf32>
    %18 = arith.divf %16, %17 : vector<384x1xf32>
    %19 = vector.broadcast %18 : vector<384x1xf32> to vector<384x128xf32>
    %20 = arith.subf %14, %19 : vector<384x128xf32>
    %21 = arith.mulf %20, %20 : vector<384x128xf32>
    %cst_10 = arith.constant dense<0.000000e+00> : vector<384xf32>
    %22 = vector.multi_reduction <add>, %21, %cst_10 [1] : vector<384x128xf32> to vector<384xf32>
    %23 = vector.shape_cast %22 : vector<384xf32> to vector<384x1xf32>
    %cst_11 = arith.constant 1.280000e+02 : f32
    %24 = vector.broadcast %cst_11 : f32 to vector<384x1xf32>
    %25 = arith.divf %23, %24 : vector<384x1xf32>
    %cst_12 = arith.constant 9.99999997E-7 : f32
    %26 = vector.broadcast %cst_12 : f32 to vector<384x1xf32>
    %27 = arith.addf %25, %26 : vector<384x1xf32>
    %28 = math.rsqrt %27 : vector<384x1xf32>
    %29 = vector.broadcast %28 : vector<384x1xf32> to vector<384x128xf32>
    %30 = arith.mulf %20, %29 : vector<384x128xf32>
    %31 = arith.truncf %30 : vector<384x128xf32> to vector<384x128xbf16>
    %c0_13 = arith.constant 0 : index
    %c0_14 = arith.constant 0 : index
    %32 = vector.load %arg4[%c0_13, %c0_14] : memref<128x128xbf16, #tpu.memory_space<vmem>>, vector<128x128xbf16>
    %cst_15 = arith.constant dense<0.000000e+00> : vector<384x128xf32>
    %33 = tpu.matmul %31, %32, %cst_15 {dimension_numbers = #tpu.dot_dimension_numbers<[1], [0], [0], [1], [0, 0, 1, 1], [], []>} : vector<384x128xbf16>, vector<128x128xbf16>, vector<384x128xf32> -> vector<384x128xf32>
    %c0_16 = arith.constant 0 : index
    %c0_17 = arith.constant 0 : index
    %34 = vector.load %arg5[%c0_16, %c0_17] : memref<1x128xf32, #tpu.memory_space<vmem>>, vector<1x128xf32>
    %35 = vector.broadcast %34 : vector<1x128xf32> to vector<384x128xf32>
    %36 = arith.addf %33, %35 : vector<384x128xf32>
    %cst_18 = arith.constant 5.000000e-01 : f32
    %37 = vector.broadcast %cst_18 : f32 to vector<384x128xf32>
    %38 = arith.mulf %37, %36 : vector<384x128xf32>
    %cst_19 = arith.constant 0.707106769 : f32
    %39 = vector.broadcast %cst_19 : f32 to vector<384x128xf32>
    %40 = arith.mulf %36, %39 : vector<384x128xf32>
    %41 = math.erf %40 : vector<384x128xf32>
    %cst_20 = arith.constant 1.000000e+00 : f32
    %42 = vector.broadcast %cst_20 : f32 to vector<384x128xf32>
    %43 = arith.addf %42, %41 : vector<384x128xf32>
    %44 = arith.mulf %38, %43 : vector<384x128xf32>
    %cst_21 = arith.constant dense<0.000000e+00> : vector<384xf32>
    %45 = vector.multi_reduction <add>, %44, %cst_21 [1] : vector<384x128xf32> to vector<384xf32>
    %46 = vector.shape_cast %45 : vector<384xf32> to vector<384x1xf32>
    %cst_22 = arith.constant 1.280000e+02 : f32
    %47 = vector.broadcast %cst_22 : f32 to vector<384x1xf32>
    %48 = arith.divf %46, %47 : vector<384x1xf32>
    %49 = vector.broadcast %48 : vector<384x1xf32> to vector<384x128xf32>
    %50 = arith.subf %44, %49 : vector<384x128xf32>
    %51 = arith.mulf %50, %50 : vector<384x128xf32>
    %cst_23 = arith.constant dense<0.000000e+00> : vector<384xf32>
    %52 = vector.multi_reduction <add>, %51, %cst_23 [1] : vector<384x128xf32> to vector<384xf32>
    %53 = vector.shape_cast %52 : vector<384xf32> to vector<384x1xf32>
    %cst_24 = arith.constant 1.280000e+02 : f32
    %54 = vector.broadcast %cst_24 : f32 to vector<384x1xf32>
    %55 = arith.divf %53, %54 : vector<384x1xf32>
    %cst_25 = arith.constant 9.99999997E-7 : f32
    %56 = vector.broadcast %cst_25 : f32 to vector<384x1xf32>
    %57 = arith.addf %55, %56 : vector<384x1xf32>
    %58 = math.rsqrt %57 : vector<384x1xf32>
    %59 = vector.broadcast %58 : vector<384x1xf32> to vector<384x128xf32>
    %60 = arith.mulf %50, %59 : vector<384x128xf32>
    %61 = arith.truncf %60 : vector<384x128xf32> to vector<384x128xbf16>
    %c0_26 = arith.constant 0 : index
    %c0_27 = arith.constant 0 : index
    %62 = vector.load %arg6[%c0_26, %c0_27] : memref<128x128xbf16, #tpu.memory_space<vmem>>, vector<128x128xbf16>
    %cst_28 = arith.constant dense<0.000000e+00> : vector<384x128xf32>
    %63 = tpu.matmul %61, %62, %cst_28 {dimension_numbers = #tpu.dot_dimension_numbers<[1], [0], [0], [1], [0, 0, 1, 1], [], []>} : vector<384x128xbf16>, vector<128x128xbf16>, vector<384x128xf32> -> vector<384x128xf32>
    %c0_29 = arith.constant 0 : index
    %c0_30 = arith.constant 0 : index
    %64 = vector.load %arg7[%c0_29, %c0_30] : memref<1x128xf32, #tpu.memory_space<vmem>>, vector<1x128xf32>
    %65 = vector.broadcast %64 : vector<1x128xf32> to vector<384x128xf32>
    %66 = arith.addf %63, %65 : vector<384x128xf32>
    %67 = arith.truncf %66 : vector<384x128xf32> to vector<384x128xbf16>
    %c0_31 = arith.constant 0 : index
    %c0_32 = arith.constant 0 : index
    %68 = vector.load %arg8[%c0_31, %c0_32] : memref<128x128xbf16, #tpu.memory_space<vmem>>, vector<128x128xbf16>
    %cst_33 = arith.constant dense<0.000000e+00> : vector<384x128xf32>
    %69 = tpu.matmul %67, %68, %cst_33 {dimension_numbers = #tpu.dot_dimension_numbers<[1], [0], [0], [1], [0, 0, 1, 1], [], []>} : vector<384x128xbf16>, vector<128x128xbf16>, vector<384x128xf32> -> vector<384x128xf32>
    %c0_34 = arith.constant 0 : index
    %c0_35 = arith.constant 0 : index
    %70 = vector.load %arg9[%c0_34, %c0_35] : memref<1x128xf32, #tpu.memory_space<vmem>>, vector<1x128xf32>
    %71 = vector.broadcast %70 : vector<1x128xf32> to vector<384x128xf32>
    %72 = arith.addf %69, %71 : vector<384x128xf32>
    %c0_36 = arith.constant 0 : index
    %c0_37 = arith.constant 0 : index
    %73 = vector.load %arg10[%c0_36, %c0_37] : memref<384x128xf32, #tpu.memory_space<vmem>>, vector<384x128xf32>
    tpu.vector_store %arg10[%c0_36, %c0_37], %72 {strides = array<i32>} : memref<384x128xf32, #tpu.memory_space<vmem>>, vector<384x128xf32>,
    return
  }
  func.func @transform_0(%arg0: i32) -> (i32, i32) {
    %c0_i32 = arith.constant 0 : i32
    %c0_i32_0 = arith.constant 0 : i32
    return %arg0, %c0_i32 : i32, i32
  }
  func.func @transform_1(%arg0: i32) -> (i32, i32) {
    %c0_i32 = arith.constant 0 : i32
    %c0_i32_0 = arith.constant 0 : i32
    %c0_i32_1 = arith.constant 0 : i32
    return %c0_i32, %c0_i32_0 : i32, i32
  }
  func.func @transform_2(%arg0: i32) -> (i32, i32) {
    %c0_i32 = arith.constant 0 : i32
    %c0_i32_0 = arith.constant 0 : i32
    %c0_i32_1 = arith.constant 0 : i32
    return %c0_i32, %c0_i32_0 : i32, i32
  }
  func.func @transform_3(%arg0: i32) -> (i32, i32) {
    %c0_i32 = arith.constant 0 : i32
    %c0_i32_0 = arith.constant 0 : i32
    %c0_i32_1 = arith.constant 0 : i32
    return %c0_i32, %c0_i32_0 : i32, i32
  }
  func.func @transform_4(%arg0: i32) -> (i32, i32) {
    %c0_i32 = arith.constant 0 : i32
    %c0_i32_0 = arith.constant 0 : i32
    %c0_i32_1 = arith.constant 0 : i32
    return %c0_i32, %c0_i32_0 : i32, i32
  }
  func.func @transform_5(%arg0: i32) -> (i32, i32) {
    %c0_i32 = arith.constant 0 : i32
    %c0_i32_0 = arith.constant 0 : i32
    %c0_i32_1 = arith.constant 0 : i32
    return %c0_i32, %c0_i32_0 : i32, i32
  }
  func.func @transform_6(%arg0: i32) -> (i32, i32) {
    %c0_i32 = arith.constant 0 : i32
    %c0_i32_0 = arith.constant 0 : i32
    %c0_i32_1 = arith.constant 0 : i32
    return %c0_i32, %c0_i32_0 : i32, i32
  }
  func.func @transform_7(%arg0: i32) -> (i32, i32) {
    %c0_i32 = arith.constant 0 : i32
    %c0_i32_0 = arith.constant 0 : i32
    %c0_i32_1 = arith.constant 0 : i32
    return %c0_i32, %c0_i32_0 : i32, i32
  }
  func.func @transform_8(%arg0: i32) -> (i32, i32) {
    %c0_i32 = arith.constant 0 : i32
    %c0_i32_0 = arith.constant 0 : i32
    %c0_i32_1 = arith.constant 0 : i32
    return %c0_i32, %c0_i32_0 : i32, i32
  }
  func.func @transform_9(%arg0: i32) -> (i32, i32) {
    %c0_i32 = arith.constant 0 : i32
    %c0_i32_0 = arith.constant 0 : i32
    return %arg0, %c0_i32 : i32, i32
  }
}

</mosaic_0001>

<llo_original>
// kernel: graph_mlp_forward.1
$region0: #{graph_mlp_forward.1}
  #allocation0 [shape = 'u32[]', space=smem, size = 0x4, offset = 0x4, fixed_abs, tag = 'smem constant byte address 0x4 - core index']
  #allocation1 [shape = 'u32[144,128]{1,0:T(1,128)}', space=vmem, size = 0x12000, scoped, tag = 'internal scratch']
  %s0 = inlined_call_operand.hbm [shape: f32[384,128], index: 0, kind: input, shape index: {}]
  %s1 = inlined_call_operand.hbm [shape: bf16[128,128], index: 1, kind: input, shape index: {}]
  %s2 = inlined_call_operand.vmem [shape: f32[1,128], index: 2, kind: input, shape index: {}]
  %s3 = inlined_call_operand.hbm [shape: bf16[128,128], index: 3, kind: input, shape index: {}]
  %s4 = inlined_call_operand.hbm [shape: f32[1,128], index: 4, kind: input, shape index: {}]
  %s5 = inlined_call_operand.hbm [shape: bf16[128,128], index: 5, kind: input, shape index: {}]
  %s6 = inlined_call_operand.vmem [shape: f32[1,128], index: 6, kind: input, shape index: {}]
  %s7 = inlined_call_operand.hbm [shape: bf16[128,128], index: 7, kind: input, shape index: {}]
  %s8 = inlined_call_operand.vmem [shape: f32[1,128], index: 8, kind: input, shape index: {}]
  %s9 = inlined_call_operand.vmem [shape: f32[384,128], index: 9, kind: output, shape index: {}]
  %s10 = sld [smem:[#allocation0]]
  $region70: #{graph_mlp_forward.1} parent=0
    _
  %s12 = ssub.s32 1, %s10
  %s13 = scalar_select 0, %s12, %s10
  $region1: #{graph_mlp_forward.1} parent=0
    #allocation2 [shape = 'u8[196608]{0}', space=vmem, size = 0x30000, scoped, tag = 'input window, operand 0, single buffered']
    #allocation3 [shape = 's32[1]{0}', space=sflag, size = 0x4, scoped, tag = 'scoped memory for graph_mlp_forward.1']
    #allocation4 [shape = 'u8[32768]{0}', space=vmem, size = 0x8000, scoped, tag = 'input window, operand 1, single buffered']
    #allocation5 [shape = 's32[1]{0}', space=sflag, size = 0x4, scoped, tag = 'scoped memory for graph_mlp_forward.1']
    #allocation6 [shape = 'u8[32768]{0}', space=vmem, size = 0x8000, scoped, tag = 'input window, operand 3, single buffered']
    #allocation7 [shape = 'u8[512]{0}', space=vmem, size = 0x400, scoped, tag = 'input window, operand 4, single buffered']
    #allocation8 [shape = 's32[1]{0}', space=sflag, size = 0x4, scoped, tag = 'scoped memory for graph_mlp_forward.1']
    #allocation9 [shape = 'u8[32768]{0}', space=vmem, size = 0x8000, scoped, tag = 'input window, operand 5, single buffered']
    #allocation10 [shape = 'u8[32768]{0}', space=vmem, size = 0x8000, scoped, tag = 'input window, operand 7, single buffered']
    #allocation11 [shape = 's32[1]{0}', space=sflag, size = 0x4, scoped, tag = 'scoped memory for graph_mlp_forward.1']
    %14 = vsyncpa [#allocation3], 0
    %15 = vsyncpa [#allocation5], 0
    %16 = vsyncpa [#allocation8], 0
    %17 = vsyncpa [#allocation11], 0
    // Predicated region
    $region2: #{graph_mlp_forward.1} parent=1 // pred_check
      _
    $region3: #{graph_mlp_forward.1} parent=1 // pred_check_branch
      %19 = sbr.rel (0) target = $region5
    $region4: #{graph_mlp_forward.1} parent=1 // pred_region
      %s21 = ssub.s32 6144, 6144
      %22 = vsyncadd [#allocation3], %s21
      %s23 = sshll.u32 [#allocation2], 4
      %s24 = int_to_ptr.vmem [resolvable:$true] %s23
      %29 = dma.hbm_to_vmem [thread:$0]  %s0, 6144, %s24, [#allocation3], 128, 128, 8
    $region5: #{graph_mlp_forward.1} parent=1 // pred_fallthru
      _
    // Predicated region
    $region6: #{graph_mlp_forward.1} parent=1 // pred_check
      _
    $region7: #{graph_mlp_forward.1} parent=1 // pred_check_branch
      %31 = sbr.rel (0) target = $region9
    $region8: #{graph_mlp_forward.1} parent=1 // pred_region
      %s33 = ssub.s32 1024, 1024
      %34 = vsyncadd [#allocation5], %s33
      %s35 = sshll.u32 [#allocation4], 4
      %s36 = int_to_ptr.vmem [resolvable:$true] %s35
      %41 = dma.hbm_to_vmem [thread:$0]  %s1, 1024, %s36, [#allocation5], 64, 64, 4
    $region9: #{graph_mlp_forward.1} parent=1 // pred_fallthru
      _
    // Predicated region
    $region10: #{graph_mlp_forward.1} parent=1 // pred_check
      _
    $region11: #{graph_mlp_forward.1} parent=1 // pred_check_branch
      %43 = sbr.rel (0) target = $region13
    $region12: #{graph_mlp_forward.1} parent=1 // pred_region
      _
    $region13: #{graph_mlp_forward.1} parent=1 // pred_fallthru
      _
    // Predicated region
    $region14: #{graph_mlp_forward.1} parent=1 // pred_check
      _
    $region15: #{graph_mlp_forward.1} parent=1 // pred_check_branch
      %45 = sbr.rel (0) target = $region17
    $region16: #{graph_mlp_forward.1} parent=1 // pred_region
      %s47 = ssub.s32 1024, 1024
      %48 = vsyncadd [#allocation5], %s47
      %s49 = sshll.u32 [#allocation6], 4
      %s50 = int_to_ptr.vmem [resolvable:$true] %s49
      %55 = dma.hbm_to_vmem [thread:$0]  %s3, 1024, %s50, [#allocation5], 64, 64, 4
    $region17: #{graph_mlp_forward.1} parent=1 // pred_fallthru
      _
    // Predicated region
    $region18: #{graph_mlp_forward.1} parent=1 // pred_check
      _
    $region19: #{graph_mlp_forward.1} parent=1 // pred_check_branch
      %57 = sbr.rel (0) target = $region21
    $region20: #{graph_mlp_forward.1} parent=1 // pred_region
      %s59 = ssub.s32 16, 16
      %60 = vsyncadd [#allocation8], %s59
      %s62 = sshll.u32 [#allocation7], 4
      %s63 = int_to_ptr.vmem [resolvable:$true] %s62
      %65 = dma.hbm_to_vmem [thread:$0]  %s4, 16, %s63, [#allocation8]
    $region21: #{graph_mlp_forward.1} parent=1 // pred_fallthru
      _
    // Predicated region
    $region22: #{graph_mlp_forward.1} parent=1 // pred_check
      _
    $region23: #{graph_mlp_forward.1} parent=1 // pred_check_branch
      %67 = sbr.rel (0) target = $region25
    $region24: #{graph_mlp_forward.1} parent=1 // pred_region
      %s69 = ssub.s32 1024, 1024
      %70 = vsyncadd [#allocation8], %s69
      %s71 = sshll.u32 [#allocation9], 4
      %s72 = int_to_ptr.vmem [resolvable:$true] %s71
      %77 = dma.hbm_to_vmem [thread:$0]  %s5, 1024, %s72, [#allocation8], 64, 64, 4
    $region25: #{graph_mlp_forward.1} parent=1 // pred_fallthru
      _
    // Predicated region
    $region26: #{graph_mlp_forward.1} parent=1 // pred_check
      _
    $region27: #{graph_mlp_forward.1} parent=1 // pred_check_branch
      %79 = sbr.rel (0) target = $region29
    $region28: #{graph_mlp_forward.1} parent=1 // pred_region
      _
    $region29: #{graph_mlp_forward.1} parent=1 // pred_fallthru
      _
    // Predicated region
    $region30: #{graph_mlp_forward.1} parent=1 // pred_check
      _
    $region31: #{graph_mlp_forward.1} parent=1 // pred_check_branch
      %81 = sbr.rel (0) target = $region33
    $region32: #{graph_mlp_forward.1} parent=1 // pred_region
      %s83 = ssub.s32 1024, 1024
      %84 = vsyncadd [#allocation11], %s83
      %s85 = sshll.u32 [#allocation10], 4
      %s86 = int_to_ptr.vmem [resolvable:$true] %s85
      %91 = dma.hbm_to_vmem [thread:$0]  %s7, 1024, %s86, [#allocation11], 64, 64, 4
    $region33: #{graph_mlp_forward.1} parent=1 // pred_fallthru
      _
    // Predicated region
    $region34: #{graph_mlp_forward.1} parent=1 // pred_check
      _
    $region35: #{graph_mlp_forward.1} parent=1 // pred_check_branch
      %93 = sbr.rel (0) target = $region37
    $region36: #{graph_mlp_forward.1} parent=1 // pred_region
      _
    $region37: #{graph_mlp_forward.1} parent=1 // pred_fallthru
      _
    // Predicated region
    $region38: #{graph_mlp_forward.1} parent=1 // pred_check
      _
    $region39: #{graph_mlp_forward.1} parent=1 // pred_check_branch
      %95 = sbr.rel (0) target = $region41
    $region40: #{graph_mlp_forward.1} parent=1 // pred_region
      %96 = dma.done [#allocation3], 6144
    $region41: #{graph_mlp_forward.1} parent=1 // pred_fallthru
      _
    // Predicated region
    $region42: #{graph_mlp_forward.1} parent=1 // pred_check
      _
    $region43: #{graph_mlp_forward.1} parent=1 // pred_check_branch
      %98 = sbr.rel (0) target = $region45
    $region44: #{graph_mlp_forward.1} parent=1 // pred_region
      %99 = dma.done [#allocation5], 1024
    $region45: #{graph_mlp_forward.1} parent=1 // pred_fallthru
      _
    // Predicated region
    $region46: #{graph_mlp_forward.1} parent=1 // pred_check
      _
    $region47: #{graph_mlp_forward.1} parent=1 // pred_check_branch
      %101 = sbr.rel (0) target = $region49
    $region48: #{graph_mlp_forward.1} parent=1 // pred_region
      %102 = dma.done [#allocation5], 1024
    $region49: #{graph_mlp_forward.1} parent=1 // pred_fallthru
      _
    // Predicated region
    $region50: #{graph_mlp_forward.1} parent=1 // pred_check
      _
    $region51: #{graph_mlp_forward.1} parent=1 // pred_check_branch
      %104 = sbr.rel (0) target = $region53
    $region52: #{graph_mlp_forward.1} parent=1 // pred_region
      %105 = dma.done [#allocation8], 16
    $region53: #{graph_mlp_forward.1} parent=1 // pred_fallthru
      _
    // Predicated region
    $region54: #{graph_mlp_forward.1} parent=1 // pred_check
      _
    $region55: #{graph_mlp_forward.1} parent=1 // pred_check_branch
      %107 = sbr.rel (0) target = $region57
    $region56: #{graph_mlp_forward.1} parent=1 // pred_region
      %108 = dma.done [#allocation8], 1024
    $region57: #{graph_mlp_forward.1} parent=1 // pred_fallthru
      _
    // Predicated region
    $region58: #{graph_mlp_forward.1} parent=1 // pred_check
      _
    $region59: #{graph_mlp_forward.1} parent=1 // pred_check_branch
      %110 = sbr.rel (0) target = $region61
    $region60: #{graph_mlp_forward.1} parent=1 // pred_region
      %111 = dma.done [#allocation11], 1024
    $region61: #{graph_mlp_forward.1} parent=1 // pred_fallthru
      _
    %v113 = vld [vmem:[#allocation2] sm:$0xff]
    %v114 = vld [vmem:[#allocation2 + $0x8] sm:$0xff]
    %v115 = vld [vmem:[#allocation2 + $0x10] sm:$0xff]
    %v116 = vld [vmem:[#allocation2 + $0x18] sm:$0xff]
    %v117 = vld [vmem:[#allocation2 + $0x20] sm:$0xff]
    %v118 = vld [vmem:[#allocation2 + $0x28] sm:$0xff]
    %v119 = vld [vmem:[#allocation2 + $0x30] sm:$0xff]
    %v120 = vld [vmem:[#allocation2 + $0x38] sm:$0xff]
    %v121 = vld [vmem:[#allocation2 + $0x40] sm:$0xff]
    %v122 = vld [vmem:[#allocation2 + $0x48] sm:$0xff]
    %v123 = vld [vmem:[#allocation2 + $0x50] sm:$0xff]
    %v124 = vld [vmem:[#allocation2 + $0x58] sm:$0xff]
    %v125 = vld [vmem:[#allocation2 + $0x60] sm:$0xff]
    %v126 = vld [vmem:[#allocation2 + $0x68] sm:$0xff]
    %v127 = vld [vmem:[#allocation2 + $0x70] sm:$0xff]
    %v128 = vld [vmem:[#allocation2 + $0x78] sm:$0xff]
    %v129 = vld [vmem:[#allocation2 + $0x80] sm:$0xff]
    %v130 = vld [vmem:[#allocation2 + $0x88] sm:$0xff]
    %v131 = vld [vmem:[#allocation2 + $0x90] sm:$0xff]
    %v132 = vld [vmem:[#allocation2 + $0x98] sm:$0xff]
    %v133 = vld [vmem:[#allocation2 + $0xa0] sm:$0xff]
    %v134 = vld [vmem:[#allocation2 + $0xa8] sm:$0xff]
    %v135 = vld [vmem:[#allocation2 + $0xb0] sm:$0xff]
    %v136 = vld [vmem:[#allocation2 + $0xb8] sm:$0xff]
    %v137 = vld [vmem:[#allocation2 + $0xc0] sm:$0xff]
    %v138 = vld [vmem:[#allocation2 + $0xc8] sm:$0xff]
    %v139 = vld [vmem:[#allocation2 + $0xd0] sm:$0xff]
    %v140 = vld [vmem:[#allocation2 + $0xd8] sm:$0xff]
    %v141 = vld [vmem:[#allocation2 + $0xe0] sm:$0xff]
    %v142 = vld [vmem:[#allocation2 + $0xe8] sm:$0xff]
    %v143 = vld [vmem:[#allocation2 + $0xf0] sm:$0xff]
    %v144 = vld [vmem:[#allocation2 + $0xf8] sm:$0xff]
    %v145 = vld [vmem:[#allocation2 + $0x100] sm:$0xff]
    %v146 = vld [vmem:[#allocation2 + $0x108] sm:$0xff]
    %v147 = vld [vmem:[#allocation2 + $0x110] sm:$0xff]
    %v148 = vld [vmem:[#allocation2 + $0x118] sm:$0xff]
    %v149 = vld [vmem:[#allocation2 + $0x120] sm:$0xff]
    %v150 = vld [vmem:[#allocation2 + $0x128] sm:$0xff]
    %v151 = vld [vmem:[#allocation2 + $0x130] sm:$0xff]
    %v152 = vld [vmem:[#allocation2 + $0x138] sm:$0xff]
    %v153 = vld [vmem:[#allocation2 + $0x140] sm:$0xff]
    %v154 = vld [vmem:[#allocation2 + $0x148] sm:$0xff]
    %v155 = vld [vmem:[#allocation2 + $0x150] sm:$0xff]
    %v156 = vld [vmem:[#allocation2 + $0x158] sm:$0xff]
    %v157 = vld [vmem:[#allocation2 + $0x160] sm:$0xff]
    %v158 = vld [vmem:[#allocation2 + $0x168] sm:$0xff]
    %v159 = vld [vmem:[#allocation2 + $0x170] sm:$0xff]
    %v160 = vld [vmem:[#allocation2 + $0x178] sm:$0xff]
    %v161 = vpack.c.bf16 %v114, %v113
    %v162 = vpack.c.bf16 %v116, %v115
    %v163 = vpack.c.bf16 %v118, %v117
    %v164 = vpack.c.bf16 %v120, %v119
    %v165 = vpack.c.bf16 %v122, %v121
    %v166 = vpack.c.bf16 %v124, %v123
    %v167 = vpack.c.bf16 %v126, %v125
    %v168 = vpack.c.bf16 %v128, %v127
    %v169 = vpack.c.bf16 %v130, %v129
    %v170 = vpack.c.bf16 %v132, %v131
    %v171 = vpack.c.bf16 %v134, %v133
    %v172 = vpack.c.bf16 %v136, %v135
    %v173 = vpack.c.bf16 %v138, %v137
    %v174 = vpack.c.bf16 %v140, %v139
    %v175 = vpack.c.bf16 %v142, %v141
    %v176 = vpack.c.bf16 %v144, %v143
    %v177 = vpack.c.bf16 %v146, %v145
    %v178 = vpack.c.bf16 %v148, %v147
    %v179 = vpack.c.bf16 %v150, %v149
    %v180 = vpack.c.bf16 %v152, %v151
    %v181 = vpack.c.bf16 %v154, %v153
    %v182 = vpack.c.bf16 %v156, %v155
    %v183 = vpack.c.bf16 %v158, %v157
    %v184 = vpack.c.bf16 %v160, %v159
    %v185 = vld [vmem:[#allocation4] sm:$0xf]
    %v186 = vld [vmem:[#allocation4 + $0x4] sm:$0xf]
    %v187 = vld [vmem:[#allocation4 + $0x8] sm:$0xf]
    %v188 = vld [vmem:[#allocation4 + $0xc] sm:$0xf]
    %v189 = vld [vmem:[#allocation4 + $0x10] sm:$0xf]
    %v190 = vld [vmem:[#allocation4 + $0x14] sm:$0xf]
    %v191 = vld [vmem:[#allocation4 + $0x18] sm:$0xf]
    %v192 = vld [vmem:[#allocation4 + $0x1c] sm:$0xf]
    %v193 = vld [vmem:[#allocation4 + $0x20] sm:$0xf]
    %v194 = vld [vmem:[#allocation4 + $0x24] sm:$0xf]
    %v195 = vld [vmem:[#allocation4 + $0x28] sm:$0xf]
    %v196 = vld [vmem:[#allocation4 + $0x2c] sm:$0xf]
    %v197 = vld [vmem:[#allocation4 + $0x30] sm:$0xf]
    %v198 = vld [vmem:[#allocation4 + $0x34] sm:$0xf]
    %v199 = vld [vmem:[#allocation4 + $0x38] sm:$0xf]
    %v200 = vld [vmem:[#allocation4 + $0x3c] sm:$0xf]
    %v201 = vld [vmem:[%s2] sm:$0x1]
    %v203 = vlaneseq
    %v204 = vshrl.u32 %v203, 7
    %v205 = vsub.s32 0, %v204
    %v206 = vrot.slane %v201, %v205
    %v224 = vunpack.c.l.b16 %v185
    %v225 = vunpack.c.l.b16 %v186
    %v226 = vunpack.c.l.b16 %v187
    %v227 = vunpack.c.l.b16 %v188
    %v228 = vunpack.c.l.b16 %v189
    %v229 = vunpack.c.l.b16 %v190
    %v230 = vunpack.c.l.b16 %v191
    %v231 = vunpack.c.l.b16 %v192
    %v232 = vunpack.c.l.b16 %v193
    %v233 = vunpack.c.l.b16 %v194
    %v234 = vunpack.c.l.b16 %v195
    %v235 = vunpack.c.l.b16 %v196
    %v236 = vunpack.c.l.b16 %v197
    %v237 = vunpack.c.l.b16 %v198
    %v238 = vunpack.c.l.b16 %v199
    %v239 = vunpack.c.l.b16 %v200
    %v240 = vpack.c.b16 %v225, %v224
    %v241 = vpack.c.b16 %v227, %v226
    %v242 = vpack.c.b16 %v229, %v228
    %v243 = vpack.c.b16 %v231, %v230
    %v244 = vpack.c.b16 %v233, %v232
    %v245 = vpack.c.b16 %v235, %v234
    %v246 = vpack.c.b16 %v237, %v236
    %v247 = vpack.c.b16 %v239, %v238
    %256 = vmatprep.subr.bf16.mxu0 0
    %257 = vmatpush1.bf16.msra.mxu0 %v247
    %258 = vmatprep.subr.bf16.mxu0 0
    %259 = vmatpush1.bf16.msra.mxu0 %v246
    %260 = vmatprep.subr.bf16.mxu0 0
    %261 = vmatpush1.bf16.msra.mxu0 %v245
    %262 = vmatprep.subr.bf16.mxu0 0
    %263 = vmatpush1.bf16.msra.mxu0 %v244
    %264 = vmatprep.subr.bf16.mxu0 0
    %265 = vmatpush1.bf16.msra.mxu0 %v243
    %266 = vmatprep.subr.bf16.mxu0 0
    %267 = vmatpush1.bf16.msra.mxu0 %v242
    %268 = vmatprep.subr.bf16.mxu0 0
    %269 = vmatpush1.bf16.msra.mxu0 %v241
    %270 = vmatprep.subr.bf16.mxu0 0
    %271 = vmatpush1.bf16.msra.mxu0 %v240
    %272 = vmatprep.subr.bf16.mxu0 0
    %273 = vmatpush2.bf16.msra.mxu0 0
    %274 = vmatprep.subr.bf16.mxu0 0
    %275 = vmatpush2.bf16.msra.mxu0 0
    %276 = vmatprep.subr.bf16.mxu0 0
    %277 = vmatpush2.bf16.msra.mxu0 0
    %278 = vmatprep.subr.bf16.mxu0 0
    %279 = vmatpush2.bf16.msra.mxu0 0
    %280 = vmatprep.subr.bf16.mxu0 0
    %281 = vmatpush2.bf16.msra.mxu0 0
    %282 = vmatprep.subr.bf16.mxu0 0
    %283 = vmatpush2.bf16.msra.mxu0 0
    %284 = vmatprep.subr.bf16.mxu0 0
    %285 = vmatpush2.bf16.msra.mxu0 0
    %286 = vmatprep.subr.bf16.mxu0 0
    %287 = vmatpush2.bf16.msra.mxu0 0
    %288 = vmatprep.mubr.bf16.mxu0 0
    %289 = vmatmul.mubr.bf16.gmra.mxu0 %v161
    %v290 = vpop.f32.mrf.mxu0
    %v291 = vadd.f32 %v206, %v290
    %v292 = vpop.f32.mrf.mxu0
    %v293 = vpop.f32.mrf.mxu0
    %v294 = vadd.f32 %v206, %v293
    %v295 = vpop.f32.mrf.mxu0
    %296 = vmatprep.mubr.bf16.mxu0 0
    %297 = vmatmul.mubr.bf16.gmra.mxu0 %v162
    %v298 = vpop.f32.mrf.mxu0
    %v299 = vadd.f32 %v206, %v298
    %v300 = vpop.f32.mrf.mxu0
    %v301 = vpop.f32.mrf.mxu0
    %v302 = vadd.f32 %v206, %v301
    %v303 = vpop.f32.mrf.mxu0
    %304 = vmatprep.mubr.bf16.mxu0 0
    %305 = vmatmul.mubr.bf16.gmra.mxu0 %v163
    %v306 = vpop.f32.mrf.mxu0
    %v307 = vadd.f32 %v206, %v306
    %v308 = vpop.f32.mrf.mxu0
    %v309 = vpop.f32.mrf.mxu0
    %v310 = vadd.f32 %v206, %v309
    %v311 = vpop.f32.mrf.mxu0
    %312 = vmatprep.mubr.bf16.mxu0 0
    %313 = vmatmul.mubr.bf16.gmra.mxu0 %v164
    %v314 = vpop.f32.mrf.mxu0
    %v315 = vadd.f32 %v206, %v314
    %v316 = vpop.f32.mrf.mxu0
    %v317 = vpop.f32.mrf.mxu0
    %v318 = vadd.f32 %v206, %v317
    %v319 = vpop.f32.mrf.mxu0
    %320 = vmatprep.mubr.bf16.mxu0 0
    %321 = vmatmul.mubr.bf16.gmra.mxu0 %v165
    %v322 = vpop.f32.mrf.mxu0
    %v323 = vadd.f32 %v206, %v322
    %v324 = vpop.f32.mrf.mxu0
    %v325 = vpop.f32.mrf.mxu0
    %v326 = vadd.f32 %v206, %v325
    %v327 = vpop.f32.mrf.mxu0
    %328 = vmatprep.mubr.bf16.mxu0 0
    %329 = vmatmul.mubr.bf16.gmra.mxu0 %v166
    %v330 = vpop.f32.mrf.mxu0
    %v331 = vadd.f32 %v206, %v330
    %v332 = vpop.f32.mrf.mxu0
    %v333 = vpop.f32.mrf.mxu0
    %v334 = vadd.f32 %v206, %v333
    %v335 = vpop.f32.mrf.mxu0
    %336 = vmatprep.mubr.bf16.mxu0 0
    %337 = vmatmul.mubr.bf16.gmra.mxu0 %v167
    %v338 = vpop.f32.mrf.mxu0
    %v339 = vadd.f32 %v206, %v338
    %v340 = vpop.f32.mrf.mxu0
    %v341 = vpop.f32.mrf.mxu0
    %v342 = vadd.f32 %v206, %v341
    %v343 = vpop.f32.mrf.mxu0
    %344 = vmatprep.mubr.bf16.mxu0 0
    %345 = vmatmul.mubr.bf16.gmra.mxu0 %v168
    %v346 = vpop.f32.mrf.mxu0
    %v347 = vadd.f32 %v206, %v346
    %v348 = vpop.f32.mrf.mxu0
    %v349 = vpop.f32.mrf.mxu0
    %v350 = vadd.f32 %v206, %v349
    %v351 = vpop.f32.mrf.mxu0
    %352 = vmatprep.mubr.bf16.mxu0 0
    %353 = vmatmul.mubr.bf16.gmra.mxu0 %v169
    %v354 = vpop.f32.mrf.mxu0
    %v355 = vadd.f32 %v206, %v354
    %v356 = vpop.f32.mrf.mxu0
    %v357 = vpop.f32.mrf.mxu0
    %v358 = vadd.f32 %v206, %v357
    %v359 = vpop.f32.mrf.mxu0
    %360 = vmatprep.mubr.bf16.mxu0 0
    %361 = vmatmul.mubr.bf16.gmra.mxu0 %v170
    %v362 = vpop.f32.mrf.mxu0
    %v363 = vadd.f32 %v206, %v362
    %v364 = vpop.f32.mrf.mxu0
    %v365 = vpop.f32.mrf.mxu0
    %v366 = vadd.f32 %v206, %v365
    %v367 = vpop.f32.mrf.mxu0
    %368 = vmatprep.mubr.bf16.mxu0 0
    %369 = vmatmul.mubr.bf16.gmra.mxu0 %v171
    %v370 = vpop.f32.mrf.mxu0
    %v371 = vadd.f32 %v206, %v370
    %v372 = vpop.f32.mrf.mxu0
    %v373 = vpop.f32.mrf.mxu0
    %v374 = vadd.f32 %v206, %v373
    %v375 = vpop.f32.mrf.mxu0
    %376 = vmatprep.mubr.bf16.mxu0 0
    %377 = vmatmul.mubr.bf16.gmra.mxu0 %v172
    %v378 = vpop.f32.mrf.mxu0
    %v379 = vadd.f32 %v206, %v378
    %v380 = vpop.f32.mrf.mxu0
    %v381 = vpop.f32.mrf.mxu0
    %v382 = vadd.f32 %v206, %v381
    %v383 = vpop.f32.mrf.mxu0
    %384 = vmatprep.mubr.bf16.mxu0 0
    %385 = vmatmul.mubr.bf16.gmra.mxu0 %v173
    %v386 = vpop.f32.mrf.mxu0
    %v387 = vadd.f32 %v206, %v386
    %v388 = vpop.f32.mrf.mxu0
    %v389 = vpop.f32.mrf.mxu0
    %v390 = vadd.f32 %v206, %v389
    %v391 = vpop.f32.mrf.mxu0
    %392 = vmatprep.mubr.bf16.mxu0 0
    %393 = vmatmul.mubr.bf16.gmra.mxu0 %v174
    %v394 = vpop.f32.mrf.mxu0
    %v395 = vadd.f32 %v206, %v394
    %v396 = vpop.f32.mrf.mxu0
    %v397 = vpop.f32.mrf.mxu0
    %v398 = vadd.f32 %v206, %v397
    %v399 = vpop.f32.mrf.mxu0
    %400 = vmatprep.mubr.bf16.mxu0 0
    %401 = vmatmul.mubr.bf16.gmra.mxu0 %v175
    %v402 = vpop.f32.mrf.mxu0
    %v403 = vadd.f32 %v206, %v402
    %v404 = vpop.f32.mrf.mxu0
    %v405 = vpop.f32.mrf.mxu0
    %v406 = vadd.f32 %v206, %v405
    %v407 = vpop.f32.mrf.mxu0
    %408 = vmatprep.mubr.bf16.mxu0 0
    %409 = vmatmul.mubr.bf16.gmra.mxu0 %v176
    %v410 = vpop.f32.mrf.mxu0
    %v411 = vadd.f32 %v206, %v410
    %v412 = vpop.f32.mrf.mxu0
    %v413 = vpop.f32.mrf.mxu0
    %v414 = vadd.f32 %v206, %v413
    %v415 = vpop.f32.mrf.mxu0
    %416 = vmatprep.mubr.bf16.mxu0 0
    %417 = vmatmul.mubr.bf16.gmra.mxu0 %v177
    %v418 = vpop.f32.mrf.mxu0
    %v419 = vadd.f32 %v206, %v418
    %v420 = vpop.f32.mrf.mxu0
    %v421 = vpop.f32.mrf.mxu0
    %v422 = vadd.f32 %v206, %v421
    %v423 = vpop.f32.mrf.mxu0
    %424 = vmatprep.mubr.bf16.mxu0 0
    %425 = vmatmul.mubr.bf16.gmra.mxu0 %v178
    %v426 = vpop.f32.mrf.mxu0
    %v427 = vadd.f32 %v206, %v426
    %v428 = vpop.f32.mrf.mxu0
    %v429 = vpop.f32.mrf.mxu0
    %v430 = vadd.f32 %v206, %v429
    %v431 = vpop.f32.mrf.mxu0
    %432 = vmatprep.mubr.bf16.mxu0 0
    %433 = vmatmul.mubr.bf16.gmra.mxu0 %v179
    %v434 = vpop.f32.mrf.mxu0
    %v435 = vadd.f32 %v206, %v434
    %v436 = vpop.f32.mrf.mxu0
    %v437 = vpop.f32.mrf.mxu0
    %v438 = vadd.f32 %v206, %v437
    %v439 = vpop.f32.mrf.mxu0
    %440 = vmatprep.mubr.bf16.mxu0 0
    %441 = vmatmul.mubr.bf16.gmra.mxu0 %v180
    %v442 = vpop.f32.mrf.mxu0
    %v443 = vadd.f32 %v206, %v442
    %v444 = vpop.f32.mrf.mxu0
    %v445 = vpop.f32.mrf.mxu0
    %v446 = vadd.f32 %v206, %v445
    %v447 = vpop.f32.mrf.mxu0
    %448 = vmatprep.mubr.bf16.mxu0 0
    %449 = vmatmul.mubr.bf16.gmra.mxu0 %v181
    %v450 = vpop.f32.mrf.mxu0
    %v451 = vadd.f32 %v206, %v450
    %v452 = vpop.f32.mrf.mxu0
    %v453 = vpop.f32.mrf.mxu0
    %v454 = vadd.f32 %v206, %v453
    %v455 = vpop.f32.mrf.mxu0
    %456 = vmatprep.mubr.bf16.mxu0 0
    %457 = vmatmul.mubr.bf16.gmra.mxu0 %v182
    %v458 = vpop.f32.mrf.mxu0
    %v459 = vadd.f32 %v206, %v458
    %v460 = vpop.f32.mrf.mxu0
    %v461 = vpop.f32.mrf.mxu0
    %v462 = vadd.f32 %v206, %v461
    %v463 = vpop.f32.mrf.mxu0
    %464 = vmatprep.mubr.bf16.mxu0 0
    %465 = vmatmul.mubr.bf16.gmra.mxu0 %v183
    %v466 = vpop.f32.mrf.mxu0
    %v467 = vadd.f32 %v206, %v466
    %v468 = vpop.f32.mrf.mxu0
    %v469 = vpop.f32.mrf.mxu0
    %v470 = vadd.f32 %v206, %v469
    %v471 = vpop.f32.mrf.mxu0
    %472 = vmatprep.mubr.bf16.mxu0 0
    %473 = vmatmul.mubr.bf16.gmra.mxu0 %v184
    %v474 = vpop.f32.mrf.mxu0
    %v475 = vadd.f32 %v206, %v474
    %v476 = vpop.f32.mrf.mxu0
    %v477 = vpop.f32.mrf.mxu0
    %v478 = vadd.f32 %v206, %v477
    %v479 = vpop.f32.mrf.mxu0
    %480 = vdwg.mxu0
    %v481 = vmul.f32 %v291, 0.5
    %v482 = vmul.f32 %v294, 0.5
    %v483 = vmul.f32 %v299, 0.5
    %v484 = vmul.f32 %v302, 0.5
    %v485 = vmul.f32 %v307, 0.5
    %v486 = vmul.f32 %v310, 0.5
    %v487 = vmul.f32 %v315, 0.5
    %v488 = vmul.f32 %v318, 0.5
    %v489 = vmul.f32 %v323, 0.5
    %v490 = vmul.f32 %v326, 0.5
    %v491 = vmul.f32 %v331, 0.5
    %v492 = vmul.f32 %v334, 0.5
    %v493 = vmul.f32 %v339, 0.5
    %v494 = vmul.f32 %v342, 0.5
    %v495 = vmul.f32 %v347, 0.5
    %v496 = vmul.f32 %v350, 0.5
    %v497 = vmul.f32 %v355, 0.5
    %v498 = vmul.f32 %v358, 0.5
    %v499 = vmul.f32 %v363, 0.5
    %v500 = vmul.f32 %v366, 0.5
    %v501 = vmul.f32 %v371, 0.5
    %v502 = vmul.f32 %v374, 0.5
    %v503 = vmul.f32 %v379, 0.5
    %v504 = vmul.f32 %v382, 0.5
    %v505 = vmul.f32 %v387, 0.5
    %v506 = vmul.f32 %v390, 0.5
    %v507 = vmul.f32 %v395, 0.5
    %v508 = vmul.f32 %v398, 0.5
    %v509 = vmul.f32 %v403, 0.5
    %v510 = vmul.f32 %v406, 0.5
    %v511 = vmul.f32 %v411, 0.5
    %v512 = vmul.f32 %v414, 0.5
    %v513 = vmul.f32 %v419, 0.5
    %v514 = vmul.f32 %v422, 0.5
    %v515 = vmul.f32 %v427, 0.5
    %v516 = vmul.f32 %v430, 0.5
    %v517 = vmul.f32 %v435, 0.5
    %v518 = vmul.f32 %v438, 0.5
    %v519 = vmul.f32 %v443, 0.5
    %v520 = vmul.f32 %v446, 0.5
    %v521 = vmul.f32 %v451, 0.5
    %v522 = vmul.f32 %v454, 0.5
    %v523 = vmul.f32 %v459, 0.5
    %v524 = vmul.f32 %v462, 0.5
    %v525 = vmul.f32 %v467, 0.5
    %v526 = vmul.f32 %v470, 0.5
    %v527 = vmul.f32 %v475, 0.5
    %v528 = vmul.f32 %v478, 0.5
    %v529 = vmul.f32 %v291, 0.70710677
    %v530 = vmul.f32 %v294, 0.70710677
    %v531 = vmul.f32 %v299, 0.70710677
    %v532 = vmul.f32 %v302, 0.70710677
    %v533 = vmul.f32 %v307, 0.70710677
    %v534 = vmul.f32 %v310, 0.70710677
    %v535 = vmul.f32 %v315, 0.70710677
    %v536 = vmul.f32 %v318, 0.70710677
    %v537 = vmul.f32 %v323, 0.70710677
    %v538 = vmul.f32 %v326, 0.70710677
    %v539 = vmul.f32 %v331, 0.70710677
    %v540 = vmul.f32 %v334, 0.70710677
    %v541 = vmul.f32 %v339, 0.70710677
    %v542 = vmul.f32 %v342, 0.70710677
    %v543 = vmul.f32 %v347, 0.70710677
    %v544 = vmul.f32 %v350, 0.70710677
    %v545 = vmul.f32 %v355, 0.70710677
    %v546 = vmul.f32 %v358, 0.70710677
    %v547 = vmul.f32 %v363, 0.70710677
    %v548 = vmul.f32 %v366, 0.70710677
    %v549 = vmul.f32 %v371, 0.70710677
    %v550 = vmul.f32 %v374, 0.70710677
    %v551 = vmul.f32 %v379, 0.70710677
    %v552 = vmul.f32 %v382, 0.70710677
    %v553 = vmul.f32 %v387, 0.70710677
    %v554 = vmul.f32 %v390, 0.70710677
    %v555 = vmul.f32 %v395, 0.70710677
    %v556 = vmul.f32 %v398, 0.70710677
    %v557 = vmul.f32 %v403, 0.70710677
    %v558 = vmul.f32 %v406, 0.70710677
    %v559 = vmul.f32 %v411, 0.70710677
    %v560 = vmul.f32 %v414, 0.70710677
    %v561 = vmul.f32 %v419, 0.70710677
    %v562 = vmul.f32 %v422, 0.70710677
    %v563 = vmul.f32 %v427, 0.70710677
    %v564 = vmul.f32 %v430, 0.70710677
    %v565 = vmul.f32 %v435, 0.70710677
    %v566 = vmul.f32 %v438, 0.70710677
    %v567 = vmul.f32 %v443, 0.70710677
    %v568 = vmul.f32 %v446, 0.70710677
    %v569 = vmul.f32 %v451, 0.70710677
    %v570 = vmul.f32 %v454, 0.70710677
    %v571 = vmul.f32 %v459, 0.70710677
    %v572 = vmul.f32 %v462, 0.70710677
    %v573 = vmul.f32 %v467, 0.70710677
    %v574 = vmul.f32 %v470, 0.70710677
    %v575 = vmul.f32 %v475, 0.70710677
    %v576 = vmul.f32 %v478, 0.70710677
    %v577 = verf.f32.pop %v529
    %v578 = verf.f32.pop %v530
    %v579 = verf.f32.pop %v531
    %v580 = verf.f32.pop %v532
    %v581 = verf.f32.pop %v533
    %v582 = verf.f32.pop %v534
    %v583 = verf.f32.pop %v535
    %v584 = verf.f32.pop %v536
    %v585 = verf.f32.pop %v537
    %v586 = verf.f32.pop %v538
    %v587 = verf.f32.pop %v539
    %v588 = verf.f32.pop %v540
    %v589 = verf.f32.pop %v541
    %v590 = verf.f32.pop %v542
    %v591 = verf.f32.pop %v543
    %v592 = verf.f32.pop %v544
    %v593 = verf.f32.pop %v545
    %v594 = verf.f32.pop %v546
    %v595 = verf.f32.pop %v547
    %v596 = verf.f32.pop %v548
    %v597 = verf.f32.pop %v549
    %v598 = verf.f32.pop %v550
    %v599 = verf.f32.pop %v551
    %v600 = verf.f32.pop %v552
    %v601 = verf.f32.pop %v553
    %v602 = verf.f32.pop %v554
    %v603 = verf.f32.pop %v555
    %v604 = verf.f32.pop %v556
    %v605 = verf.f32.pop %v557
    %v606 = verf.f32.pop %v558
    %v607 = verf.f32.pop %v559
    %v608 = verf.f32.pop %v560
    %v609 = verf.f32.pop %v561
    %v610 = verf.f32.pop %v562
    %v611 = verf.f32.pop %v563
    %v612 = verf.f32.pop %v564
    %v613 = verf.f32.pop %v565
    %v614 = verf.f32.pop %v566
    %v615 = verf.f32.pop %v567
    %v616 = verf.f32.pop %v568
    %v617 = verf.f32.pop %v569
    %v618 = verf.f32.pop %v570
    %v619 = verf.f32.pop %v571
    %v620 = verf.f32.pop %v572
    %v621 = verf.f32.pop %v573
    %v622 = verf.f32.pop %v574
    %v623 = verf.f32.pop %v575
    %v624 = verf.f32.pop %v576
    %v625 = vadd.f32 %v577, 1.0
    %v626 = vadd.f32 %v578, 1.0
    %v627 = vadd.f32 %v579, 1.0
    %v628 = vadd.f32 %v580, 1.0
    %v629 = vadd.f32 %v581, 1.0
    %v630 = vadd.f32 %v582, 1.0
    %v631 = vadd.f32 %v583, 1.0
    %v632 = vadd.f32 %v584, 1.0
    %v633 = vadd.f32 %v585, 1.0
    %v634 = vadd.f32 %v586, 1.0
    %v635 = vadd.f32 %v587, 1.0
    %v636 = vadd.f32 %v588, 1.0
    %v637 = vadd.f32 %v589, 1.0
    %v638 = vadd.f32 %v590, 1.0
    %v639 = vadd.f32 %v591, 1.0
    %v640 = vadd.f32 %v592, 1.0
    %v641 = vadd.f32 %v593, 1.0
    %v642 = vadd.f32 %v594, 1.0
    %v643 = vadd.f32 %v595, 1.0
    %v644 = vadd.f32 %v596, 1.0
    %v645 = vadd.f32 %v597, 1.0
    %v646 = vadd.f32 %v598, 1.0
    %v647 = vadd.f32 %v599, 1.0
    %v648 = vadd.f32 %v600, 1.0
    %v649 = vadd.f32 %v601, 1.0
    %v650 = vadd.f32 %v602, 1.0
    %v651 = vadd.f32 %v603, 1.0
    %v652 = vadd.f32 %v604, 1.0
    %v653 = vadd.f32 %v605, 1.0
    %v654 = vadd.f32 %v606, 1.0
    %v655 = vadd.f32 %v607, 1.0
    %v656 = vadd.f32 %v608, 1.0
    %v657 = vadd.f32 %v609, 1.0
    %v658 = vadd.f32 %v610, 1.0
    %v659 = vadd.f32 %v611, 1.0
    %v660 = vadd.f32 %v612, 1.0
    %v661 = vadd.f32 %v613, 1.0
    %v662 = vadd.f32 %v614, 1.0
    %v663 = vadd.f32 %v615, 1.0
    %v664 = vadd.f32 %v616, 1.0
    %v665 = vadd.f32 %v617, 1.0
    %v666 = vadd.f32 %v618, 1.0
    %v667 = vadd.f32 %v619, 1.0
    %v668 = vadd.f32 %v620, 1.0
    %v669 = vadd.f32 %v621, 1.0
    %v670 = vadd.f32 %v622, 1.0
    %v671 = vadd.f32 %v623, 1.0
    %v672 = vadd.f32 %v624, 1.0
    %v673 = vmul.f32 %v481, %v625
    %v674 = vmul.f32 %v482, %v626
    %v675 = vmul.f32 %v483, %v627
    %v676 = vmul.f32 %v484, %v628
    %v677 = vmul.f32 %v485, %v629
    %v678 = vmul.f32 %v486, %v630
    %v679 = vmul.f32 %v487, %v631
    %v680 = vmul.f32 %v488, %v632
    %v681 = vmul.f32 %v489, %v633
    %v682 = vmul.f32 %v490, %v634
    %v683 = vmul.f32 %v491, %v635
    %v684 = vmul.f32 %v492, %v636
    %v685 = vmul.f32 %v493, %v637
    %v686 = vmul.f32 %v494, %v638
    %v687 = vmul.f32 %v495, %v639
    %v688 = vmul.f32 %v496, %v640
    %v689 = vmul.f32 %v497, %v641
    %v690 = vmul.f32 %v498, %v642
    %v691 = vmul.f32 %v499, %v643
    %v692 = vmul.f32 %v500, %v644
    %v693 = vmul.f32 %v501, %v645
    %v694 = vmul.f32 %v502, %v646
    %v695 = vmul.f32 %v503, %v647
    %v696 = vmul.f32 %v504, %v648
    %v697 = vmul.f32 %v505, %v649
    %v698 = vmul.f32 %v506, %v650
    %v699 = vmul.f32 %v507, %v651
    %v700 = vmul.f32 %v508, %v652
    %v701 = vmul.f32 %v509, %v653
    %v702 = vmul.f32 %v510, %v654
    %v703 = vmul.f32 %v511, %v655
    %v704 = vmul.f32 %v512, %v656
    %v705 = vmul.f32 %v513, %v657
    %v706 = vmul.f32 %v514, %v658
    %v707 = vmul.f32 %v515, %v659
    %v708 = vmul.f32 %v516, %v660
    %v709 = vmul.f32 %v517, %v661
    %v710 = vmul.f32 %v518, %v662
    %v711 = vmul.f32 %v519, %v663
    %v712 = vmul.f32 %v520, %v664
    %v713 = vmul.f32 %v521, %v665
    %v714 = vmul.f32 %v522, %v666
    %v715 = vmul.f32 %v523, %v667
    %v716 = vmul.f32 %v524, %v668
    %v717 = vmul.f32 %v525, %v669
    %v718 = vmul.f32 %v526, %v670
    %v719 = vmul.f32 %v527, %v671
    %v720 = vmul.f32 %v528, %v672
    %721 = vadd.xlane.f32.xlu0 %v673
    %v722 = vpop.xlane.xlu0 %721
    %723 = vadd.xlane.f32.xlu0 %v674
    %v724 = vpop.xlane.xlu0 %723
    %725 = vadd.xlane.f32.xlu0 %v675
    %v726 = vpop.xlane.xlu0 %725
    %727 = vadd.xlane.f32.xlu0 %v676
    %v728 = vpop.xlane.xlu0 %727
    %729 = vadd.xlane.f32.xlu0 %v677
    %v730 = vpop.xlane.xlu0 %729
    %731 = vadd.xlane.f32.xlu0 %v678
    %v732 = vpop.xlane.xlu0 %731
    %733 = vadd.xlane.f32.xlu0 %v679
    %v734 = vpop.xlane.xlu0 %733
    %735 = vadd.xlane.f32.xlu0 %v680
    %v736 = vpop.xlane.xlu0 %735
    %737 = vadd.xlane.f32.xlu0 %v681
    %v738 = vpop.xlane.xlu0 %737
    %739 = vadd.xlane.f32.xlu0 %v682
    %v740 = vpop.xlane.xlu0 %739
    %741 = vadd.xlane.f32.xlu0 %v683
    %v742 = vpop.xlane.xlu0 %741
    %743 = vadd.xlane.f32.xlu0 %v684
    %v744 = vpop.xlane.xlu0 %743
    %745 = vadd.xlane.f32.xlu0 %v685
    %v746 = vpop.xlane.xlu0 %745
    %747 = vadd.xlane.f32.xlu0 %v686
    %v748 = vpop.xlane.xlu0 %747
    %749 = vadd.xlane.f32.xlu0 %v687
    %v750 = vpop.xlane.xlu0 %749
    %751 = vadd.xlane.f32.xlu0 %v688
    %v752 = vpop.xlane.xlu0 %751
    %753 = vadd.xlane.f32.xlu0 %v689
    %v754 = vpop.xlane.xlu0 %753
    %755 = vadd.xlane.f32.xlu0 %v690
    %v756 = vpop.xlane.xlu0 %755
    %757 = vadd.xlane.f32.xlu0 %v691
    %v758 = vpop.xlane.xlu0 %757
    %759 = vadd.xlane.f32.xlu0 %v692
    %v760 = vpop.xlane.xlu0 %759
    %761 = vadd.xlane.f32.xlu0 %v693
    %v762 = vpop.xlane.xlu0 %761
    %763 = vadd.xlane.f32.xlu0 %v694
    %v764 = vpop.xlane.xlu0 %763
    %765 = vadd.xlane.f32.xlu0 %v695
    %v766 = vpop.xlane.xlu0 %765
    %767 = vadd.xlane.f32.xlu0 %v696
    %v768 = vpop.xlane.xlu0 %767
    %769 = vadd.xlane.f32.xlu0 %v697
    %v770 = vpop.xlane.xlu0 %769
    %771 = vadd.xlane.f32.xlu0 %v698
    %v772 = vpop.xlane.xlu0 %771
    %773 = vadd.xlane.f32.xlu0 %v699
    %v774 = vpop.xlane.xlu0 %773
    %775 = vadd.xlane.f32.xlu0 %v700
    %v776 = vpop.xlane.xlu0 %775
    %777 = vadd.xlane.f32.xlu0 %v701
    %v778 = vpop.xlane.xlu0 %777
    %779 = vadd.xlane.f32.xlu0 %v702
    %v780 = vpop.xlane.xlu0 %779
    %781 = vadd.xlane.f32.xlu0 %v703
    %v782 = vpop.xlane.xlu0 %781
    %783 = vadd.xlane.f32.xlu0 %v704
    %v784 = vpop.xlane.xlu0 %783
    %785 = vadd.xlane.f32.xlu0 %v705
    %v786 = vpop.xlane.xlu0 %785
    %787 = vadd.xlane.f32.xlu0 %v706
    %v788 = vpop.xlane.xlu0 %787
    %789 = vadd.xlane.f32.xlu0 %v707
    %v790 = vpop.xlane.xlu0 %789
    %791 = vadd.xlane.f32.xlu0 %v708
    %v792 = vpop.xlane.xlu0 %791
    %793 = vadd.xlane.f32.xlu0 %v709
    %v794 = vpop.xlane.xlu0 %793
    %795 = vadd.xlane.f32.xlu0 %v710
    %v796 = vpop.xlane.xlu0 %795
    %797 = vadd.xlane.f32.xlu0 %v711
    %v798 = vpop.xlane.xlu0 %797
    %799 = vadd.xlane.f32.xlu0 %v712
    %v800 = vpop.xlane.xlu0 %799
    %801 = vadd.xlane.f32.xlu0 %v713
    %v802 = vpop.xlane.xlu0 %801
    %803 = vadd.xlane.f32.xlu0 %v714
    %v804 = vpop.xlane.xlu0 %803
    %805 = vadd.xlane.f32.xlu0 %v715
    %v806 = vpop.xlane.xlu0 %805
    %807 = vadd.xlane.f32.xlu0 %v716
    %v808 = vpop.xlane.xlu0 %807
    %809 = vadd.xlane.f32.xlu0 %v717
    %v810 = vpop.xlane.xlu0 %809
    %811 = vadd.xlane.f32.xlu0 %v718
    %v812 = vpop.xlane.xlu0 %811
    %813 = vadd.xlane.f32.xlu0 %v719
    %v814 = vpop.xlane.xlu0 %813
    %815 = vadd.xlane.f32.xlu0 %v720
    %v816 = vpop.xlane.xlu0 %815
    %v817 = vrcp.pop 128.0
    %v818 = vmul.f32 %v722, %v817
    %v819 = vmul.f32 %v724, %v817
    %v820 = vmul.f32 %v726, %v817
    %v821 = vmul.f32 %v728, %v817
    %v822 = vmul.f32 %v730, %v817
    %v823 = vmul.f32 %v732, %v817
    %v824 = vmul.f32 %v734, %v817
    %v825 = vmul.f32 %v736, %v817
    %v826 = vmul.f32 %v738, %v817
    %v827 = vmul.f32 %v740, %v817
    %v828 = vmul.f32 %v742, %v817
    %v829 = vmul.f32 %v744, %v817
    %v830 = vmul.f32 %v746, %v817
    %v831 = vmul.f32 %v748, %v817
    %v832 = vmul.f32 %v750, %v817
    %v833 = vmul.f32 %v752, %v817
    %v834 = vmul.f32 %v754, %v817
    %v835 = vmul.f32 %v756, %v817
    %v836 = vmul.f32 %v758, %v817
    %v837 = vmul.f32 %v760, %v817
    %v838 = vmul.f32 %v762, %v817
    %v839 = vmul.f32 %v764, %v817
    %v840 = vmul.f32 %v766, %v817
    %v841 = vmul.f32 %v768, %v817
    %v842 = vmul.f32 %v770, %v817
    %v843 = vmul.f32 %v772, %v817
    %v844 = vmul.f32 %v774, %v817
    %v845 = vmul.f32 %v776, %v817
    %v846 = vmul.f32 %v778, %v817
    %v847 = vmul.f32 %v780, %v817
    %v848 = vmul.f32 %v782, %v817
    %v849 = vmul.f32 %v784, %v817
    %v850 = vmul.f32 %v786, %v817
    %v851 = vmul.f32 %v788, %v817
    %v852 = vmul.f32 %v790, %v817
    %v853 = vmul.f32 %v792, %v817
    %v854 = vmul.f32 %v794, %v817
    %v855 = vmul.f32 %v796, %v817
    %v856 = vmul.f32 %v798, %v817
    %v857 = vmul.f32 %v800, %v817
    %v858 = vmul.f32 %v802, %v817
    %v859 = vmul.f32 %v804, %v817
    %v860 = vmul.f32 %v806, %v817
    %v861 = vmul.f32 %v808, %v817
    %v862 = vmul.f32 %v810, %v817
    %v863 = vmul.f32 %v812, %v817
    %v864 = vmul.f32 %v814, %v817
    %v865 = vmul.f32 %v816, %v817
    %v866 = vsub.f32 %v673, %v818
    %v867 = vsub.f32 %v674, %v819
    %v868 = vsub.f32 %v675, %v820
    %v869 = vsub.f32 %v676, %v821
    %v870 = vsub.f32 %v677, %v822
    %v871 = vsub.f32 %v678, %v823
    %v872 = vsub.f32 %v679, %v824
    %v873 = vsub.f32 %v680, %v825
    %v874 = vsub.f32 %v681, %v826
    %v875 = vsub.f32 %v682, %v827
    %v876 = vsub.f32 %v683, %v828
    %v877 = vsub.f32 %v684, %v829
    %v878 = vsub.f32 %v685, %v830
    %v879 = vsub.f32 %v686, %v831
    %v880 = vsub.f32 %v687, %v832
    %v881 = vsub.f32 %v688, %v833
    %v882 = vsub.f32 %v689, %v834
    %v883 = vsub.f32 %v690, %v835
    %v884 = vsub.f32 %v691, %v836
    %v885 = vsub.f32 %v692, %v837
    %v886 = vsub.f32 %v693, %v838
    %v887 = vsub.f32 %v694, %v839
    %v888 = vsub.f32 %v695, %v840
    %v889 = vsub.f32 %v696, %v841
    %v890 = vsub.f32 %v697, %v842
    %v891 = vsub.f32 %v698, %v843
    %v892 = vsub.f32 %v699, %v844
    %v893 = vsub.f32 %v700, %v845
    %v894 = vsub.f32 %v701, %v846
    %v895 = vsub.f32 %v702, %v847
    %v896 = vsub.f32 %v703, %v848
    %v897 = vsub.f32 %v704, %v849
    %v898 = vsub.f32 %v705, %v850
    %v899 = vsub.f32 %v706, %v851
    %v900 = vsub.f32 %v707, %v852
    %v901 = vsub.f32 %v708, %v853
    %v902 = vsub.f32 %v709, %v854
    %v903 = vsub.f32 %v710, %v855
    %v904 = vsub.f32 %v711, %v856
    %v905 = vsub.f32 %v712, %v857
    %v906 = vsub.f32 %v713, %v858
    %v907 = vsub.f32 %v714, %v859
    %v908 = vsub.f32 %v715, %v860
    %v909 = vsub.f32 %v716, %v861
    %v910 = vsub.f32 %v717, %v862
    %v911 = vsub.f32 %v718, %v863
    %v912 = vsub.f32 %v719, %v864
    %v913 = vsub.f32 %v720, %v865
    %v914 = vmul.f32 %v866, %v866
    %v915 = vmul.f32 %v867, %v867
    %v916 = vmul.f32 %v868, %v868
    %v917 = vmul.f32 %v869, %v869
    %v918 = vmul.f32 %v870, %v870
    %v919 = vmul.f32 %v871, %v871
    %v920 = vmul.f32 %v872, %v872
    %v921 = vmul.f32 %v873, %v873
    %v922 = vmul.f32 %v874, %v874
    %v923 = vmul.f32 %v875, %v875
    %v924 = vmul.f32 %v876, %v876
    %v925 = vmul.f32 %v877, %v877
    %v926 = vmul.f32 %v878, %v878
    %v927 = vmul.f32 %v879, %v879
    %v928 = vmul.f32 %v880, %v880
    %v929 = vmul.f32 %v881, %v881
    %v930 = vmul.f32 %v882, %v882
    %v931 = vmul.f32 %v883, %v883
    %v932 = vmul.f32 %v884, %v884
    %v933 = vmul.f32 %v885, %v885
    %v934 = vmul.f32 %v886, %v886
    %v935 = vmul.f32 %v887, %v887
    %v936 = vmul.f32 %v888, %v888
    %v937 = vmul.f32 %v889, %v889
    %v938 = vmul.f32 %v890, %v890
    %v939 = vmul.f32 %v891, %v891
    %v940 = vmul.f32 %v892, %v892
    %v941 = vmul.f32 %v893, %v893
    %v942 = vmul.f32 %v894, %v894
    %v943 = vmul.f32 %v895, %v895
    %v944 = vmul.f32 %v896, %v896
    %v945 = vmul.f32 %v897, %v897
    %v946 = vmul.f32 %v898, %v898
    %v947 = vmul.f32 %v899, %v899
    %v948 = vmul.f32 %v900, %v900
    %v949 = vmul.f32 %v901, %v901
    %v950 = vmul.f32 %v902, %v902
    %v951 = vmul.f32 %v903, %v903
    %v952 = vmul.f32 %v904, %v904
    %v953 = vmul.f32 %v905, %v905
    %v954 = vmul.f32 %v906, %v906
    %v955 = vmul.f32 %v907, %v907
    %v956 = vmul.f32 %v908, %v908
    %v957 = vmul.f32 %v909, %v909
    %v958 = vmul.f32 %v910, %v910
    %v959 = vmul.f32 %v911, %v911
    %v960 = vmul.f32 %v912, %v912
    %v961 = vmul.f32 %v913, %v913
    %962 = vadd.xlane.f32.xlu0 %v914
    %v963 = vpop.xlane.xlu0 %962
    %964 = vadd.xlane.f32.xlu0 %v915
    %v965 = vpop.xlane.xlu0 %964
    %966 = vadd.xlane.f32.xlu0 %v916
    %v967 = vpop.xlane.xlu0 %966
    %968 = vadd.xlane.f32.xlu0 %v917
    %v969 = vpop.xlane.xlu0 %968
    %970 = vadd.xlane.f32.xlu0 %v918
    %v971 = vpop.xlane.xlu0 %970
    %972 = vadd.xlane.f32.xlu0 %v919
    %v973 = vpop.xlane.xlu0 %972
    %974 = vadd.xlane.f32.xlu0 %v920
    %v975 = vpop.xlane.xlu0 %974
    %976 = vadd.xlane.f32.xlu0 %v921
    %v977 = vpop.xlane.xlu0 %976
    %978 = vadd.xlane.f32.xlu0 %v922
    %v979 = vpop.xlane.xlu0 %978
    %980 = vadd.xlane.f32.xlu0 %v923
    %v981 = vpop.xlane.xlu0 %980
    %982 = vadd.xlane.f32.xlu0 %v924
    %v983 = vpop.xlane.xlu0 %982
    %984 = vadd.xlane.f32.xlu0 %v925
    %v985 = vpop.xlane.xlu0 %984
    %986 = vadd.xlane.f32.xlu0 %v926
    %v987 = vpop.xlane.xlu0 %986
    %988 = vadd.xlane.f32.xlu0 %v927
    %v989 = vpop.xlane.xlu0 %988
    %990 = vadd.xlane.f32.xlu0 %v928
    %v991 = vpop.xlane.xlu0 %990
    %992 = vadd.xlane.f32.xlu0 %v929
    %v993 = vpop.xlane.xlu0 %992
    %994 = vadd.xlane.f32.xlu0 %v930
    %v995 = vpop.xlane.xlu0 %994
    %996 = vadd.xlane.f32.xlu0 %v931
    %v997 = vpop.xlane.xlu0 %996
    %998 = vadd.xlane.f32.xlu0 %v932
    %v999 = vpop.xlane.xlu0 %998
    %1000 = vadd.xlane.f32.xlu0 %v933
    %v1001 = vpop.xlane.xlu0 %1000
    %1002 = vadd.xlane.f32.xlu0 %v934
    %v1003 = vpop.xlane.xlu0 %1002
    %1004 = vadd.xlane.f32.xlu0 %v935
    %v1005 = vpop.xlane.xlu0 %1004
    %1006 = vadd.xlane.f32.xlu0 %v936
    %v1007 = vpop.xlane.xlu0 %1006
    %1008 = vadd.xlane.f32.xlu0 %v937
    %v1009 = vpop.xlane.xlu0 %1008
    %1010 = vadd.xlane.f32.xlu0 %v938
    %v1011 = vpop.xlane.xlu0 %1010
    %1012 = vadd.xlane.f32.xlu0 %v939
    %v1013 = vpop.xlane.xlu0 %1012
    %1014 = vadd.xlane.f32.xlu0 %v940
    %v1015 = vpop.xlane.xlu0 %1014
    %1016 = vadd.xlane.f32.xlu0 %v941
    %v1017 = vpop.xlane.xlu0 %1016
    %1018 = vadd.xlane.f32.xlu0 %v942
    %v1019 = vpop.xlane.xlu0 %1018
    %1020 = vadd.xlane.f32.xlu0 %v943
    %v1021 = vpop.xlane.xlu0 %1020
    %1022 = vadd.xlane.f32.xlu0 %v944
    %v1023 = vpop.xlane.xlu0 %1022
    %1024 = vadd.xlane.f32.xlu0 %v945
    %v1025 = vpop.xlane.xlu0 %1024
    %1026 = vadd.xlane.f32.xlu0 %v946
    %v1027 = vpop.xlane.xlu0 %1026
    %1028 = vadd.xlane.f32.xlu0 %v947
    %v1029 = vpop.xlane.xlu0 %1028
    %1030 = vadd.xlane.f32.xlu0 %v948
    %v1031 = vpop.xlane.xlu0 %1030
    %1032 = vadd.xlane.f32.xlu0 %v949
    %v1033 = vpop.xlane.xlu0 %1032
    %1034 = vadd.xlane.f32.xlu0 %v950
    %v1035 = vpop.xlane.xlu0 %1034
    %1036 = vadd.xlane.f32.xlu0 %v951
    %v1037 = vpop.xlane.xlu0 %1036
    %1038 = vadd.xlane.f32.xlu0 %v952
    %v1039 = vpop.xlane.xlu0 %1038
    %1040 = vadd.xlane.f32.xlu0 %v953
    %v1041 = vpop.xlane.xlu0 %1040
    %1042 = vadd.xlane.f32.xlu0 %v954
    %v1043 = vpop.xlane.xlu0 %1042
    %1044 = vadd.xlane.f32.xlu0 %v955
    %v1045 = vpop.xlane.xlu0 %1044
    %1046 = vadd.xlane.f32.xlu0 %v956
    %v1047 = vpop.xlane.xlu0 %1046
    %1048 = vadd.xlane.f32.xlu0 %v957
    %v1049 = vpop.xlane.xlu0 %1048
    %1050 = vadd.xlane.f32.xlu0 %v958
    %v1051 = vpop.xlane.xlu0 %1050
    %1052 = vadd.xlane.f32.xlu0 %v959
    %v1053 = vpop.xlane.xlu0 %1052
    %1054 = vadd.xlane.f32.xlu0 %v960
    %v1055 = vpop.xlane.xlu0 %1054
    %1056 = vadd.xlane.f32.xlu0 %v961
    %v1057 = vpop.xlane.xlu0 %1056
    %v1058 = vmul.f32 %v963, %v817
    %v1059 = vmul.f32 %v965, %v817
    %v1060 = vmul.f32 %v967, %v817
    %v1061 = vmul.f32 %v969, %v817
    %v1062 = vmul.f32 %v971, %v817
    %v1063 = vmul.f32 %v973, %v817
    %v1064 = vmul.f32 %v975, %v817
    %v1065 = vmul.f32 %v977, %v817
    %v1066 = vmul.f32 %v979, %v817
    %v1067 = vmul.f32 %v981, %v817
    %v1068 = vmul.f32 %v983, %v817
    %v1069 = vmul.f32 %v985, %v817
    %v1070 = vmul.f32 %v987, %v817
    %v1071 = vmul.f32 %v989, %v817
    %v1072 = vmul.f32 %v991, %v817
    %v1073 = vmul.f32 %v993, %v817
    %v1074 = vmul.f32 %v995, %v817
    %v1075 = vmul.f32 %v997, %v817
    %v1076 = vmul.f32 %v999, %v817
    %v1077 = vmul.f32 %v1001, %v817
    %v1078 = vmul.f32 %v1003, %v817
    %v1079 = vmul.f32 %v1005, %v817
    %v1080 = vmul.f32 %v1007, %v817
    %v1081 = vmul.f32 %v1009, %v817
    %v1082 = vmul.f32 %v1011, %v817
    %v1083 = vmul.f32 %v1013, %v817
    %v1084 = vmul.f32 %v1015, %v817
    %v1085 = vmul.f32 %v1017, %v817
    %v1086 = vmul.f32 %v1019, %v817
    %v1087 = vmul.f32 %v1021, %v817
    %v1088 = vmul.f32 %v1023, %v817
    %v1089 = vmul.f32 %v1025, %v817
    %v1090 = vmul.f32 %v1027, %v817
    %v1091 = vmul.f32 %v1029, %v817
    %v1092 = vmul.f32 %v1031, %v817
    %v1093 = vmul.f32 %v1033, %v817
    %v1094 = vmul.f32 %v1035, %v817
    %v1095 = vmul.f32 %v1037, %v817
    %v1096 = vmul.f32 %v1039, %v817
    %v1097 = vmul.f32 %v1041, %v817
    %v1098 = vmul.f32 %v1043, %v817
    %v1099 = vmul.f32 %v1045, %v817
    %v1100 = vmul.f32 %v1047, %v817
    %v1101 = vmul.f32 %v1049, %v817
    %v1102 = vmul.f32 %v1051, %v817
    %v1103 = vmul.f32 %v1053, %v817
    %v1104 = vmul.f32 %v1055, %v817
    %v1105 = vmul.f32 %v1057, %v817
    %v1106 = vadd.f32 %v1058, 1e-06
    %v1107 = vadd.f32 %v1059, 1e-06
    %v1108 = vadd.f32 %v1060, 1e-06
    %v1109 = vadd.f32 %v1061, 1e-06
    %v1110 = vadd.f32 %v1062, 1e-06
    %v1111 = vadd.f32 %v1063, 1e-06
    %v1112 = vadd.f32 %v1064, 1e-06
    %v1113 = vadd.f32 %v1065, 1e-06
    %v1114 = vadd.f32 %v1066, 1e-06
    %v1115 = vadd.f32 %v1067, 1e-06
    %v1116 = vadd.f32 %v1068, 1e-06
    %v1117 = vadd.f32 %v1069, 1e-06
    %v1118 = vadd.f32 %v1070, 1e-06
    %v1119 = vadd.f32 %v1071, 1e-06
    %v1120 = vadd.f32 %v1072, 1e-06
    %v1121 = vadd.f32 %v1073, 1e-06
    %v1122 = vadd.f32 %v1074, 1e-06
    %v1123 = vadd.f32 %v1075, 1e-06
    %v1124 = vadd.f32 %v1076, 1e-06
    %v1125 = vadd.f32 %v1077, 1e-06
    %v1126 = vadd.f32 %v1078, 1e-06
    %v1127 = vadd.f32 %v1079, 1e-06
    %v1128 = vadd.f32 %v1080, 1e-06
    %v1129 = vadd.f32 %v1081, 1e-06
    %v1130 = vadd.f32 %v1082, 1e-06
    %v1131 = vadd.f32 %v1083, 1e-06
    %v1132 = vadd.f32 %v1084, 1e-06
    %v1133 = vadd.f32 %v1085, 1e-06
    %v1134 = vadd.f32 %v1086, 1e-06
    %v1135 = vadd.f32 %v1087, 1e-06
    %v1136 = vadd.f32 %v1088, 1e-06
    %v1137 = vadd.f32 %v1089, 1e-06
    %v1138 = vadd.f32 %v1090, 1e-06
    %v1139 = vadd.f32 %v1091, 1e-06
    %v1140 = vadd.f32 %v1092, 1e-06
    %v1141 = vadd.f32 %v1093, 1e-06
    %v1142 = vadd.f32 %v1094, 1e-06
    %v1143 = vadd.f32 %v1095, 1e-06
    %v1144 = vadd.f32 %v1096, 1e-06
    %v1145 = vadd.f32 %v1097, 1e-06
    %v1146 = vadd.f32 %v1098, 1e-06
    %v1147 = vadd.f32 %v1099, 1e-06
    %v1148 = vadd.f32 %v1100, 1e-06
    %v1149 = vadd.f32 %v1101, 1e-06
    %v1150 = vadd.f32 %v1102, 1e-06
    %v1151 = vadd.f32 %v1103, 1e-06
    %v1152 = vadd.f32 %v1104, 1e-06
    %v1153 = vadd.f32 %v1105, 1e-06
    %v1154 = vrsqrt.pop %v1106
    %v1155 = vrsqrt.pop %v1107
    %v1156 = vrsqrt.pop %v1108
    %v1157 = vrsqrt.pop %v1109
    %v1158 = vrsqrt.pop %v1110
    %v1159 = vrsqrt.pop %v1111
    %v1160 = vrsqrt.pop %v1112
    %v1161 = vrsqrt.pop %v1113
    %v1162 = vrsqrt.pop %v1114
    %v1163 = vrsqrt.pop %v1115
    %v1164 = vrsqrt.pop %v1116
    %v1165 = vrsqrt.pop %v1117
    %v1166 = vrsqrt.pop %v1118
    %v1167 = vrsqrt.pop %v1119
    %v1168 = vrsqrt.pop %v1120
    %v1169 = vrsqrt.pop %v1121
    %v1170 = vrsqrt.pop %v1122
    %v1171 = vrsqrt.pop %v1123
    %v1172 = vrsqrt.pop %v1124
    %v1173 = vrsqrt.pop %v1125
    %v1174 = vrsqrt.pop %v1126
    %v1175 = vrsqrt.pop %v1127
    %v1176 = vrsqrt.pop %v1128
    %v1177 = vrsqrt.pop %v1129
    %v1178 = vrsqrt.pop %v1130
    %v1179 = vrsqrt.pop %v1131
    %v1180 = vrsqrt.pop %v1132
    %v1181 = vrsqrt.pop %v1133
    %v1182 = vrsqrt.pop %v1134
    %v1183 = vrsqrt.pop %v1135
    %v1184 = vrsqrt.pop %v1136
    %v1185 = vrsqrt.pop %v1137
    %v1186 = vrsqrt.pop %v1138
    %v1187 = vrsqrt.pop %v1139
    %v1188 = vrsqrt.pop %v1140
    %v1189 = vrsqrt.pop %v1141
    %v1190 = vrsqrt.pop %v1142
    %v1191 = vrsqrt.pop %v1143
    %v1192 = vrsqrt.pop %v1144
    %v1193 = vrsqrt.pop %v1145
    %v1194 = vrsqrt.pop %v1146
    %v1195 = vrsqrt.pop %v1147
    %v1196 = vrsqrt.pop %v1148
    %v1197 = vrsqrt.pop %v1149
    %v1198 = vrsqrt.pop %v1150
    %v1199 = vrsqrt.pop %v1151
    %v1200 = vrsqrt.pop %v1152
    %v1201 = vrsqrt.pop %v1153
    %v1202 = vmul.f32 %v866, %v1154
    %v1203 = vmul.f32 %v867, %v1155
    %v1204 = vmul.f32 %v868, %v1156
    %v1205 = vmul.f32 %v869, %v1157
    %v1206 = vmul.f32 %v870, %v1158
    %v1207 = vmul.f32 %v871, %v1159
    %v1208 = vmul.f32 %v872, %v1160
    %v1209 = vmul.f32 %v873, %v1161
    %v1210 = vmul.f32 %v874, %v1162
    %v1211 = vmul.f32 %v875, %v1163
    %v1212 = vmul.f32 %v876, %v1164
    %v1213 = vmul.f32 %v877, %v1165
    %v1214 = vmul.f32 %v878, %v1166
    %v1215 = vmul.f32 %v879, %v1167
    %v1216 = vmul.f32 %v880, %v1168
    %v1217 = vmul.f32 %v881, %v1169
    %v1218 = vmul.f32 %v882, %v1170
    %v1219 = vmul.f32 %v883, %v1171
    %v1220 = vmul.f32 %v884, %v1172
    %v1221 = vmul.f32 %v885, %v1173
    %v1222 = vmul.f32 %v886, %v1174
    %v1223 = vmul.f32 %v887, %v1175
    %v1224 = vmul.f32 %v888, %v1176
    %v1225 = vmul.f32 %v889, %v1177
    %v1226 = vmul.f32 %v890, %v1178
    %v1227 = vmul.f32 %v891, %v1179
    %v1228 = vmul.f32 %v892, %v1180
    %v1229 = vmul.f32 %v893, %v1181
    %v1230 = vmul.f32 %v894, %v1182
    %v1231 = vmul.f32 %v895, %v1183
    %v1232 = vmul.f32 %v896, %v1184
    %v1233 = vmul.f32 %v897, %v1185
    %v1234 = vmul.f32 %v898, %v1186
    %v1235 = vmul.f32 %v899, %v1187
    %v1236 = vmul.f32 %v900, %v1188
    %v1237 = vmul.f32 %v901, %v1189
    %v1238 = vmul.f32 %v902, %v1190
    %v1239 = vmul.f32 %v903, %v1191
    %v1240 = vmul.f32 %v904, %v1192
    %v1241 = vmul.f32 %v905, %v1193
    %v1242 = vmul.f32 %v906, %v1194
    %v1243 = vmul.f32 %v907, %v1195
    %v1244 = vmul.f32 %v908, %v1196
    %v1245 = vmul.f32 %v909, %v1197
    %v1246 = vmul.f32 %v910, %v1198
    %v1247 = vmul.f32 %v911, %v1199
    %v1248 = vmul.f32 %v912, %v1200
    %v1249 = vmul.f32 %v913, %v1201
    %v1250 = vpack.c.bf16 %v1203, %v1202
    %v1251 = vpack.c.bf16 %v1205, %v1204
    %v1252 = vpack.c.bf16 %v1207, %v1206
    %v1253 = vpack.c.bf16 %v1209, %v1208
    %v1254 = vpack.c.bf16 %v1211, %v1210
    %v1255 = vpack.c.bf16 %v1213, %v1212
    %v1256 = vpack.c.bf16 %v1215, %v1214
    %v1257 = vpack.c.bf16 %v1217, %v1216
    %v1258 = vpack.c.bf16 %v1219, %v1218
    %v1259 = vpack.c.bf16 %v1221, %v1220
    %v1260 = vpack.c.bf16 %v1223, %v1222
    %v1261 = vpack.c.bf16 %v1225, %v1224
    %v1262 = vpack.c.bf16 %v1227, %v1226
    %v1263 = vpack.c.bf16 %v1229, %v1228
    %v1264 = vpack.c.bf16 %v1231, %v1230
    %v1265 = vpack.c.bf16 %v1233, %v1232
    %v1266 = vpack.c.bf16 %v1235, %v1234
    %v1267 = vpack.c.bf16 %v1237, %v1236
    %v1268 = vpack.c.bf16 %v1239, %v1238
    %v1269 = vpack.c.bf16 %v1241, %v1240
    %v1270 = vpack.c.bf16 %v1243, %v1242
    %v1271 = vpack.c.bf16 %v1245, %v1244
    %v1272 = vpack.c.bf16 %v1247, %v1246
    %v1273 = vpack.c.bf16 %v1249, %v1248
    %v1274 = vld [vmem:[#allocation6] sm:$0xf]
    %v1275 = vld [vmem:[#allocation6 + $0x4] sm:$0xf]
    %v1276 = vld [vmem:[#allocation6 + $0x8] sm:$0xf]
    %v1277 = vld [vmem:[#allocation6 + $0xc] sm:$0xf]
    %v1278 = vld [vmem:[#allocation6 + $0x10] sm:$0xf]
    %v1279 = vld [vmem:[#allocation6 + $0x14] sm:$0xf]
    %v1280 = vld [vmem:[#allocation6 + $0x18] sm:$0xf]
    %v1281 = vld [vmem:[#allocation6 + $0x1c] sm:$0xf]
    %v1282 = vld [vmem:[#allocation6 + $0x20] sm:$0xf]
    %v1283 = vld [vmem:[#allocation6 + $0x24] sm:$0xf]
    %v1284 = vld [vmem:[#allocation6 + $0x28] sm:$0xf]
    %v1285 = vld [vmem:[#allocation6 + $0x2c] sm:$0xf]
    %v1286 = vld [vmem:[#allocation6 + $0x30] sm:$0xf]
    %v1287 = vld [vmem:[#allocation6 + $0x34] sm:$0xf]
    %v1288 = vld [vmem:[#allocation6 + $0x38] sm:$0xf]
    %v1289 = vld [vmem:[#allocation6 + $0x3c] sm:$0xf]
    %v1290 = vld [vmem:[#allocation7] sm:$0x1]
    %v1292 = vlaneseq
    %v1293 = vshrl.u32 %v1292, 7
    %v1294 = vsub.s32 0, %v1293
    %v1295 = vrot.slane %v1290, %v1294
    %v1313 = vunpack.c.l.b16 %v1274
    %v1314 = vunpack.c.l.b16 %v1275
    %v1315 = vunpack.c.l.b16 %v1276
    %v1316 = vunpack.c.l.b16 %v1277
    %v1317 = vunpack.c.l.b16 %v1278
    %v1318 = vunpack.c.l.b16 %v1279
    %v1319 = vunpack.c.l.b16 %v1280
    %v1320 = vunpack.c.l.b16 %v1281
    %v1321 = vunpack.c.l.b16 %v1282
    %v1322 = vunpack.c.l.b16 %v1283
    %v1323 = vunpack.c.l.b16 %v1284
    %v1324 = vunpack.c.l.b16 %v1285
    %v1325 = vunpack.c.l.b16 %v1286
    %v1326 = vunpack.c.l.b16 %v1287
    %v1327 = vunpack.c.l.b16 %v1288
    %v1328 = vunpack.c.l.b16 %v1289
    %v1329 = vpack.c.b16 %v1314, %v1313
    %v1330 = vpack.c.b16 %v1316, %v1315
    %v1331 = vpack.c.b16 %v1318, %v1317
    %v1332 = vpack.c.b16 %v1320, %v1319
    %v1333 = vpack.c.b16 %v1322, %v1321
    %v1334 = vpack.c.b16 %v1324, %v1323
    %v1335 = vpack.c.b16 %v1326, %v1325
    %v1336 = vpack.c.b16 %v1328, %v1327
    %1345 = vmatprep.subr.bf16.mxu0 0
    %1346 = vmatpush1.bf16.msra.mxu0 %v1336
    %1347 = vmatprep.subr.bf16.mxu0 0
    %1348 = vmatpush1.bf16.msra.mxu0 %v1335
    %1349 = vmatprep.subr.bf16.mxu0 0
    %1350 = vmatpush1.bf16.msra.mxu0 %v1334
    %1351 = vmatprep.subr.bf16.mxu0 0
    %1352 = vmatpush1.bf16.msra.mxu0 %v1333
    %1353 = vmatprep.subr.bf16.mxu0 0
    %1354 = vmatpush1.bf16.msra.mxu0 %v1332
    %1355 = vmatprep.subr.bf16.mxu0 0
    %1356 = vmatpush1.bf16.msra.mxu0 %v1331
    %1357 = vmatprep.subr.bf16.mxu0 0
    %1358 = vmatpush1.bf16.msra.mxu0 %v1330
    %1359 = vmatprep.subr.bf16.mxu0 0
    %1360 = vmatpush1.bf16.msra.mxu0 %v1329
    %1361 = vmatprep.subr.bf16.mxu0 0
    %1362 = vmatpush2.bf16.msra.mxu0 0
    %1363 = vmatprep.subr.bf16.mxu0 0
    %1364 = vmatpush2.bf16.msra.mxu0 0
    %1365 = vmatprep.subr.bf16.mxu0 0
    %1366 = vmatpush2.bf16.msra.mxu0 0
    %1367 = vmatprep.subr.bf16.mxu0 0
    %1368 = vmatpush2.bf16.msra.mxu0 0
    %1369 = vmatprep.subr.bf16.mxu0 0
    %1370 = vmatpush2.bf16.msra.mxu0 0
    %1371 = vmatprep.subr.bf16.mxu0 0
    %1372 = vmatpush2.bf16.msra.mxu0 0
    %1373 = vmatprep.subr.bf16.mxu0 0
    %1374 = vmatpush2.bf16.msra.mxu0 0
    %1375 = vmatprep.subr.bf16.mxu0 0
    %1376 = vmatpush2.bf16.msra.mxu0 0
    %1377 = vmatprep.mubr.bf16.mxu0 0
    %1378 = vmatmul.mubr.bf16.gmra.mxu0 %v1250
    %v1379 = vpop.f32.mrf.mxu0
    %v1380 = vadd.f32 %v1295, %v1379
    %v1381 = vpop.f32.mrf.mxu0
    %v1382 = vpop.f32.mrf.mxu0
    %v1383 = vadd.f32 %v1295, %v1382
    %v1384 = vpop.f32.mrf.mxu0
    %1385 = vmatprep.mubr.bf16.mxu0 0
    %1386 = vmatmul.mubr.bf16.gmra.mxu0 %v1251
    %v1387 = vpop.f32.mrf.mxu0
    %v1388 = vadd.f32 %v1295, %v1387
    %v1389 = vpop.f32.mrf.mxu0
    %v1390 = vpop.f32.mrf.mxu0
    %v1391 = vadd.f32 %v1295, %v1390
    %v1392 = vpop.f32.mrf.mxu0
    %1393 = vmatprep.mubr.bf16.mxu0 0
    %1394 = vmatmul.mubr.bf16.gmra.mxu0 %v1252
    %v1395 = vpop.f32.mrf.mxu0
    %v1396 = vadd.f32 %v1295, %v1395
    %v1397 = vpop.f32.mrf.mxu0
    %v1398 = vpop.f32.mrf.mxu0
    %v1399 = vadd.f32 %v1295, %v1398
    %v1400 = vpop.f32.mrf.mxu0
    %1401 = vmatprep.mubr.bf16.mxu0 0
    %1402 = vmatmul.mubr.bf16.gmra.mxu0 %v1253
    %v1403 = vpop.f32.mrf.mxu0
    %v1404 = vadd.f32 %v1295, %v1403
    %v1405 = vpop.f32.mrf.mxu0
    %v1406 = vpop.f32.mrf.mxu0
    %v1407 = vadd.f32 %v1295, %v1406
    %v1408 = vpop.f32.mrf.mxu0
    %1409 = vmatprep.mubr.bf16.mxu0 0
    %1410 = vmatmul.mubr.bf16.gmra.mxu0 %v1254
    %v1411 = vpop.f32.mrf.mxu0
    %v1412 = vadd.f32 %v1295, %v1411
    %v1413 = vpop.f32.mrf.mxu0
    %v1414 = vpop.f32.mrf.mxu0
    %v1415 = vadd.f32 %v1295, %v1414
    %v1416 = vpop.f32.mrf.mxu0
    %1417 = vmatprep.mubr.bf16.mxu0 0
    %1418 = vmatmul.mubr.bf16.gmra.mxu0 %v1255
    %v1419 = vpop.f32.mrf.mxu0
    %v1420 = vadd.f32 %v1295, %v1419
    %v1421 = vpop.f32.mrf.mxu0
    %v1422 = vpop.f32.mrf.mxu0
    %v1423 = vadd.f32 %v1295, %v1422
    %v1424 = vpop.f32.mrf.mxu0
    %1425 = vmatprep.mubr.bf16.mxu0 0
    %1426 = vmatmul.mubr.bf16.gmra.mxu0 %v1256
    %v1427 = vpop.f32.mrf.mxu0
    %v1428 = vadd.f32 %v1295, %v1427
    %v1429 = vpop.f32.mrf.mxu0
    %v1430 = vpop.f32.mrf.mxu0
    %v1431 = vadd.f32 %v1295, %v1430
    %v1432 = vpop.f32.mrf.mxu0
    %1433 = vmatprep.mubr.bf16.mxu0 0
    %1434 = vmatmul.mubr.bf16.gmra.mxu0 %v1257
    %v1435 = vpop.f32.mrf.mxu0
    %v1436 = vadd.f32 %v1295, %v1435
    %v1437 = vpop.f32.mrf.mxu0
    %v1438 = vpop.f32.mrf.mxu0
    %v1439 = vadd.f32 %v1295, %v1438
    %v1440 = vpop.f32.mrf.mxu0
    %1441 = vmatprep.mubr.bf16.mxu0 0
    %1442 = vmatmul.mubr.bf16.gmra.mxu0 %v1258
    %v1443 = vpop.f32.mrf.mxu0
    %v1444 = vadd.f32 %v1295, %v1443
    %v1445 = vpop.f32.mrf.mxu0
    %v1446 = vpop.f32.mrf.mxu0
    %v1447 = vadd.f32 %v1295, %v1446
    %v1448 = vpop.f32.mrf.mxu0
    %1449 = vmatprep.mubr.bf16.mxu0 0
    %1450 = vmatmul.mubr.bf16.gmra.mxu0 %v1259
    %v1451 = vpop.f32.mrf.mxu0
    %v1452 = vadd.f32 %v1295, %v1451
    %v1453 = vpop.f32.mrf.mxu0
    %v1454 = vpop.f32.mrf.mxu0
    %v1455 = vadd.f32 %v1295, %v1454
    %v1456 = vpop.f32.mrf.mxu0
    %1457 = vmatprep.mubr.bf16.mxu0 0
    %1458 = vmatmul.mubr.bf16.gmra.mxu0 %v1260
    %v1459 = vpop.f32.mrf.mxu0
    %v1460 = vadd.f32 %v1295, %v1459
    %v1461 = vpop.f32.mrf.mxu0
    %v1462 = vpop.f32.mrf.mxu0
    %v1463 = vadd.f32 %v1295, %v1462
    %v1464 = vpop.f32.mrf.mxu0
    %1465 = vmatprep.mubr.bf16.mxu0 0
    %1466 = vmatmul.mubr.bf16.gmra.mxu0 %v1261
    %v1467 = vpop.f32.mrf.mxu0
    %v1468 = vadd.f32 %v1295, %v1467
    %v1469 = vpop.f32.mrf.mxu0
    %v1470 = vpop.f32.mrf.mxu0
    %v1471 = vadd.f32 %v1295, %v1470
    %v1472 = vpop.f32.mrf.mxu0
    %1473 = vmatprep.mubr.bf16.mxu0 0
    %1474 = vmatmul.mubr.bf16.gmra.mxu0 %v1262
    %v1475 = vpop.f32.mrf.mxu0
    %v1476 = vadd.f32 %v1295, %v1475
    %v1477 = vpop.f32.mrf.mxu0
    %v1478 = vpop.f32.mrf.mxu0
    %v1479 = vadd.f32 %v1295, %v1478
    %v1480 = vpop.f32.mrf.mxu0
    %1481 = vmatprep.mubr.bf16.mxu0 0
    %1482 = vmatmul.mubr.bf16.gmra.mxu0 %v1263
    %v1483 = vpop.f32.mrf.mxu0
    %v1484 = vadd.f32 %v1295, %v1483
    %v1485 = vpop.f32.mrf.mxu0
    %v1486 = vpop.f32.mrf.mxu0
    %v1487 = vadd.f32 %v1295, %v1486
    %v1488 = vpop.f32.mrf.mxu0
    %1489 = vmatprep.mubr.bf16.mxu0 0
    %1490 = vmatmul.mubr.bf16.gmra.mxu0 %v1264
    %v1491 = vpop.f32.mrf.mxu0
    %v1492 = vadd.f32 %v1295, %v1491
    %v1493 = vpop.f32.mrf.mxu0
    %v1494 = vpop.f32.mrf.mxu0
    %v1495 = vadd.f32 %v1295, %v1494
    %v1496 = vpop.f32.mrf.mxu0
    %1497 = vmatprep.mubr.bf16.mxu0 0
    %1498 = vmatmul.mubr.bf16.gmra.mxu0 %v1265
    %v1499 = vpop.f32.mrf.mxu0
    %v1500 = vadd.f32 %v1295, %v1499
    %v1501 = vpop.f32.mrf.mxu0
    %v1502 = vpop.f32.mrf.mxu0
    %v1503 = vadd.f32 %v1295, %v1502
    %v1504 = vpop.f32.mrf.mxu0
    %1505 = vmatprep.mubr.bf16.mxu0 0
    %1506 = vmatmul.mubr.bf16.gmra.mxu0 %v1266
    %v1507 = vpop.f32.mrf.mxu0
    %v1508 = vadd.f32 %v1295, %v1507
    %v1509 = vpop.f32.mrf.mxu0
    %v1510 = vpop.f32.mrf.mxu0
    %v1511 = vadd.f32 %v1295, %v1510
    %v1512 = vpop.f32.mrf.mxu0
    %1513 = vmatprep.mubr.bf16.mxu0 0
    %1514 = vmatmul.mubr.bf16.gmra.mxu0 %v1267
    %v1515 = vpop.f32.mrf.mxu0
    %v1516 = vadd.f32 %v1295, %v1515
    %v1517 = vpop.f32.mrf.mxu0
    %v1518 = vpop.f32.mrf.mxu0
    %v1519 = vadd.f32 %v1295, %v1518
    %v1520 = vpop.f32.mrf.mxu0
    %1521 = vmatprep.mubr.bf16.mxu0 0
    %1522 = vmatmul.mubr.bf16.gmra.mxu0 %v1268
    %v1523 = vpop.f32.mrf.mxu0
    %v1524 = vadd.f32 %v1295, %v1523
    %v1525 = vpop.f32.mrf.mxu0
    %v1526 = vpop.f32.mrf.mxu0
    %v1527 = vadd.f32 %v1295, %v1526
    %v1528 = vpop.f32.mrf.mxu0
    %1529 = vmatprep.mubr.bf16.mxu0 0
    %1530 = vmatmul.mubr.bf16.gmra.mxu0 %v1269
    %v1531 = vpop.f32.mrf.mxu0
    %v1532 = vadd.f32 %v1295, %v1531
    %v1533 = vpop.f32.mrf.mxu0
    %v1534 = vpop.f32.mrf.mxu0
    %v1535 = vadd.f32 %v1295, %v1534
    %v1536 = vpop.f32.mrf.mxu0
    %1537 = vmatprep.mubr.bf16.mxu0 0
    %1538 = vmatmul.mubr.bf16.gmra.mxu0 %v1270
    %v1539 = vpop.f32.mrf.mxu0
    %v1540 = vadd.f32 %v1295, %v1539
    %v1541 = vpop.f32.mrf.mxu0
    %v1542 = vpop.f32.mrf.mxu0
    %v1543 = vadd.f32 %v1295, %v1542
    %v1544 = vpop.f32.mrf.mxu0
    %1545 = vmatprep.mubr.bf16.mxu0 0
    %1546 = vmatmul.mubr.bf16.gmra.mxu0 %v1271
    %v1547 = vpop.f32.mrf.mxu0
    %v1548 = vadd.f32 %v1295, %v1547
    %v1549 = vpop.f32.mrf.mxu0
    %v1550 = vpop.f32.mrf.mxu0
    %v1551 = vadd.f32 %v1295, %v1550
    %v1552 = vpop.f32.mrf.mxu0
    %1553 = vmatprep.mubr.bf16.mxu0 0
    %1554 = vmatmul.mubr.bf16.gmra.mxu0 %v1272
    %v1555 = vpop.f32.mrf.mxu0
    %v1556 = vadd.f32 %v1295, %v1555
    %v1557 = vpop.f32.mrf.mxu0
    %v1558 = vpop.f32.mrf.mxu0
    %v1559 = vadd.f32 %v1295, %v1558
    %v1560 = vpop.f32.mrf.mxu0
    %1561 = vmatprep.mubr.bf16.mxu0 0
    %1562 = vmatmul.mubr.bf16.gmra.mxu0 %v1273
    %v1563 = vpop.f32.mrf.mxu0
    %v1564 = vadd.f32 %v1295, %v1563
    %v1565 = vpop.f32.mrf.mxu0
    %v1566 = vpop.f32.mrf.mxu0
    %v1567 = vadd.f32 %v1295, %v1566
    %v1568 = vpop.f32.mrf.mxu0
    %1569 = vdwg.mxu0
    %v1570 = vmul.f32 %v1380, 0.5
    %v1571 = vmul.f32 %v1383, 0.5
    %v1572 = vmul.f32 %v1388, 0.5
    %v1573 = vmul.f32 %v1391, 0.5
    %v1574 = vmul.f32 %v1396, 0.5
    %v1575 = vmul.f32 %v1399, 0.5
    %v1576 = vmul.f32 %v1404, 0.5
    %v1577 = vmul.f32 %v1407, 0.5
    %v1578 = vmul.f32 %v1412, 0.5
    %v1579 = vmul.f32 %v1415, 0.5
    %v1580 = vmul.f32 %v1420, 0.5
    %v1581 = vmul.f32 %v1423, 0.5
    %v1582 = vmul.f32 %v1428, 0.5
    %v1583 = vmul.f32 %v1431, 0.5
    %v1584 = vmul.f32 %v1436, 0.5
    %v1585 = vmul.f32 %v1439, 0.5
    %v1586 = vmul.f32 %v1444, 0.5
    %v1587 = vmul.f32 %v1447, 0.5
    %v1588 = vmul.f32 %v1452, 0.5
    %v1589 = vmul.f32 %v1455, 0.5
    %v1590 = vmul.f32 %v1460, 0.5
    %v1591 = vmul.f32 %v1463, 0.5
    %v1592 = vmul.f32 %v1468, 0.5
    %v1593 = vmul.f32 %v1471, 0.5
    %v1594 = vmul.f32 %v1476, 0.5
    %v1595 = vmul.f32 %v1479, 0.5
    %v1596 = vmul.f32 %v1484, 0.5
    %v1597 = vmul.f32 %v1487, 0.5
    %v1598 = vmul.f32 %v1492, 0.5
    %v1599 = vmul.f32 %v1495, 0.5
    %v1600 = vmul.f32 %v1500, 0.5
    %v1601 = vmul.f32 %v1503, 0.5
    %v1602 = vmul.f32 %v1508, 0.5
    %v1603 = vmul.f32 %v1511, 0.5
    %v1604 = vmul.f32 %v1516, 0.5
    %v1605 = vmul.f32 %v1519, 0.5
    %v1606 = vmul.f32 %v1524, 0.5
    %v1607 = vmul.f32 %v1527, 0.5
    %v1608 = vmul.f32 %v1532, 0.5
    %v1609 = vmul.f32 %v1535, 0.5
    %v1610 = vmul.f32 %v1540, 0.5
    %v1611 = vmul.f32 %v1543, 0.5
    %v1612 = vmul.f32 %v1548, 0.5
    %v1613 = vmul.f32 %v1551, 0.5
    %v1614 = vmul.f32 %v1556, 0.5
    %v1615 = vmul.f32 %v1559, 0.5
    %v1616 = vmul.f32 %v1564, 0.5
    %v1617 = vmul.f32 %v1567, 0.5
    %v1618 = vmul.f32 %v1380, 0.70710677
    %v1619 = vmul.f32 %v1383, 0.70710677
    %v1620 = vmul.f32 %v1388, 0.70710677
    %v1621 = vmul.f32 %v1391, 0.70710677
    %v1622 = vmul.f32 %v1396, 0.70710677
    %v1623 = vmul.f32 %v1399, 0.70710677
    %v1624 = vmul.f32 %v1404, 0.70710677
    %v1625 = vmul.f32 %v1407, 0.70710677
    %v1626 = vmul.f32 %v1412, 0.70710677
    %v1627 = vmul.f32 %v1415, 0.70710677
    %v1628 = vmul.f32 %v1420, 0.70710677
    %v1629 = vmul.f32 %v1423, 0.70710677
    %v1630 = vmul.f32 %v1428, 0.70710677
    %v1631 = vmul.f32 %v1431, 0.70710677
    %v1632 = vmul.f32 %v1436, 0.70710677
    %v1633 = vmul.f32 %v1439, 0.70710677
    %v1634 = vmul.f32 %v1444, 0.70710677
    %v1635 = vmul.f32 %v1447, 0.70710677
    %v1636 = vmul.f32 %v1452, 0.70710677
    %v1637 = vmul.f32 %v1455, 0.70710677
    %v1638 = vmul.f32 %v1460, 0.70710677
    %v1639 = vmul.f32 %v1463, 0.70710677
    %v1640 = vmul.f32 %v1468, 0.70710677
    %v1641 = vmul.f32 %v1471, 0.70710677
    %v1642 = vmul.f32 %v1476, 0.70710677
    %v1643 = vmul.f32 %v1479, 0.70710677
    %v1644 = vmul.f32 %v1484, 0.70710677
    %v1645 = vmul.f32 %v1487, 0.70710677
    %v1646 = vmul.f32 %v1492, 0.70710677
    %v1647 = vmul.f32 %v1495, 0.70710677
    %v1648 = vmul.f32 %v1500, 0.70710677
    %v1649 = vmul.f32 %v1503, 0.70710677
    %v1650 = vmul.f32 %v1508, 0.70710677
    %v1651 = vmul.f32 %v1511, 0.70710677
    %v1652 = vmul.f32 %v1516, 0.70710677
    %v1653 = vmul.f32 %v1519, 0.70710677
    %v1654 = vmul.f32 %v1524, 0.70710677
    %v1655 = vmul.f32 %v1527, 0.70710677
    %v1656 = vmul.f32 %v1532, 0.70710677
    %v1657 = vmul.f32 %v1535, 0.70710677
    %v1658 = vmul.f32 %v1540, 0.70710677
    %v1659 = vmul.f32 %v1543, 0.70710677
    %v1660 = vmul.f32 %v1548, 0.70710677
    %v1661 = vmul.f32 %v1551, 0.70710677
    %v1662 = vmul.f32 %v1556, 0.70710677
    %v1663 = vmul.f32 %v1559, 0.70710677
    %v1664 = vmul.f32 %v1564, 0.70710677
    %v1665 = vmul.f32 %v1567, 0.70710677
    %v1666 = verf.f32.pop %v1618
    %v1667 = verf.f32.pop %v1619
    %v1668 = verf.f32.pop %v1620
    %v1669 = verf.f32.pop %v1621
    %v1670 = verf.f32.pop %v1622
    %v1671 = verf.f32.pop %v1623
    %v1672 = verf.f32.pop %v1624
    %v1673 = verf.f32.pop %v1625
    %v1674 = verf.f32.pop %v1626
    %v1675 = verf.f32.pop %v1627
    %v1676 = verf.f32.pop %v1628
    %v1677 = verf.f32.pop %v1629
    %v1678 = verf.f32.pop %v1630
    %v1679 = verf.f32.pop %v1631
    %v1680 = verf.f32.pop %v1632
    %v1681 = verf.f32.pop %v1633
    %v1682 = verf.f32.pop %v1634
    %v1683 = verf.f32.pop %v1635
    %v1684 = verf.f32.pop %v1636
    %v1685 = verf.f32.pop %v1637
    %v1686 = verf.f32.pop %v1638
    %v1687 = verf.f32.pop %v1639
    %v1688 = verf.f32.pop %v1640
    %v1689 = verf.f32.pop %v1641
    %v1690 = verf.f32.pop %v1642
    %v1691 = verf.f32.pop %v1643
    %v1692 = verf.f32.pop %v1644
    %v1693 = verf.f32.pop %v1645
    %v1694 = verf.f32.pop %v1646
    %v1695 = verf.f32.pop %v1647
    %v1696 = verf.f32.pop %v1648
    %v1697 = verf.f32.pop %v1649
    %v1698 = verf.f32.pop %v1650
    %v1699 = verf.f32.pop %v1651
    %v1700 = verf.f32.pop %v1652
    %v1701 = verf.f32.pop %v1653
    %v1702 = verf.f32.pop %v1654
    %v1703 = verf.f32.pop %v1655
    %v1704 = verf.f32.pop %v1656
    %v1705 = verf.f32.pop %v1657
    %v1706 = verf.f32.pop %v1658
    %v1707 = verf.f32.pop %v1659
    %v1708 = verf.f32.pop %v1660
    %v1709 = verf.f32.pop %v1661
    %v1710 = verf.f32.pop %v1662
    %v1711 = verf.f32.pop %v1663
    %v1712 = verf.f32.pop %v1664
    %v1713 = verf.f32.pop %v1665
    %v1714 = vadd.f32 %v1666, 1.0
    %v1715 = vadd.f32 %v1667, 1.0
    %v1716 = vadd.f32 %v1668, 1.0
    %v1717 = vadd.f32 %v1669, 1.0
    %v1718 = vadd.f32 %v1670, 1.0
    %v1719 = vadd.f32 %v1671, 1.0
    %v1720 = vadd.f32 %v1672, 1.0
    %v1721 = vadd.f32 %v1673, 1.0
    %v1722 = vadd.f32 %v1674, 1.0
    %v1723 = vadd.f32 %v1675, 1.0
    %v1724 = vadd.f32 %v1676, 1.0
    %v1725 = vadd.f32 %v1677, 1.0
    %v1726 = vadd.f32 %v1678, 1.0
    %v1727 = vadd.f32 %v1679, 1.0
    %v1728 = vadd.f32 %v1680, 1.0
    %v1729 = vadd.f32 %v1681, 1.0
    %v1730 = vadd.f32 %v1682, 1.0
    %v1731 = vadd.f32 %v1683, 1.0
    %v1732 = vadd.f32 %v1684, 1.0
    %v1733 = vadd.f32 %v1685, 1.0
    %v1734 = vadd.f32 %v1686, 1.0
    %v1735 = vadd.f32 %v1687, 1.0
    %v1736 = vadd.f32 %v1688, 1.0
    %v1737 = vadd.f32 %v1689, 1.0
    %v1738 = vadd.f32 %v1690, 1.0
    %v1739 = vadd.f32 %v1691, 1.0
    %v1740 = vadd.f32 %v1692, 1.0
    %v1741 = vadd.f32 %v1693, 1.0
    %v1742 = vadd.f32 %v1694, 1.0
    %v1743 = vadd.f32 %v1695, 1.0
    %v1744 = vadd.f32 %v1696, 1.0
    %v1745 = vadd.f32 %v1697, 1.0
    %v1746 = vadd.f32 %v1698, 1.0
    %v1747 = vadd.f32 %v1699, 1.0
    %v1748 = vadd.f32 %v1700, 1.0
    %v1749 = vadd.f32 %v1701, 1.0
    %v1750 = vadd.f32 %v1702, 1.0
    %v1751 = vadd.f32 %v1703, 1.0
    %v1752 = vadd.f32 %v1704, 1.0
    %v1753 = vadd.f32 %v1705, 1.0
    %v1754 = vadd.f32 %v1706, 1.0
    %v1755 = vadd.f32 %v1707, 1.0
    %v1756 = vadd.f32 %v1708, 1.0
    %v1757 = vadd.f32 %v1709, 1.0
    %v1758 = vadd.f32 %v1710, 1.0
    %v1759 = vadd.f32 %v1711, 1.0
    %v1760 = vadd.f32 %v1712, 1.0
    %v1761 = vadd.f32 %v1713, 1.0
    %v1762 = vmul.f32 %v1570, %v1714
    %v1763 = vmul.f32 %v1571, %v1715
    %v1764 = vmul.f32 %v1572, %v1716
    %v1765 = vmul.f32 %v1573, %v1717
    %v1766 = vmul.f32 %v1574, %v1718
    %v1767 = vmul.f32 %v1575, %v1719
    %v1768 = vmul.f32 %v1576, %v1720
    %v1769 = vmul.f32 %v1577, %v1721
    %v1770 = vmul.f32 %v1578, %v1722
    %v1771 = vmul.f32 %v1579, %v1723
    %v1772 = vmul.f32 %v1580, %v1724
    %v1773 = vmul.f32 %v1581, %v1725
    %v1774 = vmul.f32 %v1582, %v1726
    %v1775 = vmul.f32 %v1583, %v1727
    %v1776 = vmul.f32 %v1584, %v1728
    %v1777 = vmul.f32 %v1585, %v1729
    %v1778 = vmul.f32 %v1586, %v1730
    %v1779 = vmul.f32 %v1587, %v1731
    %v1780 = vmul.f32 %v1588, %v1732
    %v1781 = vmul.f32 %v1589, %v1733
    %v1782 = vmul.f32 %v1590, %v1734
    %v1783 = vmul.f32 %v1591, %v1735
    %v1784 = vmul.f32 %v1592, %v1736
    %v1785 = vmul.f32 %v1593, %v1737
    %v1786 = vmul.f32 %v1594, %v1738
    %v1787 = vmul.f32 %v1595, %v1739
    %v1788 = vmul.f32 %v1596, %v1740
    %v1789 = vmul.f32 %v1597, %v1741
    %v1790 = vmul.f32 %v1598, %v1742
    %v1791 = vmul.f32 %v1599, %v1743
    %v1792 = vmul.f32 %v1600, %v1744
    %v1793 = vmul.f32 %v1601, %v1745
    %v1794 = vmul.f32 %v1602, %v1746
    %v1795 = vmul.f32 %v1603, %v1747
    %v1796 = vmul.f32 %v1604, %v1748
    %v1797 = vmul.f32 %v1605, %v1749
    %v1798 = vmul.f32 %v1606, %v1750
    %v1799 = vmul.f32 %v1607, %v1751
    %v1800 = vmul.f32 %v1608, %v1752
    %v1801 = vmul.f32 %v1609, %v1753
    %v1802 = vmul.f32 %v1610, %v1754
    %v1803 = vmul.f32 %v1611, %v1755
    %v1804 = vmul.f32 %v1612, %v1756
    %v1805 = vmul.f32 %v1613, %v1757
    %v1806 = vmul.f32 %v1614, %v1758
    %v1807 = vmul.f32 %v1615, %v1759
    %v1808 = vmul.f32 %v1616, %v1760
    %v1809 = vmul.f32 %v1617, %v1761
    %1810 = vadd.xlane.f32.xlu0 %v1762
    %v1811 = vpop.xlane.xlu0 %1810
    %1812 = vadd.xlane.f32.xlu0 %v1763
    %v1813 = vpop.xlane.xlu0 %1812
    %1814 = vadd.xlane.f32.xlu0 %v1764
    %v1815 = vpop.xlane.xlu0 %1814
    %1816 = vadd.xlane.f32.xlu0 %v1765
    %v1817 = vpop.xlane.xlu0 %1816
    %1818 = vadd.xlane.f32.xlu0 %v1766
    %v1819 = vpop.xlane.xlu0 %1818
    %1820 = vadd.xlane.f32.xlu0 %v1767
    %v1821 = vpop.xlane.xlu0 %1820
    %1822 = vadd.xlane.f32.xlu0 %v1768
    %v1823 = vpop.xlane.xlu0 %1822
    %1824 = vadd.xlane.f32.xlu0 %v1769
    %v1825 = vpop.xlane.xlu0 %1824
    %1826 = vadd.xlane.f32.xlu0 %v1770
    %v1827 = vpop.xlane.xlu0 %1826
    %1828 = vadd.xlane.f32.xlu0 %v1771
    %v1829 = vpop.xlane.xlu0 %1828
    %1830 = vadd.xlane.f32.xlu0 %v1772
    %v1831 = vpop.xlane.xlu0 %1830
    %1832 = vadd.xlane.f32.xlu0 %v1773
    %v1833 = vpop.xlane.xlu0 %1832
    %1834 = vadd.xlane.f32.xlu0 %v1774
    %v1835 = vpop.xlane.xlu0 %1834
    %1836 = vadd.xlane.f32.xlu0 %v1775
    %v1837 = vpop.xlane.xlu0 %1836
    %1838 = vadd.xlane.f32.xlu0 %v1776
    %v1839 = vpop.xlane.xlu0 %1838
    %1840 = vadd.xlane.f32.xlu0 %v1777
    %v1841 = vpop.xlane.xlu0 %1840
    %1842 = vadd.xlane.f32.xlu0 %v1778
    %v1843 = vpop.xlane.xlu0 %1842
    %1844 = vadd.xlane.f32.xlu0 %v1779
    %v1845 = vpop.xlane.xlu0 %1844
    %1846 = vadd.xlane.f32.xlu0 %v1780
    %v1847 = vpop.xlane.xlu0 %1846
    %1848 = vadd.xlane.f32.xlu0 %v1781
    %v1849 = vpop.xlane.xlu0 %1848
    %1850 = vadd.xlane.f32.xlu0 %v1782
    %v1851 = vpop.xlane.xlu0 %1850
    %1852 = vadd.xlane.f32.xlu0 %v1783
    %v1853 = vpop.xlane.xlu0 %1852
    %1854 = vadd.xlane.f32.xlu0 %v1784
    %v1855 = vpop.xlane.xlu0 %1854
    %1856 = vadd.xlane.f32.xlu0 %v1785
    %v1857 = vpop.xlane.xlu0 %1856
    %1858 = vadd.xlane.f32.xlu0 %v1786
    %v1859 = vpop.xlane.xlu0 %1858
    %1860 = vadd.xlane.f32.xlu0 %v1787
    %v1861 = vpop.xlane.xlu0 %1860
    %1862 = vadd.xlane.f32.xlu0 %v1788
    %v1863 = vpop.xlane.xlu0 %1862
    %1864 = vadd.xlane.f32.xlu0 %v1789
    %v1865 = vpop.xlane.xlu0 %1864
    %1866 = vadd.xlane.f32.xlu0 %v1790
    %v1867 = vpop.xlane.xlu0 %1866
    %1868 = vadd.xlane.f32.xlu0 %v1791
    %v1869 = vpop.xlane.xlu0 %1868
    %1870 = vadd.xlane.f32.xlu0 %v1792
    %v1871 = vpop.xlane.xlu0 %1870
    %1872 = vadd.xlane.f32.xlu0 %v1793
    %v1873 = vpop.xlane.xlu0 %1872
    %1874 = vadd.xlane.f32.xlu0 %v1794
    %v1875 = vpop.xlane.xlu0 %1874
    %1876 = vadd.xlane.f32.xlu0 %v1795
    %v1877 = vpop.xlane.xlu0 %1876
    %1878 = vadd.xlane.f32.xlu0 %v1796
    %v1879 = vpop.xlane.xlu0 %1878
    %1880 = vadd.xlane.f32.xlu0 %v1797
    %v1881 = vpop.xlane.xlu0 %1880
    %1882 = vadd.xlane.f32.xlu0 %v1798
    %v1883 = vpop.xlane.xlu0 %1882
    %1884 = vadd.xlane.f32.xlu0 %v1799
    %v1885 = vpop.xlane.xlu0 %1884
    %1886 = vadd.xlane.f32.xlu0 %v1800
    %v1887 = vpop.xlane.xlu0 %1886
    %1888 = vadd.xlane.f32.xlu0 %v1801
    %v1889 = vpop.xlane.xlu0 %1888
    %1890 = vadd.xlane.f32.xlu0 %v1802
    %v1891 = vpop.xlane.xlu0 %1890
    %1892 = vadd.xlane.f32.xlu0 %v1803
    %v1893 = vpop.xlane.xlu0 %1892
    %1894 = vadd.xlane.f32.xlu0 %v1804
    %v1895 = vpop.xlane.xlu0 %1894
    %1896 = vadd.xlane.f32.xlu0 %v1805
    %v1897 = vpop.xlane.xlu0 %1896
    %1898 = vadd.xlane.f32.xlu0 %v1806
    %v1899 = vpop.xlane.xlu0 %1898
    %1900 = vadd.xlane.f32.xlu0 %v1807
    %v1901 = vpop.xlane.xlu0 %1900
    %1902 = vadd.xlane.f32.xlu0 %v1808
    %v1903 = vpop.xlane.xlu0 %1902
    %1904 = vadd.xlane.f32.xlu0 %v1809
    %v1905 = vpop.xlane.xlu0 %1904
    %v1906 = vmul.f32 %v1811, %v817
    %v1907 = vmul.f32 %v1813, %v817
    %v1908 = vmul.f32 %v1815, %v817
    %v1909 = vmul.f32 %v1817, %v817
    %v1910 = vmul.f32 %v1819, %v817
    %v1911 = vmul.f32 %v1821, %v817
    %v1912 = vmul.f32 %v1823, %v817
    %v1913 = vmul.f32 %v1825, %v817
    %v1914 = vmul.f32 %v1827, %v817
    %v1915 = vmul.f32 %v1829, %v817
    %v1916 = vmul.f32 %v1831, %v817
    %v1917 = vmul.f32 %v1833, %v817
    %v1918 = vmul.f32 %v1835, %v817
    %v1919 = vmul.f32 %v1837, %v817
    %v1920 = vmul.f32 %v1839, %v817
    %v1921 = vmul.f32 %v1841, %v817
    %v1922 = vmul.f32 %v1843, %v817
    %v1923 = vmul.f32 %v1845, %v817
    %v1924 = vmul.f32 %v1847, %v817
    %v1925 = vmul.f32 %v1849, %v817
    %v1926 = vmul.f32 %v1851, %v817
    %v1927 = vmul.f32 %v1853, %v817
    %v1928 = vmul.f32 %v1855, %v817
    %v1929 = vmul.f32 %v1857, %v817
    %v1930 = vmul.f32 %v1859, %v817
    %v1931 = vmul.f32 %v1861, %v817
    %v1932 = vmul.f32 %v1863, %v817
    %v1933 = vmul.f32 %v1865, %v817
    %v1934 = vmul.f32 %v1867, %v817
    %v1935 = vmul.f32 %v1869, %v817
    %v1936 = vmul.f32 %v1871, %v817
    %v1937 = vmul.f32 %v1873, %v817
    %v1938 = vmul.f32 %v1875, %v817
    %v1939 = vmul.f32 %v1877, %v817
    %v1940 = vmul.f32 %v1879, %v817
    %v1941 = vmul.f32 %v1881, %v817
    %v1942 = vmul.f32 %v1883, %v817
    %v1943 = vmul.f32 %v1885, %v817
    %v1944 = vmul.f32 %v1887, %v817
    %v1945 = vmul.f32 %v1889, %v817
    %v1946 = vmul.f32 %v1891, %v817
    %v1947 = vmul.f32 %v1893, %v817
    %v1948 = vmul.f32 %v1895, %v817
    %v1949 = vmul.f32 %v1897, %v817
    %v1950 = vmul.f32 %v1899, %v817
    %v1951 = vmul.f32 %v1901, %v817
    %v1952 = vmul.f32 %v1903, %v817
    %v1953 = vmul.f32 %v1905, %v817
    %v1954 = vsub.f32 %v1762, %v1906
    %v1955 = vsub.f32 %v1763, %v1907
    %v1956 = vsub.f32 %v1764, %v1908
    %v1957 = vsub.f32 %v1765, %v1909
    %v1958 = vsub.f32 %v1766, %v1910
    %v1959 = vsub.f32 %v1767, %v1911
    %v1960 = vsub.f32 %v1768, %v1912
    %v1961 = vsub.f32 %v1769, %v1913
    %v1962 = vsub.f32 %v1770, %v1914
    %v1963 = vsub.f32 %v1771, %v1915
    %v1964 = vsub.f32 %v1772, %v1916
    %v1965 = vsub.f32 %v1773, %v1917
    %v1966 = vsub.f32 %v1774, %v1918
    %v1967 = vsub.f32 %v1775, %v1919
    %v1968 = vsub.f32 %v1776, %v1920
    %v1969 = vsub.f32 %v1777, %v1921
    %v1970 = vsub.f32 %v1778, %v1922
    %v1971 = vsub.f32 %v1779, %v1923
    %v1972 = vsub.f32 %v1780, %v1924
    %v1973 = vsub.f32 %v1781, %v1925
    %v1974 = vsub.f32 %v1782, %v1926
    %v1975 = vsub.f32 %v1783, %v1927
    %v1976 = vsub.f32 %v1784, %v1928
    %v1977 = vsub.f32 %v1785, %v1929
    %v1978 = vsub.f32 %v1786, %v1930
    %v1979 = vsub.f32 %v1787, %v1931
    %v1980 = vsub.f32 %v1788, %v1932
    %v1981 = vsub.f32 %v1789, %v1933
    %v1982 = vsub.f32 %v1790, %v1934
    %v1983 = vsub.f32 %v1791, %v1935
    %v1984 = vsub.f32 %v1792, %v1936
    %v1985 = vsub.f32 %v1793, %v1937
    %v1986 = vsub.f32 %v1794, %v1938
    %v1987 = vsub.f32 %v1795, %v1939
    %v1988 = vsub.f32 %v1796, %v1940
    %v1989 = vsub.f32 %v1797, %v1941
    %v1990 = vsub.f32 %v1798, %v1942
    %v1991 = vsub.f32 %v1799, %v1943
    %v1992 = vsub.f32 %v1800, %v1944
    %v1993 = vsub.f32 %v1801, %v1945
    %v1994 = vsub.f32 %v1802, %v1946
    %v1995 = vsub.f32 %v1803, %v1947
    %v1996 = vsub.f32 %v1804, %v1948
    %v1997 = vsub.f32 %v1805, %v1949
    %v1998 = vsub.f32 %v1806, %v1950
    %v1999 = vsub.f32 %v1807, %v1951
    %v2000 = vsub.f32 %v1808, %v1952
    %v2001 = vsub.f32 %v1809, %v1953
    %v2002 = vmul.f32 %v1954, %v1954
    %v2003 = vmul.f32 %v1955, %v1955
    %v2004 = vmul.f32 %v1956, %v1956
    %v2005 = vmul.f32 %v1957, %v1957
    %v2006 = vmul.f32 %v1958, %v1958
    %v2007 = vmul.f32 %v1959, %v1959
    %v2008 = vmul.f32 %v1960, %v1960
    %v2009 = vmul.f32 %v1961, %v1961
    %v2010 = vmul.f32 %v1962, %v1962
    %v2011 = vmul.f32 %v1963, %v1963
    %v2012 = vmul.f32 %v1964, %v1964
    %v2013 = vmul.f32 %v1965, %v1965
    %v2014 = vmul.f32 %v1966, %v1966
    %v2015 = vmul.f32 %v1967, %v1967
    %v2016 = vmul.f32 %v1968, %v1968
    %v2017 = vmul.f32 %v1969, %v1969
    %v2018 = vmul.f32 %v1970, %v1970
    %v2019 = vmul.f32 %v1971, %v1971
    %v2020 = vmul.f32 %v1972, %v1972
    %v2021 = vmul.f32 %v1973, %v1973
    %v2022 = vmul.f32 %v1974, %v1974
    %v2023 = vmul.f32 %v1975, %v1975
    %v2024 = vmul.f32 %v1976, %v1976
    %v2025 = vmul.f32 %v1977, %v1977
    %v2026 = vmul.f32 %v1978, %v1978
    %v2027 = vmul.f32 %v1979, %v1979
    %v2028 = vmul.f32 %v1980, %v1980
    %v2029 = vmul.f32 %v1981, %v1981
    %v2030 = vmul.f32 %v1982, %v1982
    %v2031 = vmul.f32 %v1983, %v1983
    %v2032 = vmul.f32 %v1984, %v1984
    %v2033 = vmul.f32 %v1985, %v1985
    %v2034 = vmul.f32 %v1986, %v1986
    %v2035 = vmul.f32 %v1987, %v1987
    %v2036 = vmul.f32 %v1988, %v1988
    %v2037 = vmul.f32 %v1989, %v1989
    %v2038 = vmul.f32 %v1990, %v1990
    %v2039 = vmul.f32 %v1991, %v1991
    %v2040 = vmul.f32 %v1992, %v1992
    %v2041 = vmul.f32 %v1993, %v1993
    %v2042 = vmul.f32 %v1994, %v1994
    %v2043 = vmul.f32 %v1995, %v1995
    %v2044 = vmul.f32 %v1996, %v1996
    %v2045 = vmul.f32 %v1997, %v1997
    %v2046 = vmul.f32 %v1998, %v1998
    %v2047 = vmul.f32 %v1999, %v1999
    %v2048 = vmul.f32 %v2000, %v2000
    %v2049 = vmul.f32 %v2001, %v2001
    %2050 = vadd.xlane.f32.xlu0 %v2002
    %v2051 = vpop.xlane.xlu0 %2050
    %2052 = vadd.xlane.f32.xlu0 %v2003
    %v2053 = vpop.xlane.xlu0 %2052
    %2054 = vadd.xlane.f32.xlu0 %v2004
    %v2055 = vpop.xlane.xlu0 %2054
    %2056 = vadd.xlane.f32.xlu0 %v2005
    %v2057 = vpop.xlane.xlu0 %2056
    %2058 = vadd.xlane.f32.xlu0 %v2006
    %v2059 = vpop.xlane.xlu0 %2058
    %2060 = vadd.xlane.f32.xlu0 %v2007
    %v2061 = vpop.xlane.xlu0 %2060
    %2062 = vadd.xlane.f32.xlu0 %v2008
    %v2063 = vpop.xlane.xlu0 %2062
    %2064 = vadd.xlane.f32.xlu0 %v2009
    %v2065 = vpop.xlane.xlu0 %2064
    %2066 = vadd.xlane.f32.xlu0 %v2010
    %v2067 = vpop.xlane.xlu0 %2066
    %2068 = vadd.xlane.f32.xlu0 %v2011
    %v2069 = vpop.xlane.xlu0 %2068
    %2070 = vadd.xlane.f32.xlu0 %v2012
    %v2071 = vpop.xlane.xlu0 %2070
    %2072 = vadd.xlane.f32.xlu0 %v2013
    %v2073 = vpop.xlane.xlu0 %2072
    %2074 = vadd.xlane.f32.xlu0 %v2014
    %v2075 = vpop.xlane.xlu0 %2074
    %2076 = vadd.xlane.f32.xlu0 %v2015
    %v2077 = vpop.xlane.xlu0 %2076
    %2078 = vadd.xlane.f32.xlu0 %v2016
    %v2079 = vpop.xlane.xlu0 %2078
    %2080 = vadd.xlane.f32.xlu0 %v2017
    %v2081 = vpop.xlane.xlu0 %2080
    %2082 = vadd.xlane.f32.xlu0 %v2018
    %v2083 = vpop.xlane.xlu0 %2082
    %2084 = vadd.xlane.f32.xlu0 %v2019
    %v2085 = vpop.xlane.xlu0 %2084
    %2086 = vadd.xlane.f32.xlu0 %v2020
    %v2087 = vpop.xlane.xlu0 %2086
    %2088 = vadd.xlane.f32.xlu0 %v2021
    %v2089 = vpop.xlane.xlu0 %2088
    %2090 = vadd.xlane.f32.xlu0 %v2022
    %v2091 = vpop.xlane.xlu0 %2090
    %2092 = vadd.xlane.f32.xlu0 %v2023
    %v2093 = vpop.xlane.xlu0 %2092
    %2094 = vadd.xlane.f32.xlu0 %v2024
    %v2095 = vpop.xlane.xlu0 %2094
    %2096 = vadd.xlane.f32.xlu0 %v2025
    %v2097 = vpop.xlane.xlu0 %2096
    %2098 = vadd.xlane.f32.xlu0 %v2026
    %v2099 = vpop.xlane.xlu0 %2098
    %2100 = vadd.xlane.f32.xlu0 %v2027
    %v2101 = vpop.xlane.xlu0 %2100
    %2102 = vadd.xlane.f32.xlu0 %v2028
    %v2103 = vpop.xlane.xlu0 %2102
    %2104 = vadd.xlane.f32.xlu0 %v2029
    %v2105 = vpop.xlane.xlu0 %2104
    %2106 = vadd.xlane.f32.xlu0 %v2030
    %v2107 = vpop.xlane.xlu0 %2106
    %2108 = vadd.xlane.f32.xlu0 %v2031
    %v2109 = vpop.xlane.xlu0 %2108
    %2110 = vadd.xlane.f32.xlu0 %v2032
    %v2111 = vpop.xlane.xlu0 %2110
    %2112 = vadd.xlane.f32.xlu0 %v2033
    %v2113 = vpop.xlane.xlu0 %2112
    %2114 = vadd.xlane.f32.xlu0 %v2034
    %v2115 = vpop.xlane.xlu0 %2114
    %2116 = vadd.xlane.f32.xlu0 %v2035
    %v2117 = vpop.xlane.xlu0 %2116
    %2118 = vadd.xlane.f32.xlu0 %v2036
    %v2119 = vpop.xlane.xlu0 %2118
    %2120 = vadd.xlane.f32.xlu0 %v2037
    %v2121 = vpop.xlane.xlu0 %2120
    %2122 = vadd.xlane.f32.xlu0 %v2038
    %v2123 = vpop.xlane.xlu0 %2122
    %2124 = vadd.xlane.f32.xlu0 %v2039
    %v2125 = vpop.xlane.xlu0 %2124
    %2126 = vadd.xlane.f32.xlu0 %v2040
    %v2127 = vpop.xlane.xlu0 %2126
    %2128 = vadd.xlane.f32.xlu0 %v2041
    %v2129 = vpop.xlane.xlu0 %2128
    %2130 = vadd.xlane.f32.xlu0 %v2042
    %v2131 = vpop.xlane.xlu0 %2130
    %2132 = vadd.xlane.f32.xlu0 %v2043
    %v2133 = vpop.xlane.xlu0 %2132
    %2134 = vadd.xlane.f32.xlu0 %v2044
    %v2135 = vpop.xlane.xlu0 %2134
    %2136 = vadd.xlane.f32.xlu0 %v2045
    %v2137 = vpop.xlane.xlu0 %2136
    %2138 = vadd.xlane.f32.xlu0 %v2046
    %v2139 = vpop.xlane.xlu0 %2138
    %2140 = vadd.xlane.f32.xlu0 %v2047
    %v2141 = vpop.xlane.xlu0 %2140
    %2142 = vadd.xlane.f32.xlu0 %v2048
    %v2143 = vpop.xlane.xlu0 %2142
    %2144 = vadd.xlane.f32.xlu0 %v2049
    %v2145 = vpop.xlane.xlu0 %2144
    %v2146 = vmul.f32 %v2051, %v817
    %v2147 = vmul.f32 %v2053, %v817
    %v2148 = vmul.f32 %v2055, %v817
    %v2149 = vmul.f32 %v2057, %v817
    %v2150 = vmul.f32 %v2059, %v817
    %v2151 = vmul.f32 %v2061, %v817
    %v2152 = vmul.f32 %v2063, %v817
    %v2153 = vmul.f32 %v2065, %v817
    %v2154 = vmul.f32 %v2067, %v817
    %v2155 = vmul.f32 %v2069, %v817
    %v2156 = vmul.f32 %v2071, %v817
    %v2157 = vmul.f32 %v2073, %v817
    %v2158 = vmul.f32 %v2075, %v817
    %v2159 = vmul.f32 %v2077, %v817
    %v2160 = vmul.f32 %v2079, %v817
    %v2161 = vmul.f32 %v2081, %v817
    %v2162 = vmul.f32 %v2083, %v817
    %v2163 = vmul.f32 %v2085, %v817
    %v2164 = vmul.f32 %v2087, %v817
    %v2165 = vmul.f32 %v2089, %v817
    %v2166 = vmul.f32 %v2091, %v817
    %v2167 = vmul.f32 %v2093, %v817
    %v2168 = vmul.f32 %v2095, %v817
    %v2169 = vmul.f32 %v2097, %v817
    %v2170 = vmul.f32 %v2099, %v817
    %v2171 = vmul.f32 %v2101, %v817
    %v2172 = vmul.f32 %v2103, %v817
    %v2173 = vmul.f32 %v2105, %v817
    %v2174 = vmul.f32 %v2107, %v817
    %v2175 = vmul.f32 %v2109, %v817
    %v2176 = vmul.f32 %v2111, %v817
    %v2177 = vmul.f32 %v2113, %v817
    %v2178 = vmul.f32 %v2115, %v817
    %v2179 = vmul.f32 %v2117, %v817
    %v2180 = vmul.f32 %v2119, %v817
    %v2181 = vmul.f32 %v2121, %v817
    %v2182 = vmul.f32 %v2123, %v817
    %v2183 = vmul.f32 %v2125, %v817
    %v2184 = vmul.f32 %v2127, %v817
    %v2185 = vmul.f32 %v2129, %v817
    %v2186 = vmul.f32 %v2131, %v817
    %v2187 = vmul.f32 %v2133, %v817
    %v2188 = vmul.f32 %v2135, %v817
    %v2189 = vmul.f32 %v2137, %v817
    %v2190 = vmul.f32 %v2139, %v817
    %v2191 = vmul.f32 %v2141, %v817
    %v2192 = vmul.f32 %v2143, %v817
    %v2193 = vmul.f32 %v2145, %v817
    %v2194 = vadd.f32 %v2146, 1e-06
    %v2195 = vadd.f32 %v2147, 1e-06
    %v2196 = vadd.f32 %v2148, 1e-06
    %v2197 = vadd.f32 %v2149, 1e-06
    %v2198 = vadd.f32 %v2150, 1e-06
    %v2199 = vadd.f32 %v2151, 1e-06
    %v2200 = vadd.f32 %v2152, 1e-06
    %v2201 = vadd.f32 %v2153, 1e-06
    %v2202 = vadd.f32 %v2154, 1e-06
    %v2203 = vadd.f32 %v2155, 1e-06
    %v2204 = vadd.f32 %v2156, 1e-06
    %v2205 = vadd.f32 %v2157, 1e-06
    %v2206 = vadd.f32 %v2158, 1e-06
    %v2207 = vadd.f32 %v2159, 1e-06
    %v2208 = vadd.f32 %v2160, 1e-06
    %v2209 = vadd.f32 %v2161, 1e-06
    %v2210 = vadd.f32 %v2162, 1e-06
    %v2211 = vadd.f32 %v2163, 1e-06
    %v2212 = vadd.f32 %v2164, 1e-06
    %v2213 = vadd.f32 %v2165, 1e-06
    %v2214 = vadd.f32 %v2166, 1e-06
    %v2215 = vadd.f32 %v2167, 1e-06
    %v2216 = vadd.f32 %v2168, 1e-06
    %v2217 = vadd.f32 %v2169, 1e-06
    %v2218 = vadd.f32 %v2170, 1e-06
    %v2219 = vadd.f32 %v2171, 1e-06
    %v2220 = vadd.f32 %v2172, 1e-06
    %v2221 = vadd.f32 %v2173, 1e-06
    %v2222 = vadd.f32 %v2174, 1e-06
    %v2223 = vadd.f32 %v2175, 1e-06
    %v2224 = vadd.f32 %v2176, 1e-06
    %v2225 = vadd.f32 %v2177, 1e-06
    %v2226 = vadd.f32 %v2178, 1e-06
    %v2227 = vadd.f32 %v2179, 1e-06
    %v2228 = vadd.f32 %v2180, 1e-06
    %v2229 = vadd.f32 %v2181, 1e-06
    %v2230 = vadd.f32 %v2182, 1e-06
    %v2231 = vadd.f32 %v2183, 1e-06
    %v2232 = vadd.f32 %v2184, 1e-06
    %v2233 = vadd.f32 %v2185, 1e-06
    %v2234 = vadd.f32 %v2186, 1e-06
    %v2235 = vadd.f32 %v2187, 1e-06
    %v2236 = vadd.f32 %v2188, 1e-06
    %v2237 = vadd.f32 %v2189, 1e-06
    %v2238 = vadd.f32 %v2190, 1e-06
    %v2239 = vadd.f32 %v2191, 1e-06
    %v2240 = vadd.f32 %v2192, 1e-06
    %v2241 = vadd.f32 %v2193, 1e-06
    %v2242 = vrsqrt.pop %v2194
    %v2243 = vrsqrt.pop %v2195
    %v2244 = vrsqrt.pop %v2196
    %v2245 = vrsqrt.pop %v2197
    %v2246 = vrsqrt.pop %v2198
    %v2247 = vrsqrt.pop %v2199
    %v2248 = vrsqrt.pop %v2200
    %v2249 = vrsqrt.pop %v2201
    %v2250 = vrsqrt.pop %v2202
    %v2251 = vrsqrt.pop %v2203
    %v2252 = vrsqrt.pop %v2204
    %v2253 = vrsqrt.pop %v2205
    %v2254 = vrsqrt.pop %v2206
    %v2255 = vrsqrt.pop %v2207
    %v2256 = vrsqrt.pop %v2208
    %v2257 = vrsqrt.pop %v2209
    %v2258 = vrsqrt.pop %v2210
    %v2259 = vrsqrt.pop %v2211
    %v2260 = vrsqrt.pop %v2212
    %v2261 = vrsqrt.pop %v2213
    %v2262 = vrsqrt.pop %v2214
    %v2263 = vrsqrt.pop %v2215
    %v2264 = vrsqrt.pop %v2216
    %v2265 = vrsqrt.pop %v2217
    %v2266 = vrsqrt.pop %v2218
    %v2267 = vrsqrt.pop %v2219
    %v2268 = vrsqrt.pop %v2220
    %v2269 = vrsqrt.pop %v2221
    %v2270 = vrsqrt.pop %v2222
    %v2271 = vrsqrt.pop %v2223
    %v2272 = vrsqrt.pop %v2224
    %v2273 = vrsqrt.pop %v2225
    %v2274 = vrsqrt.pop %v2226
    %v2275 = vrsqrt.pop %v2227
    %v2276 = vrsqrt.pop %v2228
    %v2277 = vrsqrt.pop %v2229
    %v2278 = vrsqrt.pop %v2230
    %v2279 = vrsqrt.pop %v2231
    %v2280 = vrsqrt.pop %v2232
    %v2281 = vrsqrt.pop %v2233
    %v2282 = vrsqrt.pop %v2234
    %v2283 = vrsqrt.pop %v2235
    %v2284 = vrsqrt.pop %v2236
    %v2285 = vrsqrt.pop %v2237
    %v2286 = vrsqrt.pop %v2238
    %v2287 = vrsqrt.pop %v2239
    %v2288 = vrsqrt.pop %v2240
    %v2289 = vrsqrt.pop %v2241
    %v2290 = vmul.f32 %v1954, %v2242
    %v2291 = vmul.f32 %v1955, %v2243
    %v2292 = vmul.f32 %v1956, %v2244
    %v2293 = vmul.f32 %v1957, %v2245
    %v2294 = vmul.f32 %v1958, %v2246
    %v2295 = vmul.f32 %v1959, %v2247
    %v2296 = vmul.f32 %v1960, %v2248
    %v2297 = vmul.f32 %v1961, %v2249
    %v2298 = vmul.f32 %v1962, %v2250
    %v2299 = vmul.f32 %v1963, %v2251
    %v2300 = vmul.f32 %v1964, %v2252
    %v2301 = vmul.f32 %v1965, %v2253
    %v2302 = vmul.f32 %v1966, %v2254
    %v2303 = vmul.f32 %v1967, %v2255
    %v2304 = vmul.f32 %v1968, %v2256
    %v2305 = vmul.f32 %v1969, %v2257
    %v2306 = vmul.f32 %v1970, %v2258
    %v2307 = vmul.f32 %v1971, %v2259
    %v2308 = vmul.f32 %v1972, %v2260
    %v2309 = vmul.f32 %v1973, %v2261
    %v2310 = vmul.f32 %v1974, %v2262
    %v2311 = vmul.f32 %v1975, %v2263
    %v2312 = vmul.f32 %v1976, %v2264
    %v2313 = vmul.f32 %v1977, %v2265
    %v2314 = vmul.f32 %v1978, %v2266
    %v2315 = vmul.f32 %v1979, %v2267
    %v2316 = vmul.f32 %v1980, %v2268
    %v2317 = vmul.f32 %v1981, %v2269
    %v2318 = vmul.f32 %v1982, %v2270
    %v2319 = vmul.f32 %v1983, %v2271
    %v2320 = vmul.f32 %v1984, %v2272
    %v2321 = vmul.f32 %v1985, %v2273
    %v2322 = vmul.f32 %v1986, %v2274
    %v2323 = vmul.f32 %v1987, %v2275
    %v2324 = vmul.f32 %v1988, %v2276
    %v2325 = vmul.f32 %v1989, %v2277
    %v2326 = vmul.f32 %v1990, %v2278
    %v2327 = vmul.f32 %v1991, %v2279
    %v2328 = vmul.f32 %v1992, %v2280
    %v2329 = vmul.f32 %v1993, %v2281
    %v2330 = vmul.f32 %v1994, %v2282
    %v2331 = vmul.f32 %v1995, %v2283
    %v2332 = vmul.f32 %v1996, %v2284
    %v2333 = vmul.f32 %v1997, %v2285
    %v2334 = vmul.f32 %v1998, %v2286
    %v2335 = vmul.f32 %v1999, %v2287
    %v2336 = vmul.f32 %v2000, %v2288
    %v2337 = vmul.f32 %v2001, %v2289
    %v2338 = vpack.c.bf16 %v2291, %v2290
    %v2339 = vpack.c.bf16 %v2293, %v2292
    %v2340 = vpack.c.bf16 %v2295, %v2294
    %v2341 = vpack.c.bf16 %v2297, %v2296
    %v2342 = vpack.c.bf16 %v2299, %v2298
    %v2343 = vpack.c.bf16 %v2301, %v2300
    %v2344 = vpack.c.bf16 %v2303, %v2302
    %v2345 = vpack.c.bf16 %v2305, %v2304
    %v2346 = vpack.c.bf16 %v2307, %v2306
    %v2347 = vpack.c.bf16 %v2309, %v2308
    %v2348 = vpack.c.bf16 %v2311, %v2310
    %v2349 = vpack.c.bf16 %v2313, %v2312
    %v2350 = vpack.c.bf16 %v2315, %v2314
    %v2351 = vpack.c.bf16 %v2317, %v2316
    %v2352 = vpack.c.bf16 %v2319, %v2318
    %v2353 = vpack.c.bf16 %v2321, %v2320
    %v2354 = vpack.c.bf16 %v2323, %v2322
    %v2355 = vpack.c.bf16 %v2325, %v2324
    %v2356 = vpack.c.bf16 %v2327, %v2326
    %v2357 = vpack.c.bf16 %v2329, %v2328
    %v2358 = vpack.c.bf16 %v2331, %v2330
    %v2359 = vpack.c.bf16 %v2333, %v2332
    %v2360 = vpack.c.bf16 %v2335, %v2334
    %v2361 = vpack.c.bf16 %v2337, %v2336
    %v2362 = vld [vmem:[#allocation9] sm:$0xf]
    %v2363 = vld [vmem:[#allocation9 + $0x4] sm:$0xf]
    %v2364 = vld [vmem:[#allocation9 + $0x8] sm:$0xf]
    %v2365 = vld [vmem:[#allocation9 + $0xc] sm:$0xf]
    %v2366 = vld [vmem:[#allocation9 + $0x10] sm:$0xf]
    %v2367 = vld [vmem:[#allocation9 + $0x14] sm:$0xf]
    %v2368 = vld [vmem:[#allocation9 + $0x18] sm:$0xf]
    %v2369 = vld [vmem:[#allocation9 + $0x1c] sm:$0xf]
    %v2370 = vld [vmem:[#allocation9 + $0x20] sm:$0xf]
    %v2371 = vld [vmem:[#allocation9 + $0x24] sm:$0xf]
    %v2372 = vld [vmem:[#allocation9 + $0x28] sm:$0xf]
    %v2373 = vld [vmem:[#allocation9 + $0x2c] sm:$0xf]
    %v2374 = vld [vmem:[#allocation9 + $0x30] sm:$0xf]
    %v2375 = vld [vmem:[#allocation9 + $0x34] sm:$0xf]
    %v2376 = vld [vmem:[#allocation9 + $0x38] sm:$0xf]
    %v2377 = vld [vmem:[#allocation9 + $0x3c] sm:$0xf]
    %v2378 = vld [vmem:[%s6] sm:$0x1]
    %v2380 = vlaneseq
    %v2381 = vshrl.u32 %v2380, 7
    %v2382 = vsub.s32 0, %v2381
    %v2383 = vrot.slane %v2378, %v2382
    %v2401 = vunpack.c.l.b16 %v2362
    %v2402 = vunpack.c.l.b16 %v2363
    %v2403 = vunpack.c.l.b16 %v2364
    %v2404 = vunpack.c.l.b16 %v2365
    %v2405 = vunpack.c.l.b16 %v2366
    %v2406 = vunpack.c.l.b16 %v2367
    %v2407 = vunpack.c.l.b16 %v2368
    %v2408 = vunpack.c.l.b16 %v2369
    %v2409 = vunpack.c.l.b16 %v2370
    %v2410 = vunpack.c.l.b16 %v2371
    %v2411 = vunpack.c.l.b16 %v2372
    %v2412 = vunpack.c.l.b16 %v2373
    %v2413 = vunpack.c.l.b16 %v2374
    %v2414 = vunpack.c.l.b16 %v2375
    %v2415 = vunpack.c.l.b16 %v2376
    %v2416 = vunpack.c.l.b16 %v2377
    %v2417 = vpack.c.b16 %v2402, %v2401
    %v2418 = vpack.c.b16 %v2404, %v2403
    %v2419 = vpack.c.b16 %v2406, %v2405
    %v2420 = vpack.c.b16 %v2408, %v2407
    %v2421 = vpack.c.b16 %v2410, %v2409
    %v2422 = vpack.c.b16 %v2412, %v2411
    %v2423 = vpack.c.b16 %v2414, %v2413
    %v2424 = vpack.c.b16 %v2416, %v2415
    %2433 = vmatprep.subr.bf16.mxu0 0
    %2434 = vmatpush1.bf16.msra.mxu0 %v2424
    %2435 = vmatprep.subr.bf16.mxu0 0
    %2436 = vmatpush1.bf16.msra.mxu0 %v2423
    %2437 = vmatprep.subr.bf16.mxu0 0
    %2438 = vmatpush1.bf16.msra.mxu0 %v2422
    %2439 = vmatprep.subr.bf16.mxu0 0
    %2440 = vmatpush1.bf16.msra.mxu0 %v2421
    %2441 = vmatprep.subr.bf16.mxu0 0
    %2442 = vmatpush1.bf16.msra.mxu0 %v2420
    %2443 = vmatprep.subr.bf16.mxu0 0
    %2444 = vmatpush1.bf16.msra.mxu0 %v2419
    %2445 = vmatprep.subr.bf16.mxu0 0
    %2446 = vmatpush1.bf16.msra.mxu0 %v2418
    %2447 = vmatprep.subr.bf16.mxu0 0
    %2448 = vmatpush1.bf16.msra.mxu0 %v2417
    %2449 = vmatprep.subr.bf16.mxu0 0
    %2450 = vmatpush2.bf16.msra.mxu0 0
    %2451 = vmatprep.subr.bf16.mxu0 0
    %2452 = vmatpush2.bf16.msra.mxu0 0
    %2453 = vmatprep.subr.bf16.mxu0 0
    %2454 = vmatpush2.bf16.msra.mxu0 0
    %2455 = vmatprep.subr.bf16.mxu0 0
    %2456 = vmatpush2.bf16.msra.mxu0 0
    %2457 = vmatprep.subr.bf16.mxu0 0
    %2458 = vmatpush2.bf16.msra.mxu0 0
    %2459 = vmatprep.subr.bf16.mxu0 0
    %2460 = vmatpush2.bf16.msra.mxu0 0
    %2461 = vmatprep.subr.bf16.mxu0 0
    %2462 = vmatpush2.bf16.msra.mxu0 0
    %2463 = vmatprep.subr.bf16.mxu0 0
    %2464 = vmatpush2.bf16.msra.mxu0 0
    %2465 = vmatprep.mubr.bf16.mxu0 0
    %2466 = vmatmul.mubr.bf16.gmra.mxu0 %v2338
    %v2467 = vpop.f32.mrf.mxu0
    %v2468 = vadd.f32 %v2383, %v2467
    %v2469 = vpop.f32.mrf.mxu0
    %v2470 = vpop.f32.mrf.mxu0
    %v2471 = vadd.f32 %v2383, %v2470
    %v2472 = vpop.f32.mrf.mxu0
    %2473 = vmatprep.mubr.bf16.mxu0 0
    %2474 = vmatmul.mubr.bf16.gmra.mxu0 %v2339
    %v2475 = vpop.f32.mrf.mxu0
    %v2476 = vadd.f32 %v2383, %v2475
    %v2477 = vpop.f32.mrf.mxu0
    %v2478 = vpop.f32.mrf.mxu0
    %v2479 = vadd.f32 %v2383, %v2478
    %v2480 = vpop.f32.mrf.mxu0
    %2481 = vmatprep.mubr.bf16.mxu0 0
    %2482 = vmatmul.mubr.bf16.gmra.mxu0 %v2340
    %v2483 = vpop.f32.mrf.mxu0
    %v2484 = vadd.f32 %v2383, %v2483
    %v2485 = vpop.f32.mrf.mxu0
    %v2486 = vpop.f32.mrf.mxu0
    %v2487 = vadd.f32 %v2383, %v2486
    %v2488 = vpop.f32.mrf.mxu0
    %2489 = vmatprep.mubr.bf16.mxu0 0
    %2490 = vmatmul.mubr.bf16.gmra.mxu0 %v2341
    %v2491 = vpop.f32.mrf.mxu0
    %v2492 = vadd.f32 %v2383, %v2491
    %v2493 = vpop.f32.mrf.mxu0
    %v2494 = vpop.f32.mrf.mxu0
    %v2495 = vadd.f32 %v2383, %v2494
    %v2496 = vpop.f32.mrf.mxu0
    %2497 = vmatprep.mubr.bf16.mxu0 0
    %2498 = vmatmul.mubr.bf16.gmra.mxu0 %v2342
    %v2499 = vpop.f32.mrf.mxu0
    %v2500 = vadd.f32 %v2383, %v2499
    %v2501 = vpop.f32.mrf.mxu0
    %v2502 = vpop.f32.mrf.mxu0
    %v2503 = vadd.f32 %v2383, %v2502
    %v2504 = vpop.f32.mrf.mxu0
    %2505 = vmatprep.mubr.bf16.mxu0 0
    %2506 = vmatmul.mubr.bf16.gmra.mxu0 %v2343
    %v2507 = vpop.f32.mrf.mxu0
    %v2508 = vadd.f32 %v2383, %v2507
    %v2509 = vpop.f32.mrf.mxu0
    %v2510 = vpop.f32.mrf.mxu0
    %v2511 = vadd.f32 %v2383, %v2510
    %v2512 = vpop.f32.mrf.mxu0
    %2513 = vmatprep.mubr.bf16.mxu0 0
    %2514 = vmatmul.mubr.bf16.gmra.mxu0 %v2344
    %v2515 = vpop.f32.mrf.mxu0
    %v2516 = vadd.f32 %v2383, %v2515
    %v2517 = vpop.f32.mrf.mxu0
    %v2518 = vpop.f32.mrf.mxu0
    %v2519 = vadd.f32 %v2383, %v2518
    %v2520 = vpop.f32.mrf.mxu0
    %2521 = vmatprep.mubr.bf16.mxu0 0
    %2522 = vmatmul.mubr.bf16.gmra.mxu0 %v2345
    %v2523 = vpop.f32.mrf.mxu0
    %v2524 = vadd.f32 %v2383, %v2523
    %v2525 = vpop.f32.mrf.mxu0
    %v2526 = vpop.f32.mrf.mxu0
    %v2527 = vadd.f32 %v2383, %v2526
    %v2528 = vpop.f32.mrf.mxu0
    %2529 = vmatprep.mubr.bf16.mxu0 0
    %2530 = vmatmul.mubr.bf16.gmra.mxu0 %v2346
    %v2531 = vpop.f32.mrf.mxu0
    %v2532 = vadd.f32 %v2383, %v2531
    %v2533 = vpop.f32.mrf.mxu0
    %v2534 = vpop.f32.mrf.mxu0
    %v2535 = vadd.f32 %v2383, %v2534
    %v2536 = vpop.f32.mrf.mxu0
    %2537 = vmatprep.mubr.bf16.mxu0 0
    %2538 = vmatmul.mubr.bf16.gmra.mxu0 %v2347
    %v2539 = vpop.f32.mrf.mxu0
    %v2540 = vadd.f32 %v2383, %v2539
    %v2541 = vpop.f32.mrf.mxu0
    %v2542 = vpop.f32.mrf.mxu0
    %v2543 = vadd.f32 %v2383, %v2542
    %v2544 = vpop.f32.mrf.mxu0
    %2545 = vmatprep.mubr.bf16.mxu0 0
    %2546 = vmatmul.mubr.bf16.gmra.mxu0 %v2348
    %v2547 = vpop.f32.mrf.mxu0
    %v2548 = vadd.f32 %v2383, %v2547
    %v2549 = vpop.f32.mrf.mxu0
    %v2550 = vpop.f32.mrf.mxu0
    %v2551 = vadd.f32 %v2383, %v2550
    %v2552 = vpop.f32.mrf.mxu0
    %2553 = vmatprep.mubr.bf16.mxu0 0
    %2554 = vmatmul.mubr.bf16.gmra.mxu0 %v2349
    %v2555 = vpop.f32.mrf.mxu0
    %v2556 = vadd.f32 %v2383, %v2555
    %v2557 = vpop.f32.mrf.mxu0
    %v2558 = vpop.f32.mrf.mxu0
    %v2559 = vadd.f32 %v2383, %v2558
    %v2560 = vpop.f32.mrf.mxu0
    %2561 = vmatprep.mubr.bf16.mxu0 0
    %2562 = vmatmul.mubr.bf16.gmra.mxu0 %v2350
    %v2563 = vpop.f32.mrf.mxu0
    %v2564 = vadd.f32 %v2383, %v2563
    %v2565 = vpop.f32.mrf.mxu0
    %v2566 = vpop.f32.mrf.mxu0
    %v2567 = vadd.f32 %v2383, %v2566
    %v2568 = vpop.f32.mrf.mxu0
    %2569 = vmatprep.mubr.bf16.mxu0 0
    %2570 = vmatmul.mubr.bf16.gmra.mxu0 %v2351
    %v2571 = vpop.f32.mrf.mxu0
    %v2572 = vadd.f32 %v2383, %v2571
    %v2573 = vpop.f32.mrf.mxu0
    %v2574 = vpop.f32.mrf.mxu0
    %v2575 = vadd.f32 %v2383, %v2574
    %v2576 = vpop.f32.mrf.mxu0
    %2577 = vmatprep.mubr.bf16.mxu0 0
    %2578 = vmatmul.mubr.bf16.gmra.mxu0 %v2352
    %v2579 = vpop.f32.mrf.mxu0
    %v2580 = vadd.f32 %v2383, %v2579
    %v2581 = vpop.f32.mrf.mxu0
    %v2582 = vpop.f32.mrf.mxu0
    %v2583 = vadd.f32 %v2383, %v2582
    %v2584 = vpop.f32.mrf.mxu0
    %2585 = vmatprep.mubr.bf16.mxu0 0
    %2586 = vmatmul.mubr.bf16.gmra.mxu0 %v2353
    %v2587 = vpop.f32.mrf.mxu0
    %v2588 = vadd.f32 %v2383, %v2587
    %v2589 = vpop.f32.mrf.mxu0
    %v2590 = vpop.f32.mrf.mxu0
    %v2591 = vadd.f32 %v2383, %v2590
    %v2592 = vpop.f32.mrf.mxu0
    %2593 = vmatprep.mubr.bf16.mxu0 0
    %2594 = vmatmul.mubr.bf16.gmra.mxu0 %v2354
    %v2595 = vpop.f32.mrf.mxu0
    %v2596 = vadd.f32 %v2383, %v2595
    %v2597 = vpop.f32.mrf.mxu0
    %v2598 = vpop.f32.mrf.mxu0
    %v2599 = vadd.f32 %v2383, %v2598
    %v2600 = vpop.f32.mrf.mxu0
    %2601 = vmatprep.mubr.bf16.mxu0 0
    %2602 = vmatmul.mubr.bf16.gmra.mxu0 %v2355
    %v2603 = vpop.f32.mrf.mxu0
    %v2604 = vadd.f32 %v2383, %v2603
    %v2605 = vpop.f32.mrf.mxu0
    %v2606 = vpop.f32.mrf.mxu0
    %v2607 = vadd.f32 %v2383, %v2606
    %v2608 = vpop.f32.mrf.mxu0
    %2609 = vmatprep.mubr.bf16.mxu0 0
    %2610 = vmatmul.mubr.bf16.gmra.mxu0 %v2356
    %v2611 = vpop.f32.mrf.mxu0
    %v2612 = vadd.f32 %v2383, %v2611
    %v2613 = vpop.f32.mrf.mxu0
    %v2614 = vpop.f32.mrf.mxu0
    %v2615 = vadd.f32 %v2383, %v2614
    %v2616 = vpop.f32.mrf.mxu0
    %2617 = vmatprep.mubr.bf16.mxu0 0
    %2618 = vmatmul.mubr.bf16.gmra.mxu0 %v2357
    %v2619 = vpop.f32.mrf.mxu0
    %v2620 = vadd.f32 %v2383, %v2619
    %v2621 = vpop.f32.mrf.mxu0
    %v2622 = vpop.f32.mrf.mxu0
    %v2623 = vadd.f32 %v2383, %v2622
    %v2624 = vpop.f32.mrf.mxu0
    %2625 = vmatprep.mubr.bf16.mxu0 0
    %2626 = vmatmul.mubr.bf16.gmra.mxu0 %v2358
    %v2627 = vpop.f32.mrf.mxu0
    %v2628 = vadd.f32 %v2383, %v2627
    %v2629 = vpop.f32.mrf.mxu0
    %v2630 = vpop.f32.mrf.mxu0
    %v2631 = vadd.f32 %v2383, %v2630
    %v2632 = vpop.f32.mrf.mxu0
    %2633 = vmatprep.mubr.bf16.mxu0 0
    %2634 = vmatmul.mubr.bf16.gmra.mxu0 %v2359
    %v2635 = vpop.f32.mrf.mxu0
    %v2636 = vadd.f32 %v2383, %v2635
    %v2637 = vpop.f32.mrf.mxu0
    %v2638 = vpop.f32.mrf.mxu0
    %v2639 = vadd.f32 %v2383, %v2638
    %v2640 = vpop.f32.mrf.mxu0
    %2641 = vmatprep.mubr.bf16.mxu0 0
    %2642 = vmatmul.mubr.bf16.gmra.mxu0 %v2360
    %v2643 = vpop.f32.mrf.mxu0
    %v2644 = vadd.f32 %v2383, %v2643
    %v2645 = vpop.f32.mrf.mxu0
    %v2646 = vpop.f32.mrf.mxu0
    %v2647 = vadd.f32 %v2383, %v2646
    %v2648 = vpop.f32.mrf.mxu0
    %2649 = vmatprep.mubr.bf16.mxu0 0
    %2650 = vmatmul.mubr.bf16.gmra.mxu0 %v2361
    %v2651 = vpop.f32.mrf.mxu0
    %v2652 = vadd.f32 %v2383, %v2651
    %v2653 = vpop.f32.mrf.mxu0
    %v2654 = vpop.f32.mrf.mxu0
    %v2655 = vadd.f32 %v2383, %v2654
    %v2656 = vpop.f32.mrf.mxu0
    %2657 = vdwg.mxu0
    %v2658 = vpack.c.bf16 %v2471, %v2468
    %v2659 = vpack.c.bf16 %v2479, %v2476
    %v2660 = vpack.c.bf16 %v2487, %v2484
    %v2661 = vpack.c.bf16 %v2495, %v2492
    %v2662 = vpack.c.bf16 %v2503, %v2500
    %v2663 = vpack.c.bf16 %v2511, %v2508
    %v2664 = vpack.c.bf16 %v2519, %v2516
    %v2665 = vpack.c.bf16 %v2527, %v2524
    %v2666 = vpack.c.bf16 %v2535, %v2532
    %v2667 = vpack.c.bf16 %v2543, %v2540
    %v2668 = vpack.c.bf16 %v2551, %v2548
    %v2669 = vpack.c.bf16 %v2559, %v2556
    %v2670 = vpack.c.bf16 %v2567, %v2564
    %v2671 = vpack.c.bf16 %v2575, %v2572
    %v2672 = vpack.c.bf16 %v2583, %v2580
    %v2673 = vpack.c.bf16 %v2591, %v2588
    %v2674 = vpack.c.bf16 %v2599, %v2596
    %v2675 = vpack.c.bf16 %v2607, %v2604
    %v2676 = vpack.c.bf16 %v2615, %v2612
    %v2677 = vpack.c.bf16 %v2623, %v2620
    %v2678 = vpack.c.bf16 %v2631, %v2628
    %v2679 = vpack.c.bf16 %v2639, %v2636
    %v2680 = vpack.c.bf16 %v2647, %v2644
    %v2681 = vpack.c.bf16 %v2655, %v2652
    %v2682 = vld [vmem:[#allocation10] sm:$0xf]
    %v2683 = vld [vmem:[#allocation10 + $0x4] sm:$0xf]
    %v2684 = vld [vmem:[#allocation10 + $0x8] sm:$0xf]
    %v2685 = vld [vmem:[#allocation10 + $0xc] sm:$0xf]
    %v2686 = vld [vmem:[#allocation10 + $0x10] sm:$0xf]
    %v2687 = vld [vmem:[#allocation10 + $0x14] sm:$0xf]
    %v2688 = vld [vmem:[#allocation10 + $0x18] sm:$0xf]
    %v2689 = vld [vmem:[#allocation10 + $0x1c] sm:$0xf]
    %v2690 = vld [vmem:[#allocation10 + $0x20] sm:$0xf]
    %v2691 = vld [vmem:[#allocation10 + $0x24] sm:$0xf]
    %v2692 = vld [vmem:[#allocation10 + $0x28] sm:$0xf]
    %v2693 = vld [vmem:[#allocation10 + $0x2c] sm:$0xf]
    %v2694 = vld [vmem:[#allocation10 + $0x30] sm:$0xf]
    %v2695 = vld [vmem:[#allocation10 + $0x34] sm:$0xf]
    %v2696 = vld [vmem:[#allocation10 + $0x38] sm:$0xf]
    %v2697 = vld [vmem:[#allocation10 + $0x3c] sm:$0xf]
    %v2698 = vld [vmem:[%s8] sm:$0x1]
    %v2700 = vlaneseq
    %v2701 = vshrl.u32 %v2700, 7
    %v2702 = vsub.s32 0, %v2701
    %v2703 = vrot.slane %v2698, %v2702
    %v2721 = vunpack.c.l.b16 %v2682
    %v2722 = vunpack.c.l.b16 %v2683
    %v2723 = vunpack.c.l.b16 %v2684
    %v2724 = vunpack.c.l.b16 %v2685
    %v2725 = vunpack.c.l.b16 %v2686
    %v2726 = vunpack.c.l.b16 %v2687
    %v2727 = vunpack.c.l.b16 %v2688
    %v2728 = vunpack.c.l.b16 %v2689
    %v2729 = vunpack.c.l.b16 %v2690
    %v2730 = vunpack.c.l.b16 %v2691
    %v2731 = vunpack.c.l.b16 %v2692
    %v2732 = vunpack.c.l.b16 %v2693
    %v2733 = vunpack.c.l.b16 %v2694
    %v2734 = vunpack.c.l.b16 %v2695
    %v2735 = vunpack.c.l.b16 %v2696
    %v2736 = vunpack.c.l.b16 %v2697
    %v2737 = vpack.c.b16 %v2722, %v2721
    %v2738 = vpack.c.b16 %v2724, %v2723
    %v2739 = vpack.c.b16 %v2726, %v2725
    %v2740 = vpack.c.b16 %v2728, %v2727
    %v2741 = vpack.c.b16 %v2730, %v2729
    %v2742 = vpack.c.b16 %v2732, %v2731
    %v2743 = vpack.c.b16 %v2734, %v2733
    %v2744 = vpack.c.b16 %v2736, %v2735
    %2753 = vmatprep.subr.bf16.mxu0 0
    %2754 = vmatpush1.bf16.msra.mxu0 %v2744
    %2755 = vmatprep.subr.bf16.mxu0 0
    %2756 = vmatpush1.bf16.msra.mxu0 %v2743
    %2757 = vmatprep.subr.bf16.mxu0 0
    %2758 = vmatpush1.bf16.msra.mxu0 %v2742
    %2759 = vmatprep.subr.bf16.mxu0 0
    %2760 = vmatpush1.bf16.msra.mxu0 %v2741
    %2761 = vmatprep.subr.bf16.mxu0 0
    %2762 = vmatpush1.bf16.msra.mxu0 %v2740
    %2763 = vmatprep.subr.bf16.mxu0 0
    %2764 = vmatpush1.bf16.msra.mxu0 %v2739
    %2765 = vmatprep.subr.bf16.mxu0 0
    %2766 = vmatpush1.bf16.msra.mxu0 %v2738
    %2767 = vmatprep.subr.bf16.mxu0 0
    %2768 = vmatpush1.bf16.msra.mxu0 %v2737
    %2769 = vmatprep.subr.bf16.mxu0 0
    %2770 = vmatpush2.bf16.msra.mxu0 0
    %2771 = vmatprep.subr.bf16.mxu0 0
    %2772 = vmatpush2.bf16.msra.mxu0 0
    %2773 = vmatprep.subr.bf16.mxu0 0
    %2774 = vmatpush2.bf16.msra.mxu0 0
    %2775 = vmatprep.subr.bf16.mxu0 0
    %2776 = vmatpush2.bf16.msra.mxu0 0
    %2777 = vmatprep.subr.bf16.mxu0 0
    %2778 = vmatpush2.bf16.msra.mxu0 0
    %2779 = vmatprep.subr.bf16.mxu0 0
    %2780 = vmatpush2.bf16.msra.mxu0 0
    %2781 = vmatprep.subr.bf16.mxu0 0
    %2782 = vmatpush2.bf16.msra.mxu0 0
    %2783 = vmatprep.subr.bf16.mxu0 0
    %2784 = vmatpush2.bf16.msra.mxu0 0
    %2785 = vmatprep.mubr.bf16.mxu0 0
    %2786 = vmatmul.mubr.bf16.gmra.mxu0 %v2658
    %v2787 = vpop.f32.mrf.mxu0
    %v2788 = vadd.f32 %v2703, %v2787
    %v2789 = vpop.f32.mrf.mxu0
    %v2790 = vpop.f32.mrf.mxu0
    %v2791 = vadd.f32 %v2703, %v2790
    %v2792 = vpop.f32.mrf.mxu0
    %2793 = vmatprep.mubr.bf16.mxu0 0
    %2794 = vmatmul.mubr.bf16.gmra.mxu0 %v2659
    %v2795 = vpop.f32.mrf.mxu0
    %v2796 = vadd.f32 %v2703, %v2795
    %v2797 = vpop.f32.mrf.mxu0
    %v2798 = vpop.f32.mrf.mxu0
    %v2799 = vadd.f32 %v2703, %v2798
    %v2800 = vpop.f32.mrf.mxu0
    %2801 = vmatprep.mubr.bf16.mxu0 0
    %2802 = vmatmul.mubr.bf16.gmra.mxu0 %v2660
    %v2803 = vpop.f32.mrf.mxu0
    %v2804 = vadd.f32 %v2703, %v2803
    %v2805 = vpop.f32.mrf.mxu0
    %v2806 = vpop.f32.mrf.mxu0
    %v2807 = vadd.f32 %v2703, %v2806
    %v2808 = vpop.f32.mrf.mxu0
    %2809 = vmatprep.mubr.bf16.mxu0 0
    %2810 = vmatmul.mubr.bf16.gmra.mxu0 %v2661
    %v2811 = vpop.f32.mrf.mxu0
    %v2812 = vadd.f32 %v2703, %v2811
    %v2813 = vpop.f32.mrf.mxu0
    %v2814 = vpop.f32.mrf.mxu0
    %v2815 = vadd.f32 %v2703, %v2814
    %v2816 = vpop.f32.mrf.mxu0
    %2817 = vmatprep.mubr.bf16.mxu0 0
    %2818 = vmatmul.mubr.bf16.gmra.mxu0 %v2662
    %v2819 = vpop.f32.mrf.mxu0
    %v2820 = vadd.f32 %v2703, %v2819
    %v2821 = vpop.f32.mrf.mxu0
    %v2822 = vpop.f32.mrf.mxu0
    %v2823 = vadd.f32 %v2703, %v2822
    %v2824 = vpop.f32.mrf.mxu0
    %2825 = vmatprep.mubr.bf16.mxu0 0
    %2826 = vmatmul.mubr.bf16.gmra.mxu0 %v2663
    %v2827 = vpop.f32.mrf.mxu0
    %v2828 = vadd.f32 %v2703, %v2827
    %v2829 = vpop.f32.mrf.mxu0
    %v2830 = vpop.f32.mrf.mxu0
    %v2831 = vadd.f32 %v2703, %v2830
    %v2832 = vpop.f32.mrf.mxu0
    %2833 = vmatprep.mubr.bf16.mxu0 0
    %2834 = vmatmul.mubr.bf16.gmra.mxu0 %v2664
    %v2835 = vpop.f32.mrf.mxu0
    %v2836 = vadd.f32 %v2703, %v2835
    %v2837 = vpop.f32.mrf.mxu0
    %v2838 = vpop.f32.mrf.mxu0
    %v2839 = vadd.f32 %v2703, %v2838
    %v2840 = vpop.f32.mrf.mxu0
    %2841 = vmatprep.mubr.bf16.mxu0 0
    %2842 = vmatmul.mubr.bf16.gmra.mxu0 %v2665
    %v2843 = vpop.f32.mrf.mxu0
    %v2844 = vadd.f32 %v2703, %v2843
    %v2845 = vpop.f32.mrf.mxu0
    %v2846 = vpop.f32.mrf.mxu0
    %v2847 = vadd.f32 %v2703, %v2846
    %v2848 = vpop.f32.mrf.mxu0
    %2849 = vmatprep.mubr.bf16.mxu0 0
    %2850 = vmatmul.mubr.bf16.gmra.mxu0 %v2666
    %v2851 = vpop.f32.mrf.mxu0
    %v2852 = vadd.f32 %v2703, %v2851
    %v2853 = vpop.f32.mrf.mxu0
    %v2854 = vpop.f32.mrf.mxu0
    %v2855 = vadd.f32 %v2703, %v2854
    %v2856 = vpop.f32.mrf.mxu0
    %2857 = vmatprep.mubr.bf16.mxu0 0
    %2858 = vmatmul.mubr.bf16.gmra.mxu0 %v2667
    %v2859 = vpop.f32.mrf.mxu0
    %v2860 = vadd.f32 %v2703, %v2859
    %v2861 = vpop.f32.mrf.mxu0
    %v2862 = vpop.f32.mrf.mxu0
    %v2863 = vadd.f32 %v2703, %v2862
    %v2864 = vpop.f32.mrf.mxu0
    %2865 = vmatprep.mubr.bf16.mxu0 0
    %2866 = vmatmul.mubr.bf16.gmra.mxu0 %v2668
    %v2867 = vpop.f32.mrf.mxu0
    %v2868 = vadd.f32 %v2703, %v2867
    %v2869 = vpop.f32.mrf.mxu0
    %v2870 = vpop.f32.mrf.mxu0
    %v2871 = vadd.f32 %v2703, %v2870
    %v2872 = vpop.f32.mrf.mxu0
    %2873 = vmatprep.mubr.bf16.mxu0 0
    %2874 = vmatmul.mubr.bf16.gmra.mxu0 %v2669
    %v2875 = vpop.f32.mrf.mxu0
    %v2876 = vadd.f32 %v2703, %v2875
    %v2877 = vpop.f32.mrf.mxu0
    %v2878 = vpop.f32.mrf.mxu0
    %v2879 = vadd.f32 %v2703, %v2878
    %v2880 = vpop.f32.mrf.mxu0
    %2881 = vmatprep.mubr.bf16.mxu0 0
    %2882 = vmatmul.mubr.bf16.gmra.mxu0 %v2670
    %v2883 = vpop.f32.mrf.mxu0
    %v2884 = vadd.f32 %v2703, %v2883
    %v2885 = vpop.f32.mrf.mxu0
    %v2886 = vpop.f32.mrf.mxu0
    %v2887 = vadd.f32 %v2703, %v2886
    %v2888 = vpop.f32.mrf.mxu0
    %2889 = vmatprep.mubr.bf16.mxu0 0
    %2890 = vmatmul.mubr.bf16.gmra.mxu0 %v2671
    %v2891 = vpop.f32.mrf.mxu0
    %v2892 = vadd.f32 %v2703, %v2891
    %v2893 = vpop.f32.mrf.mxu0
    %v2894 = vpop.f32.mrf.mxu0
    %v2895 = vadd.f32 %v2703, %v2894
    %v2896 = vpop.f32.mrf.mxu0
    %2897 = vmatprep.mubr.bf16.mxu0 0
    %2898 = vmatmul.mubr.bf16.gmra.mxu0 %v2672
    %v2899 = vpop.f32.mrf.mxu0
    %v2900 = vadd.f32 %v2703, %v2899
    %v2901 = vpop.f32.mrf.mxu0
    %v2902 = vpop.f32.mrf.mxu0
    %v2903 = vadd.f32 %v2703, %v2902
    %v2904 = vpop.f32.mrf.mxu0
    %2905 = vmatprep.mubr.bf16.mxu0 0
    %2906 = vmatmul.mubr.bf16.gmra.mxu0 %v2673
    %v2907 = vpop.f32.mrf.mxu0
    %v2908 = vadd.f32 %v2703, %v2907
    %v2909 = vpop.f32.mrf.mxu0
    %v2910 = vpop.f32.mrf.mxu0
    %v2911 = vadd.f32 %v2703, %v2910
    %v2912 = vpop.f32.mrf.mxu0
    %2913 = vmatprep.mubr.bf16.mxu0 0
    %2914 = vmatmul.mubr.bf16.gmra.mxu0 %v2674
    %v2915 = vpop.f32.mrf.mxu0
    %v2916 = vadd.f32 %v2703, %v2915
    %v2917 = vpop.f32.mrf.mxu0
    %v2918 = vpop.f32.mrf.mxu0
    %v2919 = vadd.f32 %v2703, %v2918
    %v2920 = vpop.f32.mrf.mxu0
    %2921 = vmatprep.mubr.bf16.mxu0 0
    %2922 = vmatmul.mubr.bf16.gmra.mxu0 %v2675
    %v2923 = vpop.f32.mrf.mxu0
    %v2924 = vadd.f32 %v2703, %v2923
    %v2925 = vpop.f32.mrf.mxu0
    %v2926 = vpop.f32.mrf.mxu0
    %v2927 = vadd.f32 %v2703, %v2926
    %v2928 = vpop.f32.mrf.mxu0
    %2929 = vmatprep.mubr.bf16.mxu0 0
    %2930 = vmatmul.mubr.bf16.gmra.mxu0 %v2676
    %v2931 = vpop.f32.mrf.mxu0
    %v2932 = vadd.f32 %v2703, %v2931
    %v2933 = vpop.f32.mrf.mxu0
    %v2934 = vpop.f32.mrf.mxu0
    %v2935 = vadd.f32 %v2703, %v2934
    %v2936 = vpop.f32.mrf.mxu0
    %2937 = vmatprep.mubr.bf16.mxu0 0
    %2938 = vmatmul.mubr.bf16.gmra.mxu0 %v2677
    %v2939 = vpop.f32.mrf.mxu0
    %v2940 = vadd.f32 %v2703, %v2939
    %v2941 = vpop.f32.mrf.mxu0
    %v2942 = vpop.f32.mrf.mxu0
    %v2943 = vadd.f32 %v2703, %v2942
    %v2944 = vpop.f32.mrf.mxu0
    %2945 = vmatprep.mubr.bf16.mxu0 0
    %2946 = vmatmul.mubr.bf16.gmra.mxu0 %v2678
    %v2947 = vpop.f32.mrf.mxu0
    %v2948 = vadd.f32 %v2703, %v2947
    %v2949 = vpop.f32.mrf.mxu0
    %v2950 = vpop.f32.mrf.mxu0
    %v2951 = vadd.f32 %v2703, %v2950
    %v2952 = vpop.f32.mrf.mxu0
    %2953 = vmatprep.mubr.bf16.mxu0 0
    %2954 = vmatmul.mubr.bf16.gmra.mxu0 %v2679
    %v2955 = vpop.f32.mrf.mxu0
    %v2956 = vadd.f32 %v2703, %v2955
    %v2957 = vpop.f32.mrf.mxu0
    %v2958 = vpop.f32.mrf.mxu0
    %v2959 = vadd.f32 %v2703, %v2958
    %v2960 = vpop.f32.mrf.mxu0
    %2961 = vmatprep.mubr.bf16.mxu0 0
    %2962 = vmatmul.mubr.bf16.gmra.mxu0 %v2680
    %v2963 = vpop.f32.mrf.mxu0
    %v2964 = vadd.f32 %v2703, %v2963
    %v2965 = vpop.f32.mrf.mxu0
    %v2966 = vpop.f32.mrf.mxu0
    %v2967 = vadd.f32 %v2703, %v2966
    %v2968 = vpop.f32.mrf.mxu0
    %2969 = vmatprep.mubr.bf16.mxu0 0
    %2970 = vmatmul.mubr.bf16.gmra.mxu0 %v2681
    %v2971 = vpop.f32.mrf.mxu0
    %v2972 = vadd.f32 %v2703, %v2971
    %v2973 = vpop.f32.mrf.mxu0
    %v2974 = vpop.f32.mrf.mxu0
    %v2975 = vadd.f32 %v2703, %v2974
    %v2976 = vpop.f32.mrf.mxu0
    %2977 = vdwg.mxu0
    %2978 = vst [vmem:[%s9] sm:$0xff] %v2788
    %2979 = vst [vmem:[%s9 + $0x8] sm:$0xff] %v2791
    %2980 = vst [vmem:[%s9 + $0x10] sm:$0xff] %v2796
    %2981 = vst [vmem:[%s9 + $0x18] sm:$0xff] %v2799
    %2982 = vst [vmem:[%s9 + $0x20] sm:$0xff] %v2804
    %2983 = vst [vmem:[%s9 + $0x28] sm:$0xff] %v2807
    %2984 = vst [vmem:[%s9 + $0x30] sm:$0xff] %v2812
    %2985 = vst [vmem:[%s9 + $0x38] sm:$0xff] %v2815
    %2986 = vst [vmem:[%s9 + $0x40] sm:$0xff] %v2820
    %2987 = vst [vmem:[%s9 + $0x48] sm:$0xff] %v2823
    %2988 = vst [vmem:[%s9 + $0x50] sm:$0xff] %v2828
    %2989 = vst [vmem:[%s9 + $0x58] sm:$0xff] %v2831
    %2990 = vst [vmem:[%s9 + $0x60] sm:$0xff] %v2836
    %2991 = vst [vmem:[%s9 + $0x68] sm:$0xff] %v2839
    %2992 = vst [vmem:[%s9 + $0x70] sm:$0xff] %v2844
    %2993 = vst [vmem:[%s9 + $0x78] sm:$0xff] %v2847
    %2994 = vst [vmem:[%s9 + $0x80] sm:$0xff] %v2852
    %2995 = vst [vmem:[%s9 + $0x88] sm:$0xff] %v2855
    %2996 = vst [vmem:[%s9 + $0x90] sm:$0xff] %v2860
    %2997 = vst [vmem:[%s9 + $0x98] sm:$0xff] %v2863
    %2998 = vst [vmem:[%s9 + $0xa0] sm:$0xff] %v2868
    %2999 = vst [vmem:[%s9 + $0xa8] sm:$0xff] %v2871
    %3000 = vst [vmem:[%s9 + $0xb0] sm:$0xff] %v2876
    %3001 = vst [vmem:[%s9 + $0xb8] sm:$0xff] %v2879
    %3002 = vst [vmem:[%s9 + $0xc0] sm:$0xff] %v2884
    %3003 = vst [vmem:[%s9 + $0xc8] sm:$0xff] %v2887
    %3004 = vst [vmem:[%s9 + $0xd0] sm:$0xff] %v2892
    %3005 = vst [vmem:[%s9 + $0xd8] sm:$0xff] %v2895
    %3006 = vst [vmem:[%s9 + $0xe0] sm:$0xff] %v2900
    %3007 = vst [vmem:[%s9 + $0xe8] sm:$0xff] %v2903
    %3008 = vst [vmem:[%s9 + $0xf0] sm:$0xff] %v2908
    %3009 = vst [vmem:[%s9 + $0xf8] sm:$0xff] %v2911
    %3010 = vst [vmem:[%s9 + $0x100] sm:$0xff] %v2916
    %3011 = vst [vmem:[%s9 + $0x108] sm:$0xff] %v2919
    %3012 = vst [vmem:[%s9 + $0x110] sm:$0xff] %v2924
    %3013 = vst [vmem:[%s9 + $0x118] sm:$0xff] %v2927
    %3014 = vst [vmem:[%s9 + $0x120] sm:$0xff] %v2932
    %3015 = vst [vmem:[%s9 + $0x128] sm:$0xff] %v2935
    %3016 = vst [vmem:[%s9 + $0x130] sm:$0xff] %v2940
    %3017 = vst [vmem:[%s9 + $0x138] sm:$0xff] %v2943
    %3018 = vst [vmem:[%s9 + $0x140] sm:$0xff] %v2948
    %3019 = vst [vmem:[%s9 + $0x148] sm:$0xff] %v2951
    %3020 = vst [vmem:[%s9 + $0x150] sm:$0xff] %v2956
    %3021 = vst [vmem:[%s9 + $0x158] sm:$0xff] %v2959
    %3022 = vst [vmem:[%s9 + $0x160] sm:$0xff] %v2964
    %3023 = vst [vmem:[%s9 + $0x168] sm:$0xff] %v2967
    %3024 = vst [vmem:[%s9 + $0x170] sm:$0xff] %v2972
    %3025 = vst [vmem:[%s9 + $0x178] sm:$0xff] %v2975
    // Predicated region
    $region62: #{graph_mlp_forward.1} parent=1 // pred_check
      _
    $region63: #{graph_mlp_forward.1} parent=1 // pred_check_branch
      %3027 = sbr.rel (0) target = $region65
    $region64: #{graph_mlp_forward.1} parent=1 // pred_region
      _
    $region65: #{graph_mlp_forward.1} parent=1 // pred_fallthru
      _
    // Predicated region
    $region66: #{graph_mlp_forward.1} parent=1 // pred_check
      _
    $region67: #{graph_mlp_forward.1} parent=1 // pred_check_branch
      %3029 = sbr.rel (0) target = $region69
    $region68: #{graph_mlp_forward.1} parent=1 // pred_region
      _
    $region69: #{graph_mlp_forward.1} parent=1 // pred_fallthru
      _
    %3030 = vsyncpa [#allocation3], 1
    %3031 = vsyncpa [#allocation5], 1
    %3032 = vsyncpa [#allocation8], 1
    %3033 = vsyncpa [#allocation11], 1

</llo_original>
